<compile_context>
chip_gen: v6e
topology: v6e:2x2x1
jax: 0.10.0
libtpu: 0.0.40
codegen_flags: <defaults>
</compile_context>

<pallas_src>
import functools

import jax
import jax.numpy as jnp
from jax import lax
from jax.experimental import pallas as pl
from jax.experimental.pallas import tpu as pltpu


# Set to jnp.bfloat16 on v6e/v7x to halve conv HBM/VMEM bytes and double MXU
# rate (AGN / LeakyReLU math stays f32 via preferred_element_type).  Kept f32
# here so the self-check against the f32 reference is exact.
_CONV_COMPUTE_DTYPE = jnp.float32

# Per-grid-step VMEM budget for block sizing, and an explicit compiler limit.
# Sized conservatively for v7x (64 MiB physical / 32 MiB default scoped VMEM).
_VMEM_BLOCK_BUDGET = 8 * 1024 * 1024
_VMEM_LIMIT_BYTES = 32 * 1024 * 1024


# --------------------------------------------------------------------------
# Fused layer kernel: conv3x3 (+bias) [+ AdaptiveGroupNorm] [+ LeakyReLU]
#                     [+ 2x nearest upsample folded into the store]
# --------------------------------------------------------------------------
def _fused_layer_kernel(*refs, H, W, Cin, Cout, G, eps, do_agn, leaky,
                        upsample, bn):
    if do_agn:
        (x_ref, w_ref, b_ref, gam_ref, bet_ref, icg_ref, igc_ref, o_ref) = refs
    else:
        (x_ref, w_ref, b_ref, o_ref) = refs

    f32 = jnp.float32
    K = 3 * Cin
    M = bn * H * W

    x = x_ref[...]                                          # (bn, H, W, Cin)
    cdt = x.dtype

    # -- W-direction im2col built in registers with a zero halo (no wrapper
    #    pad, no per-tap strided re-slicing):
    #    xcat[n, h, w, dx*Cin:(dx+1)*Cin] = xpad[n, h+1, w+dx, :]
    zc = jnp.zeros((bn, H, 1, Cin), cdt)
    xcat = jnp.concatenate(
        [jnp.concatenate([zc, x[:, :, :W - 1, :]], axis=2),  # left neighbour
         x,                                                  # centre column
         jnp.concatenate([x[:, :, 1:, :], zc], axis=2)],     # right neighbour
        axis=3)                                              # (bn, H, W, 3*Cin)

    # -- single MXU dot: K = 3*Cin, N = 3*Cout (all three dy taps at once) --
    u = jnp.dot(xcat.reshape(M, K), w_ref[...],
                preferred_element_type=f32).reshape(bn, H, W, 3 * Cout)

    # -- combine the three dy taps with row shifts (zero halo rows) --
    zr = jnp.zeros((bn, 1, W, Cout), f32)
    top = u[:, :, :, 0:Cout]                # dy = 0 tap -> contributes one row down
    mid = u[:, :, :, Cout:2 * Cout]         # dy = 1 tap
    bot = u[:, :, :, 2 * Cout:3 * Cout]     # dy = 2 tap -> contributes one row up
    acc = (mid
           + jnp.concatenate([zr, top[:, :H - 1]], axis=1)
           + jnp.concatenate([bot[:, 1:], zr], axis=1))
    acc = acc + b_ref[...]                                   # (bn, H, W, Cout)

    y = acc.reshape(bn, H * W, Cout)

    if do_agn:
        # Per-image GroupNorm (affine=False, eps matches the module's 1e-6),
        # two-pass (centered) statistics for numerical safety, then the
        # adaptive gamma/beta affine.  Group <-> channel mapping via small
        # resident indicator matmuls (no per-step iota/compare rebuild).
        inv_n = 1.0 / float(H * W * (Cout // G))
        icg = icg_ref[...]                                   # (Ch, G)
        igc = igc_ref[...]                                   # (G, Ch)

        sum_c = jnp.sum(y, axis=1)                           # (bn, Ch)
        mean_c = jnp.dot(jnp.dot(sum_c, icg, preferred_element_type=f32) * inv_n,
                         igc, preferred_element_type=f32)    # per-group mean / chan
        d = y - mean_c[:, None, :]
        ssq_c = jnp.sum(d * d, axis=1)                       # (bn, Ch)
        var_c = jnp.dot(jnp.dot(ssq_c, icg, preferred_element_type=f32) * inv_n,
                        igc, preferred_element_type=f32)     # per-group var / chan
        y = gam_ref[...] * (d * lax.rsqrt(var_c + eps)[:, None, :]) + bet_ref[...]

    if leaky:
        y = jnp.where(y >= 0, y, 0.2 * y)

    if upsample:
        # Nearest 2x: lane-duplicate (-> W doubling when the 2*Cout lanes are
        # reinterpreted as (2, Cout)) and write the same slab to both H copies.
        # o_ref block is (bn, H, 2, W, 2*Cout); each store is lane-dense (128
        # lanes for Cout=64).  The wrapper reshape to (BN, 2H, 2W, Cout) is a
        # free contiguous reinterpretation.
        y2 = jnp.concatenate([y, y], axis=-1).reshape(bn, H, W, 2 * Cout)
        o_ref[:, :, 0, :, :] = y2
        o_ref[:, :, 1, :, :] = y2
    else:
        o_ref[...] = y.reshape(bn, H, W, Cout)


# --------------------------------------------------------------------------
# Block-size heuristics
# --------------------------------------------------------------------------
def _layer_vmem_bytes_per_image(H, W, Cin, Cout, upsample):
    K = 3 * Cin
    in_b = H * W * Cin * 4
    out_b = H * W * Cout * 4 * (4 if upsample else 1)
    live = H * W * (K + 3 * Cout + 2 * Cout) * 4             # xcat + u + y (rough)
    return 2 * (in_b + out_b) + live                         # 2x: double-buffered I/O


def _pick_bn_tile(BN, per_image_bytes, budget=_VMEM_BLOCK_BUDGET):
    divisors = [d for d in range(1, BN + 1) if BN % d == 0]
    fitting = [d for d in divisors if d * per_image_bytes <= budget] or [1]
    bn = max(fitting)
    # Keep >= 2 grid steps on the "parallel" axis when possible so v7x's two
    # TensorCores both get work (per-step overhead is ~0.35us, negligible).
    if BN >= 2 and BN // bn < 2:
        smaller = [d for d in fitting if BN // d >= 2]
        if smaller:
            bn = max(smaller)
    return bn


# --------------------------------------------------------------------------
# Fused layer wrapper
# --------------------------------------------------------------------------
def fused_conv_layer(x, w, b, *, gamma=None, beta=None, num_groups=32,
                     eps=1e-6, leaky=True, upsample=False):
    """3x3 'same' conv (zero pad) [+ AdaptiveGroupNorm] [+ LeakyReLU(0.2)]
    [+ 2x nearest upsample], fused into a single pallas_call.

    x: (BN, H, W, Cin);  w: (3, 3, Cin, Cout) HWIO;  b: (Cout,)
    gamma/beta: (BN, Cout) or None.  Returns (BN, Hout, Wout, Cout) f32.
    """
    BN, H, W, Cin = x.shape
    Cout = w.shape[-1]
    do_agn = gamma is not None
    K = 3 * Cin

    per_img = _layer_vmem_bytes_per_image(H, W, Cin, Cout, upsample)
    bn_tile = _pick_bn_tile(BN, per_img)
    grid = (BN // bn_tile,)

    # Weight layout for the single big dot: wall[dx*Cin+ci, dy*Cout+co] = w[dy,dx,ci,co]
    wall = jnp.transpose(w.astype(jnp.float32), (1, 2, 0, 3)).reshape(K, 3 * Cout)
    wall = wall.astype(_CONV_COMPUTE_DTYPE)
    bf = b.reshape(1, Cout).astype(jnp.float32)

    inputs = [x.astype(_CONV_COMPUTE_DTYPE), wall, bf]
    in_specs = [
        pl.BlockSpec((bn_tile, H, W, Cin), lambda i: (i, 0, 0, 0)),
        pl.BlockSpec((K, 3 * Cout), lambda i: (0, 0)),        # resident across grid
        pl.BlockSpec((1, Cout), lambda i: (0, 0)),
    ]
    if do_agn:
        G = num_groups
        ch_group = jnp.arange(Cout, dtype=jnp.int32) // (Cout // G)
        icg = (ch_group[:, None] ==
               jnp.arange(G, dtype=jnp.int32)[None, :]).astype(jnp.float32)
        inputs += [gamma.reshape(BN, 1, Cout).astype(jnp.float32),
                   beta.reshape(BN, 1, Cout).astype(jnp.float32),
                   icg, icg.T]
        in_specs += [
            pl.BlockSpec((bn_tile, 1, Cout), lambda i: (i, 0, 0)),
            pl.BlockSpec((bn_tile, 1, Cout), lambda i: (i, 0, 0)),
            pl.BlockSpec((Cout, G), lambda i: (0, 0)),
            pl.BlockSpec((G, Cout), lambda i: (0, 0)),
        ]

    if upsample:
        out_shape = jax.ShapeDtypeStruct((BN, H, 2, W, 2 * Cout), jnp.float32)
        out_spec = pl.BlockSpec((bn_tile, H, 2, W, 2 * Cout),
                                lambda i: (i, 0, 0, 0, 0))
    else:
        out_shape = jax.ShapeDtypeStruct((BN, H, W, Cout), jnp.float32)
        out_spec = pl.BlockSpec((bn_tile, H, W, Cout), lambda i: (i, 0, 0, 0))

    kern = functools.partial(
        _fused_layer_kernel, H=H, W=W, Cin=Cin, Cout=Cout, G=num_groups,
        eps=eps, do_agn=do_agn, leaky=leaky, upsample=upsample, bn=bn_tile)

    out = pl.pallas_call(
        kern,
        out_shape=out_shape,
        grid=grid,
        in_specs=in_specs,
        out_specs=out_spec,
        compiler_params=pltpu.CompilerParams(
            dimension_semantics=("parallel",),
            vmem_limit_bytes=_VMEM_LIMIT_BYTES),
    )(*inputs)

    if upsample:
        # (BN, H, 2, W, 2*Cout) -> (BN, 2H, 2W, Cout): contiguous, free reshape.
        out = out.reshape(BN, 2 * H, 2 * W, Cout)
    return out


# --------------------------------------------------------------------------
# Config helpers + parameter construction (shapes follow ConvDecoder.__init__)
# --------------------------------------------------------------------------
def _channel_from_cfg(cfg):
    channel = int(512 * cfg["dec_channel_multiplier"])
    while channel % 32 != 0:
        channel += 1
    return channel


def _derive_upsample_cfg(cfg):
    if cfg["num_to_upsample"] == 1:
        return cfg["num_gen_layers"] // 2, True
    elif cfg["num_gen_layers"] == 1:
        return 1, False
    elif cfg["num_to_upsample"] == 0:
        return 111111, True
    else:
        return cfg["num_gen_layers"] // cfg["num_to_upsample"], False


def make_params(key, cfg):
    channel = _channel_from_cfg(cfg)
    ind_emb_dim = 32
    keys = jax.random.split(key, 4 + 3 * cfg["num_gen_layers"])
    k = iter(keys)
    params = {
        "cam_emb": 0.1 * jax.random.normal(
            next(k), (cfg["num_classes"], ind_emb_dim), jnp.float32),
        "conv1_w": 0.1 * jax.random.normal(
            next(k), (3, 3, cfg["feature_size"], channel), jnp.float32),
        "conv1_b": 0.01 * jax.random.normal(next(k), (channel,), jnp.float32),
        "convs": [],
    }
    for _ in range(cfg["num_gen_layers"]):
        params["convs"].append({
            "conv_w": 0.1 * jax.random.normal(
                next(k), (3, 3, channel, channel), jnp.float32),
            "conv_b": 0.01 * jax.random.normal(next(k), (channel,), jnp.float32),
            "style_w": 0.1 * jax.random.normal(
                next(k), (ind_emb_dim, 2 * channel), jnp.float32),
            # AdaptiveGroupNorm.__init__ bias init: first half 1, second half 0
            "style_b": jnp.concatenate([jnp.ones((channel,), jnp.float32),
                                        jnp.zeros((channel,), jnp.float32)]),
        })
    params["last_w"] = 0.1 * jax.random.normal(
        next(k), (3, 3, channel, 3), jnp.float32)
    params["last_b"] = jnp.zeros((3,), jnp.float32)
    return params


# --------------------------------------------------------------------------
# ConvDecoder.forward
# --------------------------------------------------------------------------
def conv_decoder_forward(params, target_cam_classes, target_2d_features, cfg):
    channel = _channel_from_cfg(cfg)
    upsample_every, skip_first = _derive_upsample_cfg(cfg)

    # Tiny glue kept as plain JAX: embedding gather + style Linear.
    B, N = target_cam_classes.shape
    emb = params["cam_emb"][target_cam_classes.reshape(-1)]          # (B*N, 32)

    BS, N2, H, W, C = target_2d_features.shape
    x = target_2d_features.reshape(BS * N2, H, W, C).astype(jnp.float32)  # NHWC

    out = fused_conv_layer(x, params["conv1_w"], params["conv1_b"],
                           leaky=True, upsample=False)

    num_upsampled = 0
    for li in range(cfg["num_gen_layers"]):
        pw = params["convs"][li]
        gb = emb @ pw["style_w"] + pw["style_b"]                     # (B*N, 2*Ch)
        gamma, beta = gb[:, :channel], gb[:, channel:]
        do_up = (not (skip_first and li == 0)
                 and li % upsample_every == 0
                 and num_upsampled < cfg["num_to_upsample"])
        if do_up:
            num_upsampled += 1
        out = fused_conv_layer(out, pw["conv_w"], pw["conv_b"],
                               gamma=gamma, beta=beta, num_groups=32, eps=1e-6,
                               leaky=True, upsample=do_up)

    image = fused_conv_layer(out, params["last_w"], params["last_b"],
                             leaky=False, upsample=False)            # (BN,H',W',3)
    # Module returns NCHW recons; the final tensor is tiny so a wrapper-side
    # transpose (and the 3-lane final-conv store) is negligible.  At scale one
    # would pad Cout to 128 / compute the last conv transposed for lane density.
    return jnp.transpose(image, (0, 3, 1, 2))


# --------------------------------------------------------------------------
# Pure-JAX reference (numerical sanity check)
# --------------------------------------------------------------------------
def _ref_conv3x3(x, w, b, leaky):
    y = lax.conv_general_dilated(x, w, (1, 1), "SAME",
                                 dimension_numbers=("NHWC", "HWIO", "NHWC")) + b
    return jnp.where(y >= 0, y, 0.2 * y) if leaky else y


def _ref_agn_leaky(x, gamma, beta, G=32, eps=1e-6):
    BN, H, W, Ch = x.shape
    xr = x.reshape(BN, H * W, G, Ch // G)
    mean = xr.mean(axis=(1, 3), keepdims=True)
    var = ((xr - mean) ** 2).mean(axis=(1, 3), keepdims=True)
    xn = ((xr - mean) / jnp.sqrt(var + eps)).reshape(BN, H, W, Ch)
    y = gamma[:, None, None, :] * xn + beta[:, None, None, :]
    return jnp.where(y >= 0, y, 0.2 * y)


def _ref_forward(params, classes, feats, cfg):
    channel = _channel_from_cfg(cfg)
    upsample_every, skip_first = _derive_upsample_cfg(cfg)
    emb = params["cam_emb"][classes.reshape(-1)]
    BS, N2, H, W, C = feats.shape
    x = feats.reshape(BS * N2, H, W, C).astype(jnp.float32)
    out = _ref_conv3x3(x, params["conv1_w"], params["conv1_b"], True)
    num_upsampled = 0
    for li in range(cfg["num_gen_layers"]):
        pw = params["convs"][li]
        out = _ref_conv3x3(out, pw["conv_w"], pw["conv_b"], False)
        gb = emb @ pw["style_w"] + pw["style_b"]
        out = _ref_agn_leaky(out, gb[:, :channel], gb[:, channel:])
        if skip_first and li == 0:
            continue
        if li % upsample_every == 0 and num_upsampled < cfg["num_to_upsample"]:
            out = jnp.repeat(jnp.repeat(out, 2, axis=1), 2, axis=2)
            num_upsampled += 1
    image = _ref_conv3x3(out, params["last_w"], params["last_b"], False)
    return jnp.transpose(image, (0, 3, 1, 2))


if __name__ == "__main__":
    # Mirrors ConvDecoder.__init__: channel = int(512*0.125) = 64,
    # num_to_upsample == 1  ->  upsample_every = num_gen_layers // 2, skip_first.
    cfg = {
        "num_classes": 4,
        "feature_size": 4,
        "dec_channel_multiplier": 0.125,
        "num_gen_layers": 2,
        "num_to_upsample": 1,
    }

    key = jax.random.PRNGKey(0)
    kp, kc, kf = jax.random.split(key, 3)
    params = make_params(kp, cfg)

    B, N, H, W = 1, 2, 8, 8
    target_cam_classes = jax.random.randint(kc, (B, N), 0, cfg["num_classes"],
                                            jnp.int32)
    target_2d_features = jax.random.normal(kf, (B, N, H, W, cfg["feature_size"]),
                                           jnp.float32)

    fwd = jax.jit(functools.partial(conv_decoder_forward, cfg=cfg))
    recons = jax.block_until_ready(
        fwd(params, target_cam_classes, target_2d_features))

    expected = jax.block_until_ready(
        _ref_forward(params, target_cam_classes, target_2d_features, cfg))

    assert recons.shape == (B * N, 3, 2 * H, 2 * W), recons.shape
    assert jnp.allclose(recons, expected, atol=2e-3, rtol=2e-3), \
        float(jnp.max(jnp.abs(recons - expected)))

    print("KERNEL_OK")
</pallas_src>

<mosaic_0001>
module attributes {stable_mosaic.version = 11 : i64} {
  func.func @_fused_layer_kernel(%arg0: i32, %arg1: memref<1x8x8x4xf32, #tpu.memory_space<vmem>>, %arg2: memref<12x192xf32, #tpu.memory_space<vmem>>, %arg3: memref<1x64xf32, #tpu.memory_space<vmem>>, %arg4: memref<1x8x8x64xf32, #tpu.memory_space<vmem>>) attributes {dimension_semantics = [#tpu.dimension_semantics<parallel>], iteration_bounds = array<i64: 2>, scalar_prefetch = 0 : i64, scratch_operands = 0 : i64, tpu.core_type = #tpu.core_type<tc>, window_params = [{transform_indices = @transform_0, window_bounds = array<i64: 1, 8, 8, 4>}, {pipeline_mode = #tpu.pipeline_mode<synchronous>, transform_indices = @transform_1, window_bounds = array<i64: 12, 192>}, {pipeline_mode = #tpu.pipeline_mode<synchronous>, transform_indices = @transform_2, window_bounds = array<i64: 1, 64>}, {transform_indices = @transform_3, window_bounds = array<i64: 1, 8, 8, 64>}]} {
    %c0 = arith.constant 0 : index
    %c0_0 = arith.constant 0 : index
    %c0_1 = arith.constant 0 : index
    %c0_2 = arith.constant 0 : index
    %0 = vector.load %arg1[%c0, %c0_0, %c0_1, %c0_2] : memref<1x8x8x4xf32, #tpu.memory_space<vmem>>, vector<1x8x8x4xf32>
    %cst = arith.constant 0.000000e+00 : f32
    %1 = vector.broadcast %cst : f32 to vector<1x8x1x4xf32>
    %2 = vector.extract_strided_slice %0 {offsets = [0, 0, 0, 0], sizes = [1, 8, 7, 4], strides = [1, 1, 1, 1]} : vector<1x8x8x4xf32> to vector<1x8x7x4xf32>
    %3 = tpu.concatenate %1, %2 in 2 : vector<1x8x1x4xf32>, vector<1x8x7x4xf32> -> vector<1x8x8x4xf32>
    %4 = vector.extract_strided_slice %0 {offsets = [0, 0, 1, 0], sizes = [1, 8, 7, 4], strides = [1, 1, 1, 1]} : vector<1x8x8x4xf32> to vector<1x8x7x4xf32>
    %5 = tpu.concatenate %4, %1 in 2 : vector<1x8x7x4xf32>, vector<1x8x1x4xf32> -> vector<1x8x8x4xf32>
    %6 = tpu.concatenate %3, %0, %5 in 3 : vector<1x8x8x4xf32>, vector<1x8x8x4xf32>, vector<1x8x8x4xf32> -> vector<1x8x8x12xf32>
    %7 = vector.shape_cast %6 : vector<1x8x8x12xf32> to vector<64x12xf32>
    %c0_3 = arith.constant 0 : index
    %c0_4 = arith.constant 0 : index
    %8 = vector.load %arg2[%c0_3, %c0_4] : memref<12x192xf32, #tpu.memory_space<vmem>>, vector<12x192xf32>
    %cst_5 = arith.constant dense<0.000000e+00> : vector<64x192xf32>
    %9 = tpu.matmul %7, %8, %cst_5 {dimension_numbers = #tpu.dot_dimension_numbers<[1], [0], [0], [1], [0, 0, 1, 1], [], []>} : vector<64x12xf32>, vector<12x192xf32>, vector<64x192xf32> -> vector<64x192xf32>
    %10 = vector.shape_cast %9 : vector<64x192xf32> to vector<1x8x8x192xf32>
    %cst_6 = arith.constant 0.000000e+00 : f32
    %11 = vector.broadcast %cst_6 : f32 to vector<1x1x8x64xf32>
    %12 = vector.extract_strided_slice %10 {offsets = [0, 0, 0, 0], sizes = [1, 8, 8, 64], strides = [1, 1, 1, 1]} : vector<1x8x8x192xf32> to vector<1x8x8x64xf32>
    %13 = vector.extract_strided_slice %10 {offsets = [0, 0, 0, 64], sizes = [1, 8, 8, 64], strides = [1, 1, 1, 1]} : vector<1x8x8x192xf32> to vector<1x8x8x64xf32>
    %14 = vector.extract_strided_slice %10 {offsets = [0, 0, 0, 128], sizes = [1, 8, 8, 64], strides = [1, 1, 1, 1]} : vector<1x8x8x192xf32> to vector<1x8x8x64xf32>
    %15 = vector.extract_strided_slice %12 {offsets = [0, 0, 0, 0], sizes = [1, 7, 8, 64], strides = [1, 1, 1, 1]} : vector<1x8x8x64xf32> to vector<1x7x8x64xf32>
    %16 = tpu.concatenate %11, %15 in 1 : vector<1x1x8x64xf32>, vector<1x7x8x64xf32> -> vector<1x8x8x64xf32>
    %17 = arith.addf %13, %16 : vector<1x8x8x64xf32>
    %18 = vector.extract_strided_slice %14 {offsets = [0, 1, 0, 0], sizes = [1, 7, 8, 64], strides = [1, 1, 1, 1]} : vector<1x8x8x64xf32> to vector<1x7x8x64xf32>
    %19 = tpu.concatenate %18, %11 in 1 : vector<1x7x8x64xf32>, vector<1x1x8x64xf32> -> vector<1x8x8x64xf32>
    %20 = arith.addf %17, %19 : vector<1x8x8x64xf32>
    %c0_7 = arith.constant 0 : index
    %c0_8 = arith.constant 0 : index
    %21 = vector.load %arg3[%c0_7, %c0_8] : memref<1x64xf32, #tpu.memory_space<vmem>>, vector<1x64xf32>
    %22 = vector.shape_cast %21 : vector<1x64xf32> to vector<1x1x1x64xf32>
    %23 = vector.broadcast %22 : vector<1x1x1x64xf32> to vector<1x8x8x64xf32>
    %24 = arith.addf %20, %23 : vector<1x8x8x64xf32>
    %25 = vector.shape_cast %24 : vector<1x8x8x64xf32> to vector<1x64x64xf32>
    %cst_9 = arith.constant 0.000000e+00 : f32
    %26 = vector.broadcast %cst_9 : f32 to vector<1x64x64xf32>
    %27 = arith.cmpf oge, %25, %26 : vector<1x64x64xf32>
    %cst_10 = arith.constant 2.000000e-01 : f32
    %28 = vector.broadcast %cst_10 : f32 to vector<1x64x64xf32>
    %29 = arith.mulf %28, %25 : vector<1x64x64xf32>
    %30 = arith.select %27, %25, %29 : vector<1x64x64xi1>, vector<1x64x64xf32>
    %31 = vector.shape_cast %30 : vector<1x64x64xf32> to vector<1x8x8x64xf32>
    %c0_11 = arith.constant 0 : index
    %c0_12 = arith.constant 0 : index
    %c0_13 = arith.constant 0 : index
    %c0_14 = arith.constant 0 : index
    %32 = vector.load %arg4[%c0_11, %c0_12, %c0_13, %c0_14] : memref<1x8x8x64xf32, #tpu.memory_space<vmem>>, vector<1x8x8x64xf32>
    tpu.vector_store %arg4[%c0_11, %c0_12, %c0_13, %c0_14], %31 {strides = array<i32>} : memref<1x8x8x64xf32, #tpu.memory_space<vmem>>, vector<1x8x8x64xf32>,
    return
  }
  func.func @transform_0(%arg0: i32) -> (i32, i32, i32, i32) {
    %c0_i32 = arith.constant 0 : i32
    %c0_i32_0 = arith.constant 0 : i32
    %c0_i32_1 = arith.constant 0 : i32
    %c0_i32_2 = arith.constant 0 : i32
    return %arg0, %c0_i32, %c0_i32_0, %c0_i32_1 : i32, i32, i32, i32
  }
  func.func @transform_1(%arg0: i32) -> (i32, i32) {
    %c0_i32 = arith.constant 0 : i32
    %c0_i32_0 = arith.constant 0 : i32
    %c0_i32_1 = arith.constant 0 : i32
    return %c0_i32, %c0_i32_0 : i32, i32
  }
  func.func @transform_2(%arg0: i32) -> (i32, i32) {
    %c0_i32 = arith.constant 0 : i32
    %c0_i32_0 = arith.constant 0 : i32
    %c0_i32_1 = arith.constant 0 : i32
    return %c0_i32, %c0_i32_0 : i32, i32
  }
  func.func @transform_3(%arg0: i32) -> (i32, i32, i32, i32) {
    %c0_i32 = arith.constant 0 : i32
    %c0_i32_0 = arith.constant 0 : i32
    %c0_i32_1 = arith.constant 0 : i32
    %c0_i32_2 = arith.constant 0 : i32
    return %arg0, %c0_i32, %c0_i32_0, %c0_i32_1 : i32, i32, i32, i32
  }
}

module attributes {stable_mosaic.version = 11 : i64} {
  func.func @_fused_layer_kernel(%arg0: i32, %arg1: memref<1x8x8x64xf32, #tpu.memory_space<vmem>>, %arg2: memref<192x192xf32, #tpu.memory_space<vmem>>, %arg3: memref<1x64xf32, #tpu.memory_space<vmem>>, %arg4: memref<1x1x64xf32, #tpu.memory_space<vmem>>, %arg5: memref<1x1x64xf32, #tpu.memory_space<vmem>>, %arg6: memref<64x32xf32, #tpu.memory_space<vmem>>, %arg7: memref<32x64xf32, #tpu.memory_space<vmem>>, %arg8: memref<1x8x2x8x128xf32, #tpu.memory_space<vmem>>) attributes {dimension_semantics = [#tpu.dimension_semantics<parallel>], iteration_bounds = array<i64: 2>, scalar_prefetch = 0 : i64, scratch_operands = 0 : i64, tpu.core_type = #tpu.core_type<tc>, window_params = [{transform_indices = @transform_0, window_bounds = array<i64: 1, 8, 8, 64>}, {pipeline_mode = #tpu.pipeline_mode<synchronous>, transform_indices = @transform_1, window_bounds = array<i64: 192, 192>}, {pipeline_mode = #tpu.pipeline_mode<synchronous>, transform_indices = @transform_2, window_bounds = array<i64: 1, 64>}, {transform_indices = @transform_3, window_bounds = array<i64: 1, 1, 64>}, {transform_indices = @transform_4, window_bounds = array<i64: 1, 1, 64>}, {pipeline_mode = #tpu.pipeline_mode<synchronous>, transform_indices = @transform_5, window_bounds = array<i64: 64, 32>}, {pipeline_mode = #tpu.pipeline_mode<synchronous>, transform_indices = @transform_6, window_bounds = array<i64: 32, 64>}, {transform_indices = @transform_7, window_bounds = array<i64: 1, 8, 2, 8, 128>}]} {
    %c0 = arith.constant 0 : index
    %c0_0 = arith.constant 0 : index
    %c0_1 = arith.constant 0 : index
    %c0_2 = arith.constant 0 : index
    %0 = vector.load %arg1[%c0, %c0_0, %c0_1, %c0_2] : memref<1x8x8x64xf32, #tpu.memory_space<vmem>>, vector<1x8x8x64xf32>
    %cst = arith.constant 0.000000e+00 : f32
    %1 = vector.broadcast %cst : f32 to vector<1x8x1x64xf32>
    %2 = vector.extract_strided_slice %0 {offsets = [0, 0, 0, 0], sizes = [1, 8, 7, 64], strides = [1, 1, 1, 1]} : vector<1x8x8x64xf32> to vector<1x8x7x64xf32>
    %3 = tpu.concatenate %1, %2 in 2 : vector<1x8x1x64xf32>, vector<1x8x7x64xf32> -> vector<1x8x8x64xf32>
    %4 = vector.extract_strided_slice %0 {offsets = [0, 0, 1, 0], sizes = [1, 8, 7, 64], strides = [1, 1, 1, 1]} : vector<1x8x8x64xf32> to vector<1x8x7x64xf32>
    %5 = tpu.concatenate %4, %1 in 2 : vector<1x8x7x64xf32>, vector<1x8x1x64xf32> -> vector<1x8x8x64xf32>
    %6 = tpu.concatenate %3, %0, %5 in 3 : vector<1x8x8x64xf32>, vector<1x8x8x64xf32>, vector<1x8x8x64xf32> -> vector<1x8x8x192xf32>
    %7 = vector.shape_cast %6 : vector<1x8x8x192xf32> to vector<64x192xf32>
    %c0_3 = arith.constant 0 : index
    %c0_4 = arith.constant 0 : index
    %8 = vector.load %arg2[%c0_3, %c0_4] : memref<192x192xf32, #tpu.memory_space<vmem>>, vector<192x192xf32>
    %cst_5 = arith.constant dense<0.000000e+00> : vector<64x192xf32>
    %9 = tpu.matmul %7, %8, %cst_5 {dimension_numbers = #tpu.dot_dimension_numbers<[1], [0], [0], [1], [0, 0, 1, 1], [], []>} : vector<64x192xf32>, vector<192x192xf32>, vector<64x192xf32> -> vector<64x192xf32>
    %10 = vector.shape_cast %9 : vector<64x192xf32> to vector<1x8x8x192xf32>
    %cst_6 = arith.constant 0.000000e+00 : f32
    %11 = vector.broadcast %cst_6 : f32 to vector<1x1x8x64xf32>
    %12 = vector.extract_strided_slice %10 {offsets = [0, 0, 0, 0], sizes = [1, 8, 8, 64], strides = [1, 1, 1, 1]} : vector<1x8x8x192xf32> to vector<1x8x8x64xf32>
    %13 = vector.extract_strided_slice %10 {offsets = [0, 0, 0, 64], sizes = [1, 8, 8, 64], strides = [1, 1, 1, 1]} : vector<1x8x8x192xf32> to vector<1x8x8x64xf32>
    %14 = vector.extract_strided_slice %10 {offsets = [0, 0, 0, 128], sizes = [1, 8, 8, 64], strides = [1, 1, 1, 1]} : vector<1x8x8x192xf32> to vector<1x8x8x64xf32>
    %15 = vector.extract_strided_slice %12 {offsets = [0, 0, 0, 0], sizes = [1, 7, 8, 64], strides = [1, 1, 1, 1]} : vector<1x8x8x64xf32> to vector<1x7x8x64xf32>
    %16 = tpu.concatenate %11, %15 in 1 : vector<1x1x8x64xf32>, vector<1x7x8x64xf32> -> vector<1x8x8x64xf32>
    %17 = arith.addf %13, %16 : vector<1x8x8x64xf32>
    %18 = vector.extract_strided_slice %14 {offsets = [0, 1, 0, 0], sizes = [1, 7, 8, 64], strides = [1, 1, 1, 1]} : vector<1x8x8x64xf32> to vector<1x7x8x64xf32>
    %19 = tpu.concatenate %18, %11 in 1 : vector<1x7x8x64xf32>, vector<1x1x8x64xf32> -> vector<1x8x8x64xf32>
    %20 = arith.addf %17, %19 : vector<1x8x8x64xf32>
    %c0_7 = arith.constant 0 : index
    %c0_8 = arith.constant 0 : index
    %21 = vector.load %arg3[%c0_7, %c0_8] : memref<1x64xf32, #tpu.memory_space<vmem>>, vector<1x64xf32>
    %22 = vector.shape_cast %21 : vector<1x64xf32> to vector<1x1x1x64xf32>
    %23 = vector.broadcast %22 : vector<1x1x1x64xf32> to vector<1x8x8x64xf32>
    %24 = arith.addf %20, %23 : vector<1x8x8x64xf32>
    %25 = vector.shape_cast %24 : vector<1x8x8x64xf32> to vector<1x64x64xf32>
    %c0_9 = arith.constant 0 : index
    %c0_10 = arith.constant 0 : index
    %26 = vector.load %arg6[%c0_9, %c0_10] : memref<64x32xf32, #tpu.memory_space<vmem>>, vector<64x32xf32>
    %c0_11 = arith.constant 0 : index
    %c0_12 = arith.constant 0 : index
    %27 = vector.load %arg7[%c0_11, %c0_12] : memref<32x64xf32, #tpu.memory_space<vmem>>, vector<32x64xf32>
    %cst_13 = arith.constant dense<0.000000e+00> : vector<1x64xf32>
    %28 = vector.multi_reduction <add>, %25, %cst_13 [1] : vector<1x64x64xf32> to vector<1x64xf32>
    %cst_14 = arith.constant dense<0.000000e+00> : vector<1x32xf32>
    %29 = tpu.matmul %28, %26, %cst_14 {dimension_numbers = #tpu.dot_dimension_numbers<[1], [0], [0], [1], [0, 0, 1, 1], [], []>} : vector<1x64xf32>, vector<64x32xf32>, vector<1x32xf32> -> vector<1x32xf32>
    %cst_15 = arith.constant 7.812500e-03 : f32
    %30 = vector.broadcast %cst_15 : f32 to vector<1x32xf32>
    %31 = arith.mulf %29, %30 : vector<1x32xf32>
    %cst_16 = arith.constant dense<0.000000e+00> : vector<1x64xf32>
    %32 = tpu.matmul %31, %27, %cst_16 {dimension_numbers = #tpu.dot_dimension_numbers<[1], [0], [0], [1], [0, 0, 1, 1], [], []>} : vector<1x32xf32>, vector<32x64xf32>, vector<1x64xf32> -> vector<1x64xf32>
    %33 = vector.shape_cast %32 : vector<1x64xf32> to vector<1x1x64xf32>
    %34 = vector.broadcast %33 : vector<1x1x64xf32> to vector<1x64x64xf32>
    %35 = arith.subf %25, %34 : vector<1x64x64xf32>
    %36 = arith.mulf %35, %35 : vector<1x64x64xf32>
    %cst_17 = arith.constant dense<0.000000e+00> : vector<1x64xf32>
    %37 = vector.multi_reduction <add>, %36, %cst_17 [1] : vector<1x64x64xf32> to vector<1x64xf32>
    %cst_18 = arith.constant dense<0.000000e+00> : vector<1x32xf32>
    %38 = tpu.matmul %37, %26, %cst_18 {dimension_numbers = #tpu.dot_dimension_numbers<[1], [0], [0], [1], [0, 0, 1, 1], [], []>} : vector<1x64xf32>, vector<64x32xf32>, vector<1x32xf32> -> vector<1x32xf32>
    %cst_19 = arith.constant 7.812500e-03 : f32
    %39 = vector.broadcast %cst_19 : f32 to vector<1x32xf32>
    %40 = arith.mulf %38, %39 : vector<1x32xf32>
    %cst_20 = arith.constant dense<0.000000e+00> : vector<1x64xf32>
    %41 = tpu.matmul %40, %27, %cst_20 {dimension_numbers = #tpu.dot_dimension_numbers<[1], [0], [0], [1], [0, 0, 1, 1], [], []>} : vector<1x32xf32>, vector<32x64xf32>, vector<1x64xf32> -> vector<1x64xf32>
    %c0_21 = arith.constant 0 : index
    %c0_22 = arith.constant 0 : index
    %c0_23 = arith.constant 0 : index
    %42 = vector.load %arg4[%c0_21, %c0_22, %c0_23] : memref<1x1x64xf32, #tpu.memory_space<vmem>>, vector<1x1x64xf32>
    %cst_24 = arith.constant 9.99999997E-7 : f32
    %43 = vector.broadcast %cst_24 : f32 to vector<1x64xf32>
    %44 = arith.addf %41, %43 : vector<1x64xf32>
    %45 = math.rsqrt %44 : vector<1x64xf32>
    %46 = vector.shape_cast %45 : vector<1x64xf32> to vector<1x1x64xf32>
    %47 = vector.broadcast %46 : vector<1x1x64xf32> to vector<1x64x64xf32>
    %48 = arith.mulf %35, %47 : vector<1x64x64xf32>
    %49 = vector.broadcast %42 : vector<1x1x64xf32> to vector<1x64x64xf32>
    %50 = arith.mulf %49, %48 : vector<1x64x64xf32>
    %c0_25 = arith.constant 0 : index
    %c0_26 = arith.constant 0 : index
    %c0_27 = arith.constant 0 : index
    %51 = vector.load %arg5[%c0_25, %c0_26, %c0_27] : memref<1x1x64xf32, #tpu.memory_space<vmem>>, vector<1x1x64xf32>
    %52 = vector.broadcast %51 : vector<1x1x64xf32> to vector<1x64x64xf32>
    %53 = arith.addf %50, %52 : vector<1x64x64xf32>
    %cst_28 = arith.constant 0.000000e+00 : f32
    %54 = vector.broadcast %cst_28 : f32 to vector<1x64x64xf32>
    %55 = arith.cmpf oge, %53, %54 : vector<1x64x64xf32>
    %cst_29 = arith.constant 2.000000e-01 : f32
    %56 = vector.broadcast %cst_29 : f32 to vector<1x64x64xf32>
    %57 = arith.mulf %56, %53 : vector<1x64x64xf32>
    %58 = arith.select %55, %53, %57 : vector<1x64x64xi1>, vector<1x64x64xf32>
    %59 = tpu.concatenate %58, %58 in 2 : vector<1x64x64xf32>, vector<1x64x64xf32> -> vector<1x64x128xf32>
    %60 = vector.shape_cast %59 : vector<1x64x128xf32> to vector<1x8x8x128xf32>
    %c0_30 = arith.constant 0 : index
    %c0_31 = arith.constant 0 : index
    %c0_32 = arith.constant 0 : index
    %c0_33 = arith.constant 0 : index
    %c0_34 = arith.constant 0 : index
    %61 = vector.load %arg8[%c0_30, %c0_31, %c0_32, %c0_33, %c0_34] : memref<1x8x2x8x128xf32, #tpu.memory_space<vmem>>, vector<1x8x1x8x128xf32>
    %62 = vector.shape_cast %61 : vector<1x8x1x8x128xf32> to vector<1x8x8x128xf32>
    %63 = vector.shape_cast %60 : vector<1x8x8x128xf32> to vector<1x8x1x8x128xf32>
    tpu.vector_store %arg8[%c0_30, %c0_31, %c0_32, %c0_33, %c0_34], %63 {strides = array<i32>} : memref<1x8x2x8x128xf32, #tpu.memory_space<vmem>>, vector<1x8x1x8x128xf32>,
    %c0_35 = arith.constant 0 : index
    %c0_36 = arith.constant 0 : index
    %c1 = arith.constant 1 : index
    %c0_37 = arith.constant 0 : index
    %c0_38 = arith.constant 0 : index
    %64 = vector.load %arg8[%c0_35, %c0_36, %c1, %c0_37, %c0_38] : memref<1x8x2x8x128xf32, #tpu.memory_space<vmem>>, vector<1x8x1x8x128xf32>
    %65 = vector.shape_cast %64 : vector<1x8x1x8x128xf32> to vector<1x8x8x128xf32>
    %66 = vector.shape_cast %60 : vector<1x8x8x128xf32> to vector<1x8x1x8x128xf32>
    tpu.vector_store %arg8[%c0_35, %c0_36, %c1, %c0_37, %c0_38], %66 {strides = array<i32>} : memref<1x8x2x8x128xf32, #tpu.memory_space<vmem>>, vector<1x8x1x8x128xf32>,
    return
  }
  func.func @transform_0(%arg0: i32) -> (i32, i32, i32, i32) {
    %c0_i32 = arith.constant 0 : i32
    %c0_i32_0 = arith.constant 0 : i32
    %c0_i32_1 = arith.constant 0 : i32
    %c0_i32_2 = arith.constant 0 : i32
    return %arg0, %c0_i32, %c0_i32_0, %c0_i32_1 : i32, i32, i32, i32
  }
  func.func @transform_1(%arg0: i32) -> (i32, i32) {
    %c0_i32 = arith.constant 0 : i32
    %c0_i32_0 = arith.constant 0 : i32
    %c0_i32_1 = arith.constant 0 : i32
    return %c0_i32, %c0_i32_0 : i32, i32
  }
  func.func @transform_2(%arg0: i32) -> (i32, i32) {
    %c0_i32 = arith.constant 0 : i32
    %c0_i32_0 = arith.constant 0 : i32
    %c0_i32_1 = arith.constant 0 : i32
    return %c0_i32, %c0_i32_0 : i32, i32
  }
  func.func @transform_3(%arg0: i32) -> (i32, i32, i32) {
    %c0_i32 = arith.constant 0 : i32
    %c0_i32_0 = arith.constant 0 : i32
    %c0_i32_1 = arith.constant 0 : i32
    return %arg0, %c0_i32, %c0_i32_0 : i32, i32, i32
  }
  func.func @transform_4(%arg0: i32) -> (i32, i32, i32) {
    %c0_i32 = arith.constant 0 : i32
    %c0_i32_0 = arith.constant 0 : i32
    %c0_i32_1 = arith.constant 0 : i32
    return %arg0, %c0_i32, %c0_i32_0 : i32, i32, i32
  }
  func.func @transform_5(%arg0: i32) -> (i32, i32) {
    %c0_i32 = arith.constant 0 : i32
    %c0_i32_0 = arith.constant 0 : i32
    %c0_i32_1 = arith.constant 0 : i32
    return %c0_i32, %c0_i32_0 : i32, i32
  }
  func.func @transform_6(%arg0: i32) -> (i32, i32) {
    %c0_i32 = arith.constant 0 : i32
    %c0_i32_0 = arith.constant 0 : i32
    %c0_i32_1 = arith.constant 0 : i32
    return %c0_i32, %c0_i32_0 : i32, i32
  }
  func.func @transform_7(%arg0: i32) -> (i32, i32, i32, i32, i32) {
    %c0_i32 = arith.constant 0 : i32
    %c0_i32_0 = arith.constant 0 : i32
    %c0_i32_1 = arith.constant 0 : i32
    %c0_i32_2 = arith.constant 0 : i32
    %c0_i32_3 = arith.constant 0 : i32
    return %arg0, %c0_i32, %c0_i32_0, %c0_i32_1, %c0_i32_2 : i32, i32, i32, i32, i32
  }
}

module attributes {stable_mosaic.version = 11 : i64} {
  func.func @_fused_layer_kernel(%arg0: i32, %arg1: memref<1x8x8x64xf32, #tpu.memory_space<vmem>>, %arg2: memref<192x192xf32, #tpu.memory_space<vmem>>, %arg3: memref<1x64xf32, #tpu.memory_space<vmem>>, %arg4: memref<1x1x64xf32, #tpu.memory_space<vmem>>, %arg5: memref<1x1x64xf32, #tpu.memory_space<vmem>>, %arg6: memref<64x32xf32, #tpu.memory_space<vmem>>, %arg7: memref<32x64xf32, #tpu.memory_space<vmem>>, %arg8: memref<1x8x8x64xf32, #tpu.memory_space<vmem>>) attributes {dimension_semantics = [#tpu.dimension_semantics<parallel>], iteration_bounds = array<i64: 2>, scalar_prefetch = 0 : i64, scratch_operands = 0 : i64, tpu.core_type = #tpu.core_type<tc>, window_params = [{transform_indices = @transform_0, window_bounds = array<i64: 1, 8, 8, 64>}, {pipeline_mode = #tpu.pipeline_mode<synchronous>, transform_indices = @transform_1, window_bounds = array<i64: 192, 192>}, {pipeline_mode = #tpu.pipeline_mode<synchronous>, transform_indices = @transform_2, window_bounds = array<i64: 1, 64>}, {transform_indices = @transform_3, window_bounds = array<i64: 1, 1, 64>}, {transform_indices = @transform_4, window_bounds = array<i64: 1, 1, 64>}, {pipeline_mode = #tpu.pipeline_mode<synchronous>, transform_indices = @transform_5, window_bounds = array<i64: 64, 32>}, {pipeline_mode = #tpu.pipeline_mode<synchronous>, transform_indices = @transform_6, window_bounds = array<i64: 32, 64>}, {transform_indices = @transform_7, window_bounds = array<i64: 1, 8, 8, 64>}]} {
    %c0 = arith.constant 0 : index
    %c0_0 = arith.constant 0 : index
    %c0_1 = arith.constant 0 : index
    %c0_2 = arith.constant 0 : index
    %0 = vector.load %arg1[%c0, %c0_0, %c0_1, %c0_2] : memref<1x8x8x64xf32, #tpu.memory_space<vmem>>, vector<1x8x8x64xf32>
    %cst = arith.constant 0.000000e+00 : f32
    %1 = vector.broadcast %cst : f32 to vector<1x8x1x64xf32>
    %2 = vector.extract_strided_slice %0 {offsets = [0, 0, 0, 0], sizes = [1, 8, 7, 64], strides = [1, 1, 1, 1]} : vector<1x8x8x64xf32> to vector<1x8x7x64xf32>
    %3 = tpu.concatenate %1, %2 in 2 : vector<1x8x1x64xf32>, vector<1x8x7x64xf32> -> vector<1x8x8x64xf32>
    %4 = vector.extract_strided_slice %0 {offsets = [0, 0, 1, 0], sizes = [1, 8, 7, 64], strides = [1, 1, 1, 1]} : vector<1x8x8x64xf32> to vector<1x8x7x64xf32>
    %5 = tpu.concatenate %4, %1 in 2 : vector<1x8x7x64xf32>, vector<1x8x1x64xf32> -> vector<1x8x8x64xf32>
    %6 = tpu.concatenate %3, %0, %5 in 3 : vector<1x8x8x64xf32>, vector<1x8x8x64xf32>, vector<1x8x8x64xf32> -> vector<1x8x8x192xf32>
    %7 = vector.shape_cast %6 : vector<1x8x8x192xf32> to vector<64x192xf32>
    %c0_3 = arith.constant 0 : index
    %c0_4 = arith.constant 0 : index
    %8 = vector.load %arg2[%c0_3, %c0_4] : memref<192x192xf32, #tpu.memory_space<vmem>>, vector<192x192xf32>
    %cst_5 = arith.constant dense<0.000000e+00> : vector<64x192xf32>
    %9 = tpu.matmul %7, %8, %cst_5 {dimension_numbers = #tpu.dot_dimension_numbers<[1], [0], [0], [1], [0, 0, 1, 1], [], []>} : vector<64x192xf32>, vector<192x192xf32>, vector<64x192xf32> -> vector<64x192xf32>
    %10 = vector.shape_cast %9 : vector<64x192xf32> to vector<1x8x8x192xf32>
    %cst_6 = arith.constant 0.000000e+00 : f32
    %11 = vector.broadcast %cst_6 : f32 to vector<1x1x8x64xf32>
    %12 = vector.extract_strided_slice %10 {offsets = [0, 0, 0, 0], sizes = [1, 8, 8, 64], strides = [1, 1, 1, 1]} : vector<1x8x8x192xf32> to vector<1x8x8x64xf32>
    %13 = vector.extract_strided_slice %10 {offsets = [0, 0, 0, 64], sizes = [1, 8, 8, 64], strides = [1, 1, 1, 1]} : vector<1x8x8x192xf32> to vector<1x8x8x64xf32>
    %14 = vector.extract_strided_slice %10 {offsets = [0, 0, 0, 128], sizes = [1, 8, 8, 64], strides = [1, 1, 1, 1]} : vector<1x8x8x192xf32> to vector<1x8x8x64xf32>
    %15 = vector.extract_strided_slice %12 {offsets = [0, 0, 0, 0], sizes = [1, 7, 8, 64], strides = [1, 1, 1, 1]} : vector<1x8x8x64xf32> to vector<1x7x8x64xf32>
    %16 = tpu.concatenate %11, %15 in 1 : vector<1x1x8x64xf32>, vector<1x7x8x64xf32> -> vector<1x8x8x64xf32>
    %17 = arith.addf %13, %16 : vector<1x8x8x64xf32>
    %18 = vector.extract_strided_slice %14 {offsets = [0, 1, 0, 0], sizes = [1, 7, 8, 64], strides = [1, 1, 1, 1]} : vector<1x8x8x64xf32> to vector<1x7x8x64xf32>
    %19 = tpu.concatenate %18, %11 in 1 : vector<1x7x8x64xf32>, vector<1x1x8x64xf32> -> vector<1x8x8x64xf32>
    %20 = arith.addf %17, %19 : vector<1x8x8x64xf32>
    %c0_7 = arith.constant 0 : index
    %c0_8 = arith.constant 0 : index
    %21 = vector.load %arg3[%c0_7, %c0_8] : memref<1x64xf32, #tpu.memory_space<vmem>>, vector<1x64xf32>
    %22 = vector.shape_cast %21 : vector<1x64xf32> to vector<1x1x1x64xf32>
    %23 = vector.broadcast %22 : vector<1x1x1x64xf32> to vector<1x8x8x64xf32>
    %24 = arith.addf %20, %23 : vector<1x8x8x64xf32>
    %25 = vector.shape_cast %24 : vector<1x8x8x64xf32> to vector<1x64x64xf32>
    %c0_9 = arith.constant 0 : index
    %c0_10 = arith.constant 0 : index
    %26 = vector.load %arg6[%c0_9, %c0_10] : memref<64x32xf32, #tpu.memory_space<vmem>>, vector<64x32xf32>
    %c0_11 = arith.constant 0 : index
    %c0_12 = arith.constant 0 : index
    %27 = vector.load %arg7[%c0_11, %c0_12] : memref<32x64xf32, #tpu.memory_space<vmem>>, vector<32x64xf32>
    %cst_13 = arith.constant dense<0.000000e+00> : vector<1x64xf32>
    %28 = vector.multi_reduction <add>, %25, %cst_13 [1] : vector<1x64x64xf32> to vector<1x64xf32>
    %cst_14 = arith.constant dense<0.000000e+00> : vector<1x32xf32>
    %29 = tpu.matmul %28, %26, %cst_14 {dimension_numbers = #tpu.dot_dimension_numbers<[1], [0], [0], [1], [0, 0, 1, 1], [], []>} : vector<1x64xf32>, vector<64x32xf32>, vector<1x32xf32> -> vector<1x32xf32>
    %cst_15 = arith.constant 7.812500e-03 : f32
    %30 = vector.broadcast %cst_15 : f32 to vector<1x32xf32>
    %31 = arith.mulf %29, %30 : vector<1x32xf32>
    %cst_16 = arith.constant dense<0.000000e+00> : vector<1x64xf32>
    %32 = tpu.matmul %31, %27, %cst_16 {dimension_numbers = #tpu.dot_dimension_numbers<[1], [0], [0], [1], [0, 0, 1, 1], [], []>} : vector<1x32xf32>, vector<32x64xf32>, vector<1x64xf32> -> vector<1x64xf32>
    %33 = vector.shape_cast %32 : vector<1x64xf32> to vector<1x1x64xf32>
    %34 = vector.broadcast %33 : vector<1x1x64xf32> to vector<1x64x64xf32>
    %35 = arith.subf %25, %34 : vector<1x64x64xf32>
    %36 = arith.mulf %35, %35 : vector<1x64x64xf32>
    %cst_17 = arith.constant dense<0.000000e+00> : vector<1x64xf32>
    %37 = vector.multi_reduction <add>, %36, %cst_17 [1] : vector<1x64x64xf32> to vector<1x64xf32>
    %cst_18 = arith.constant dense<0.000000e+00> : vector<1x32xf32>
    %38 = tpu.matmul %37, %26, %cst_18 {dimension_numbers = #tpu.dot_dimension_numbers<[1], [0], [0], [1], [0, 0, 1, 1], [], []>} : vector<1x64xf32>, vector<64x32xf32>, vector<1x32xf32> -> vector<1x32xf32>
    %cst_19 = arith.constant 7.812500e-03 : f32
    %39 = vector.broadcast %cst_19 : f32 to vector<1x32xf32>
    %40 = arith.mulf %38, %39 : vector<1x32xf32>
    %cst_20 = arith.constant dense<0.000000e+00> : vector<1x64xf32>
    %41 = tpu.matmul %40, %27, %cst_20 {dimension_numbers = #tpu.dot_dimension_numbers<[1], [0], [0], [1], [0, 0, 1, 1], [], []>} : vector<1x32xf32>, vector<32x64xf32>, vector<1x64xf32> -> vector<1x64xf32>
    %c0_21 = arith.constant 0 : index
    %c0_22 = arith.constant 0 : index
    %c0_23 = arith.constant 0 : index
    %42 = vector.load %arg4[%c0_21, %c0_22, %c0_23] : memref<1x1x64xf32, #tpu.memory_space<vmem>>, vector<1x1x64xf32>
    %cst_24 = arith.constant 9.99999997E-7 : f32
    %43 = vector.broadcast %cst_24 : f32 to vector<1x64xf32>
    %44 = arith.addf %41, %43 : vector<1x64xf32>
    %45 = math.rsqrt %44 : vector<1x64xf32>
    %46 = vector.shape_cast %45 : vector<1x64xf32> to vector<1x1x64xf32>
    %47 = vector.broadcast %46 : vector<1x1x64xf32> to vector<1x64x64xf32>
    %48 = arith.mulf %35, %47 : vector<1x64x64xf32>
    %49 = vector.broadcast %42 : vector<1x1x64xf32> to vector<1x64x64xf32>
    %50 = arith.mulf %49, %48 : vector<1x64x64xf32>
    %c0_25 = arith.constant 0 : index
    %c0_26 = arith.constant 0 : index
    %c0_27 = arith.constant 0 : index
    %51 = vector.load %arg5[%c0_25, %c0_26, %c0_27] : memref<1x1x64xf32, #tpu.memory_space<vmem>>, vector<1x1x64xf32>
    %52 = vector.broadcast %51 : vector<1x1x64xf32> to vector<1x64x64xf32>
    %53 = arith.addf %50, %52 : vector<1x64x64xf32>
    %cst_28 = arith.constant 0.000000e+00 : f32
    %54 = vector.broadcast %cst_28 : f32 to vector<1x64x64xf32>
    %55 = arith.cmpf oge, %53, %54 : vector<1x64x64xf32>
    %cst_29 = arith.constant 2.000000e-01 : f32
    %56 = vector.broadcast %cst_29 : f32 to vector<1x64x64xf32>
    %57 = arith.mulf %56, %53 : vector<1x64x64xf32>
    %58 = arith.select %55, %53, %57 : vector<1x64x64xi1>, vector<1x64x64xf32>
    %59 = vector.shape_cast %58 : vector<1x64x64xf32> to vector<1x8x8x64xf32>
    %c0_30 = arith.constant 0 : index
    %c0_31 = arith.constant 0 : index
    %c0_32 = arith.constant 0 : index
    %c0_33 = arith.constant 0 : index
    %60 = vector.load %arg8[%c0_30, %c0_31, %c0_32, %c0_33] : memref<1x8x8x64xf32, #tpu.memory_space<vmem>>, vector<1x8x8x64xf32>
    tpu.vector_store %arg8[%c0_30, %c0_31, %c0_32, %c0_33], %59 {strides = array<i32>} : memref<1x8x8x64xf32, #tpu.memory_space<vmem>>, vector<1x8x8x64xf32>,
    return
  }
  func.func @transform_0(%arg0: i32) -> (i32, i32, i32, i32) {
    %c0_i32 = arith.constant 0 : i32
    %c0_i32_0 = arith.constant 0 : i32
    %c0_i32_1 = arith.constant 0 : i32
    %c0_i32_2 = arith.constant 0 : i32
    return %arg0, %c0_i32, %c0_i32_0, %c0_i32_1 : i32, i32, i32, i32
  }
  func.func @transform_1(%arg0: i32) -> (i32, i32) {
    %c0_i32 = arith.constant 0 : i32
    %c0_i32_0 = arith.constant 0 : i32
    %c0_i32_1 = arith.constant 0 : i32
    return %c0_i32, %c0_i32_0 : i32, i32
  }
  func.func @transform_2(%arg0: i32) -> (i32, i32) {
    %c0_i32 = arith.constant 0 : i32
    %c0_i32_0 = arith.constant 0 : i32
    %c0_i32_1 = arith.constant 0 : i32
    return %c0_i32, %c0_i32_0 : i32, i32
  }
  func.func @transform_3(%arg0: i32) -> (i32, i32, i32) {
    %c0_i32 = arith.constant 0 : i32
    %c0_i32_0 = arith.constant 0 : i32
    %c0_i32_1 = arith.constant 0 : i32
    return %arg0, %c0_i32, %c0_i32_0 : i32, i32, i32
  }
  func.func @transform_4(%arg0: i32) -> (i32, i32, i32) {
    %c0_i32 = arith.constant 0 : i32
    %c0_i32_0 = arith.constant 0 : i32
    %c0_i32_1 = arith.constant 0 : i32
    return %arg0, %c0_i32, %c0_i32_0 : i32, i32, i32
  }
  func.func @transform_5(%arg0: i32) -> (i32, i32) {
    %c0_i32 = arith.constant 0 : i32
    %c0_i32_0 = arith.constant 0 : i32
    %c0_i32_1 = arith.constant 0 : i32
    return %c0_i32, %c0_i32_0 : i32, i32
  }
  func.func @transform_6(%arg0: i32) -> (i32, i32) {
    %c0_i32 = arith.constant 0 : i32
    %c0_i32_0 = arith.constant 0 : i32
    %c0_i32_1 = arith.constant 0 : i32
    return %c0_i32, %c0_i32_0 : i32, i32
  }
  func.func @transform_7(%arg0: i32) -> (i32, i32, i32, i32) {
    %c0_i32 = arith.constant 0 : i32
    %c0_i32_0 = arith.constant 0 : i32
    %c0_i32_1 = arith.constant 0 : i32
    %c0_i32_2 = arith.constant 0 : i32
    return %arg0, %c0_i32, %c0_i32_0, %c0_i32_1 : i32, i32, i32, i32
  }
}

module attributes {stable_mosaic.version = 11 : i64} {
  func.func @_fused_layer_kernel(%arg0: i32, %arg1: memref<1x16x16x64xf32, #tpu.memory_space<vmem>>, %arg2: memref<192x9xf32, #tpu.memory_space<vmem>>, %arg3: memref<1x3xf32, #tpu.memory_space<vmem>>, %arg4: memref<1x16x16x3xf32, #tpu.memory_space<vmem>>) attributes {dimension_semantics = [#tpu.dimension_semantics<parallel>], iteration_bounds = array<i64: 2>, scalar_prefetch = 0 : i64, scratch_operands = 0 : i64, tpu.core_type = #tpu.core_type<tc>, window_params = [{transform_indices = @transform_0, window_bounds = array<i64: 1, 16, 16, 64>}, {pipeline_mode = #tpu.pipeline_mode<synchronous>, transform_indices = @transform_1, window_bounds = array<i64: 192, 9>}, {pipeline_mode = #tpu.pipeline_mode<synchronous>, transform_indices = @transform_2, window_bounds = array<i64: 1, 3>}, {transform_indices = @transform_3, window_bounds = array<i64: 1, 16, 16, 3>}]} {
    %c0 = arith.constant 0 : index
    %c0_0 = arith.constant 0 : index
    %c0_1 = arith.constant 0 : index
    %c0_2 = arith.constant 0 : index
    %0 = vector.load %arg1[%c0, %c0_0, %c0_1, %c0_2] : memref<1x16x16x64xf32, #tpu.memory_space<vmem>>, vector<1x16x16x64xf32>
    %cst = arith.constant 0.000000e+00 : f32
    %1 = vector.broadcast %cst : f32 to vector<1x16x1x64xf32>
    %2 = vector.extract_strided_slice %0 {offsets = [0, 0, 0, 0], sizes = [1, 16, 15, 64], strides = [1, 1, 1, 1]} : vector<1x16x16x64xf32> to vector<1x16x15x64xf32>
    %3 = tpu.concatenate %1, %2 in 2 : vector<1x16x1x64xf32>, vector<1x16x15x64xf32> -> vector<1x16x16x64xf32>
    %4 = vector.extract_strided_slice %0 {offsets = [0, 0, 1, 0], sizes = [1, 16, 15, 64], strides = [1, 1, 1, 1]} : vector<1x16x16x64xf32> to vector<1x16x15x64xf32>
    %5 = tpu.concatenate %4, %1 in 2 : vector<1x16x15x64xf32>, vector<1x16x1x64xf32> -> vector<1x16x16x64xf32>
    %6 = tpu.concatenate %3, %0, %5 in 3 : vector<1x16x16x64xf32>, vector<1x16x16x64xf32>, vector<1x16x16x64xf32> -> vector<1x16x16x192xf32>
    %7 = vector.shape_cast %6 : vector<1x16x16x192xf32> to vector<256x192xf32>
    %c0_3 = arith.constant 0 : index
    %c0_4 = arith.constant 0 : index
    %8 = vector.load %arg2[%c0_3, %c0_4] : memref<192x9xf32, #tpu.memory_space<vmem>>, vector<192x9xf32>
    %cst_5 = arith.constant dense<0.000000e+00> : vector<256x9xf32>
    %9 = tpu.matmul %7, %8, %cst_5 {dimension_numbers = #tpu.dot_dimension_numbers<[1], [0], [0], [1], [0, 0, 1, 1], [], []>} : vector<256x192xf32>, vector<192x9xf32>, vector<256x9xf32> -> vector<256x9xf32>
    %10 = vector.shape_cast %9 : vector<256x9xf32> to vector<1x16x16x9xf32>
    %cst_6 = arith.constant 0.000000e+00 : f32
    %11 = vector.broadcast %cst_6 : f32 to vector<1x1x16x3xf32>
    %12 = vector.extract_strided_slice %10 {offsets = [0, 0, 0, 0], sizes = [1, 16, 16, 3], strides = [1, 1, 1, 1]} : vector<1x16x16x9xf32> to vector<1x16x16x3xf32>
    %13 = vector.extract_strided_slice %10 {offsets = [0, 0, 0, 3], sizes = [1, 16, 16, 3], strides = [1, 1, 1, 1]} : vector<1x16x16x9xf32> to vector<1x16x16x3xf32>
    %14 = vector.extract_strided_slice %10 {offsets = [0, 0, 0, 6], sizes = [1, 16, 16, 3], strides = [1, 1, 1, 1]} : vector<1x16x16x9xf32> to vector<1x16x16x3xf32>
    %15 = vector.extract_strided_slice %12 {offsets = [0, 0, 0, 0], sizes = [1, 15, 16, 3], strides = [1, 1, 1, 1]} : vector<1x16x16x3xf32> to vector<1x15x16x3xf32>
    %16 = tpu.concatenate %11, %15 in 1 : vector<1x1x16x3xf32>, vector<1x15x16x3xf32> -> vector<1x16x16x3xf32>
    %17 = arith.addf %13, %16 : vector<1x16x16x3xf32>
    %18 = vector.extract_strided_slice %14 {offsets = [0, 1, 0, 0], sizes = [1, 15, 16, 3], strides = [1, 1, 1, 1]} : vector<1x16x16x3xf32> to vector<1x15x16x3xf32>
    %19 = tpu.concatenate %18, %11 in 1 : vector<1x15x16x3xf32>, vector<1x1x16x3xf32> -> vector<1x16x16x3xf32>
    %20 = arith.addf %17, %19 : vector<1x16x16x3xf32>
    %c0_7 = arith.constant 0 : index
    %c0_8 = arith.constant 0 : index
    %21 = vector.load %arg3[%c0_7, %c0_8] : memref<1x3xf32, #tpu.memory_space<vmem>>, vector<1x3xf32>
    %22 = vector.shape_cast %21 : vector<1x3xf32> to vector<1x1x1x3xf32>
    %23 = vector.broadcast %22 : vector<1x1x1x3xf32> to vector<1x16x16x3xf32>
    %24 = arith.addf %20, %23 : vector<1x16x16x3xf32>
    %25 = vector.shape_cast %24 : vector<1x16x16x3xf32> to vector<1x256x3xf32>
    %26 = vector.shape_cast %25 : vector<1x256x3xf32> to vector<1x16x16x3xf32>
    %c0_9 = arith.constant 0 : index
    %c0_10 = arith.constant 0 : index
    %c0_11 = arith.constant 0 : index
    %c0_12 = arith.constant 0 : index
    %27 = vector.load %arg4[%c0_9, %c0_10, %c0_11, %c0_12] : memref<1x16x16x3xf32, #tpu.memory_space<vmem>>, vector<1x16x16x3xf32>
    tpu.vector_store %arg4[%c0_9, %c0_10, %c0_11, %c0_12], %26 {strides = array<i32>} : memref<1x16x16x3xf32, #tpu.memory_space<vmem>>, vector<1x16x16x3xf32>,
    return
  }
  func.func @transform_0(%arg0: i32) -> (i32, i32, i32, i32) {
    %c0_i32 = arith.constant 0 : i32
    %c0_i32_0 = arith.constant 0 : i32
    %c0_i32_1 = arith.constant 0 : i32
    %c0_i32_2 = arith.constant 0 : i32
    return %arg0, %c0_i32, %c0_i32_0, %c0_i32_1 : i32, i32, i32, i32
  }
  func.func @transform_1(%arg0: i32) -> (i32, i32) {
    %c0_i32 = arith.constant 0 : i32
    %c0_i32_0 = arith.constant 0 : i32
    %c0_i32_1 = arith.constant 0 : i32
    return %c0_i32, %c0_i32_0 : i32, i32
  }
  func.func @transform_2(%arg0: i32) -> (i32, i32) {
    %c0_i32 = arith.constant 0 : i32
    %c0_i32_0 = arith.constant 0 : i32
    %c0_i32_1 = arith.constant 0 : i32
    return %c0_i32, %c0_i32_0 : i32, i32
  }
  func.func @transform_3(%arg0: i32) -> (i32, i32, i32, i32) {
    %c0_i32 = arith.constant 0 : i32
    %c0_i32_0 = arith.constant 0 : i32
    %c0_i32_1 = arith.constant 0 : i32
    %c0_i32_2 = arith.constant 0 : i32
    return %arg0, %c0_i32, %c0_i32_0, %c0_i32_1 : i32, i32, i32, i32
  }
}

</mosaic_0001>

<llo_original>
// kernel: conv_decoder_forward.4
$region0: #{conv_decoder_forward.4}
  #allocation0 [shape = 'u32[]', space=smem, size = 0x4, offset = 0x4, fixed_abs, tag = 'smem constant byte address 0x4 - core index']
  #allocation1 [shape = 'u32[144,128]{1,0:T(1,128)}', space=vmem, size = 0x12000, scoped, tag = 'internal scratch']
  %s0 = inlined_call_operand.vmem [shape: f32[2,8,8,4], index: 0, kind: input, shape index: {}]
  %s1 = inlined_call_operand.vmem [shape: f32[12,192], index: 1, kind: input, shape index: {}]
  %s2 = inlined_call_operand.vmem [shape: f32[1,64], index: 2, kind: input, shape index: {}]
  %s3 = inlined_call_operand.vmem [shape: f32[2,8,8,64], index: 3, kind: output, shape index: {}]
  %s4 = sld [smem:[#allocation0]]
  $region45: #{conv_decoder_forward.4} parent=0
    _
  %s6 = ssub.s32 1, %s4
  %s7 = scalar_select 0, %s6, %s4
  loop: start=0, step=1, limit=4
  $region2: #{conv_decoder_forward.4} parent=0 // loop_pre_header
    _
  $region3: #{conv_decoder_forward.4} parent=0 // loop_header
    %s9 = sphi 0, %s13
    %p10 = scmp.ge.s32.totalorder %s9, 4
    %s19 = sphi 0, %s21
    %s22 = sphi 0, %s19
    %s23 = sphi 0, %s22
    %s39 = sphi 0, %s23
    %s43 = sphi 0, %s43
    %s45 = sphi 0, %s43
    %s46 = sphi 0, %s45
    %s60 = sphi 0, %s46
    %s64 = sphi 0, %s64
    %s66 = sphi 0, %s64
    %s67 = sphi 0, %s66
    %s81 = sphi 0, %s67
    %s87 = sphi 0, %s89
    %s90 = sphi 0, %s87
    %s91 = sphi 0, %s90
    %s107 = sphi 0, %s91
  $region4: #{conv_decoder_forward.4} parent=0 // loop_header_branch
    %12 = sbr.rel (%p10) target = $region8
  $region5: #{conv_decoder_forward.4} parent=0 // loop_body
    %s14 = ssub.s32 %s9, 1
    %s15 = ssub.s32 %s9, 2
    %s16 = sadd.s32 %s9, 1
    %s17 = ssub.s32 %s9, %s16
    %p18 = scmp.eq.s32.totalorder %s17, 0
    %s20 = sadd.s32 %s19, 1
    %s21 = scalar_select %p18, %s19, %s20
    %p24 = pneg %p18
    %p25 = scmp.eq.s32.totalorder %s9, 1
    %p26 = por %p24, %p25
    %p27 = scmp.ne.s32.totalorder %s19, %s22
    %p28 = scmp.eq.s32.totalorder %s9, 0
    %p29 = por %p27, %p28
    %p30 = scmp.ne.s32.totalorder %s19, %s22
    %p31 = scmp.eq.s32.totalorder %s14, 1
    %p32 = por %p30, %p31
    %p33 = scmp.ne.s32.totalorder %s22, %s23
    %p34 = scmp.eq.s32.totalorder %s14, 0
    %p35 = por %p33, %p34
    %p36 = scmp.ne.s32.totalorder %s22, %s23
    %p37 = scmp.eq.s32.totalorder %s15, 1
    %p38 = por %p36, %p37
    %p40 = scmp.ne.s32.totalorder %s23, %s39
    %p41 = scmp.eq.s32.totalorder %s15, 0
    %p42 = por %p40, %p41
    %s44 = sadd.s32 %s43, 1
    %p47 = scmp.eq.s32.totalorder %s9, 1
    %p48 = scmp.ne.s32.totalorder %s43, %s45
    %p49 = scmp.eq.s32.totalorder %s9, 0
    %p50 = por %p48, %p49
    %p51 = scmp.ne.s32.totalorder %s43, %s45
    %p52 = scmp.eq.s32.totalorder %s14, 1
    %p53 = por %p51, %p52
    %p54 = scmp.ne.s32.totalorder %s45, %s46
    %p55 = scmp.eq.s32.totalorder %s14, 0
    %p56 = por %p54, %p55
    %p57 = scmp.ne.s32.totalorder %s45, %s46
    %p58 = scmp.eq.s32.totalorder %s15, 1
    %p59 = por %p57, %p58
    %p61 = scmp.ne.s32.totalorder %s46, %s60
    %p62 = scmp.eq.s32.totalorder %s15, 0
    %p63 = por %p61, %p62
    %s65 = sadd.s32 %s64, 1
    %p68 = scmp.eq.s32.totalorder %s9, 1
    %p69 = scmp.ne.s32.totalorder %s64, %s66
    %p70 = scmp.eq.s32.totalorder %s9, 0
    %p71 = por %p69, %p70
    %p72 = scmp.ne.s32.totalorder %s64, %s66
    %p73 = scmp.eq.s32.totalorder %s14, 1
    %p74 = por %p72, %p73
    %p75 = scmp.ne.s32.totalorder %s66, %s67
    %p76 = scmp.eq.s32.totalorder %s14, 0
    %p77 = por %p75, %p76
    %p78 = scmp.ne.s32.totalorder %s66, %s67
    %p79 = scmp.eq.s32.totalorder %s15, 1
    %p80 = por %p78, %p79
    %p82 = scmp.ne.s32.totalorder %s67, %s81
    %p83 = scmp.eq.s32.totalorder %s15, 0
    %p84 = por %p82, %p83
    %s85 = ssub.s32 %s9, %s16
    %p86 = scmp.eq.s32.totalorder %s85, 0
    %s88 = sadd.s32 %s87, 1
    %s89 = scalar_select %p86, %s87, %s88
    %p92 = pneg %p86
    %p93 = scmp.eq.s32.totalorder %s9, 1
    %p94 = por %p92, %p93
    %p95 = scmp.ne.s32.totalorder %s87, %s90
    %p96 = scmp.eq.s32.totalorder %s9, 0
    %p97 = por %p95, %p96
    %p98 = scmp.ne.s32.totalorder %s87, %s90
    %p99 = scmp.eq.s32.totalorder %s14, 1
    %p100 = por %p98, %p99
    %p101 = scmp.ne.s32.totalorder %s90, %s91
    %p102 = scmp.eq.s32.totalorder %s14, 0
    %p103 = por %p101, %p102
    %p104 = scmp.ne.s32.totalorder %s90, %s91
    %p105 = scmp.eq.s32.totalorder %s15, 1
    %p106 = por %p104, %p105
    %p108 = scmp.ne.s32.totalorder %s91, %s107
    %p109 = scmp.eq.s32.totalorder %s15, 0
    %p110 = por %p108, %p109
    %p111 = scmp.le.s32.totalorder 1, %s9
    %p112 = scmp.lt.s32.totalorder %s9, 3
    %p113 = pnand %p111, %p112
    %p114 = pneg %p113
    // Predicated region
    $region9: #{conv_decoder_forward.4} parent=5 // pred_check
      _
    $region10: #{conv_decoder_forward.4} parent=5 // pred_check_branch
      %116 = sbr.rel (%p113) target = $region12
    $region11: #{conv_decoder_forward.4} parent=5 // pred_region
      %s117 = ssub.s32 %s9, 1
      // Predicated region
      $region13: #{conv_decoder_forward.4} parent=11 // pred_check
        %p118 = pneg %p56
      $region14: #{conv_decoder_forward.4} parent=11 // pred_check_branch
        %120 = sbr.rel (%p118) target = $region16
      $region15: #{conv_decoder_forward.4} parent=11 // pred_region
        _
      $region16: #{conv_decoder_forward.4} parent=11 // pred_fallthru
        _
      // Predicated region
      $region17: #{conv_decoder_forward.4} parent=11 // pred_check
        %p121 = pneg %p77
      $region18: #{conv_decoder_forward.4} parent=11 // pred_check_branch
        %123 = sbr.rel (%p121) target = $region20
      $region19: #{conv_decoder_forward.4} parent=11 // pred_region
        _
      $region20: #{conv_decoder_forward.4} parent=11 // pred_fallthru
        _
    $region12: #{conv_decoder_forward.4} parent=5 // pred_fallthru
      _
    %p124 = scmp.lt.s32.totalorder %s9, 2
    // Predicated region
    $region21: #{conv_decoder_forward.4} parent=5 // pred_check
      %p125 = pneg %p124
    $region22: #{conv_decoder_forward.4} parent=5 // pred_check_branch
      %127 = sbr.rel (%p125) target = $region24
    $region23: #{conv_decoder_forward.4} parent=5 // pred_region
      // Predicated region
      $region25: #{conv_decoder_forward.4} parent=23 // pred_check
        %p128 = pneg %p29
      $region26: #{conv_decoder_forward.4} parent=23 // pred_check_branch
        %130 = sbr.rel (%p128) target = $region28
      $region27: #{conv_decoder_forward.4} parent=23 // pred_region
        %p131 = scmp.lt.s32.totalorder %s9, 1
        %s132 = scalar_select %p131, %s9, 1
        %s133 = smul.addr %s132, 8
        %s134 = smul.addr %s133, 8
        %s135 = scalar_lea.vmem %s0, %s134
      $region28: #{conv_decoder_forward.4} parent=23 // pred_fallthru
        _
    $region24: #{conv_decoder_forward.4} parent=5 // pred_fallthru
      _
    %p136 = scmp.le.s32.totalorder 1, %s9
    %p137 = scmp.lt.s32.totalorder %s9, 3
    %p138 = pnand %p136, %p137
    %p139 = pneg %p138
    // Predicated region
    $region29: #{conv_decoder_forward.4} parent=5 // pred_check
      _
    $region30: #{conv_decoder_forward.4} parent=5 // pred_check_branch
      %141 = sbr.rel (%p138) target = $region32
    $region31: #{conv_decoder_forward.4} parent=5 // pred_region
      %s142 = ssub.s32 %s9, 1
      %p143 = scmp.lt.s32.totalorder %s14, 1
      %s144 = scalar_select %p143, %s14, 1
      %s145 = smul.addr %s144, 8
      %s146 = smul.addr %s145, 8
      %s147 = scalar_lea.vmem %s0, %s146
      %p148 = pneg %p35
      %p149 = pneg %p32
      %p150 = pneg %p56
      %p151 = pneg %p53
      %p152 = pneg %p77
      %p153 = pneg %p74
      %p154 = pneg %p103
      %p155 = pneg %p100
      %p156 = scmp.lt.s32.totalorder %s14, 1
      %s157 = scalar_select %p156, %s14, 1
      %s158 = smul.addr %s157, 8
      %s159 = smul.addr %s158, 8
      %s160 = scalar_lea.vmem %s3, %s159
      %p161 = scmp.lt.s32.totalorder %s14, 1
      %s162 = scalar_select %p161, %s14, 1
      %s163 = smul.addr %s162, 8
      %s164 = smul.addr %s163, 8
      %s165 = scalar_lea.vmem %s0, %s164
      %p166 = scmp.lt.s32.totalorder %s14, 1
      %s167 = scalar_select %p166, %s14, 1
      %s168 = smul.addr %s167, 8
      %s169 = smul.addr %s168, 8
      %s170 = scalar_lea.vmem %s3, %s169
      %v171 = vld [vmem:[%s165] sm:$0xff]
      %v172 = vld [vmem:[%s165 + $0x8] sm:$0xff]
      %v173 = vld [vmem:[%s165 + $0x10] sm:$0xff]
      %v174 = vld [vmem:[%s165 + $0x18] sm:$0xff]
      %v175 = vld [vmem:[%s165 + $0x20] sm:$0xff]
      %v176 = vld [vmem:[%s165 + $0x28] sm:$0xff]
      %v177 = vld [vmem:[%s165 + $0x30] sm:$0xff]
      %v178 = vld [vmem:[%s165 + $0x38] sm:$0xff]
      %v187 = vrot.slane %v171, 7
      %v188 = vrot.slane %v172, 7
      %v189 = vrot.slane %v173, 7
      %v190 = vrot.slane %v174, 7
      %v191 = vrot.slane %v175, 7
      %v192 = vrot.slane %v176, 7
      %v193 = vrot.slane %v177, 7
      %v194 = vrot.slane %v178, 7
      %vm203 = vcmask 1040384
      %v204 = vsel %vm203, 0.0, %v187
      %v205 = vsel %vm203, 0.0, %v188
      %v206 = vsel %vm203, 0.0, %v189
      %v207 = vsel %vm203, 0.0, %v190
      %v208 = vsel %vm203, 0.0, %v191
      %v209 = vsel %vm203, 0.0, %v192
      %v210 = vsel %vm203, 0.0, %v193
      %v211 = vsel %vm203, 0.0, %v194
      %v212 = vrot.slane %v171, 1
      %v213 = vrot.slane %v172, 1
      %v214 = vrot.slane %v173, 1
      %v215 = vrot.slane %v174, 1
      %v216 = vrot.slane %v175, 1
      %v217 = vrot.slane %v176, 1
      %v218 = vrot.slane %v177, 1
      %v219 = vrot.slane %v178, 1
      %vm228 = vcmask 1046528
      %v229 = vsel %vm228, %v212, 0.0
      %v230 = vsel %vm228, %v213, 0.0
      %v231 = vsel %vm228, %v214, 0.0
      %v232 = vsel %vm228, %v215, 0.0
      %v233 = vsel %vm228, %v216, 0.0
      %v234 = vsel %vm228, %v217, 0.0
      %v235 = vsel %vm228, %v218, 0.0
      %v236 = vsel %vm228, %v219, 0.0
      %237 = vrot.lane.b32.xlu0 %v171, 4
      %v238 = vpop.permute.xlu0 %237
      %239 = vrot.lane.b32.xlu0 %v172, 4
      %v240 = vpop.permute.xlu0 %239
      %241 = vrot.lane.b32.xlu0 %v173, 4
      %v242 = vpop.permute.xlu0 %241
      %243 = vrot.lane.b32.xlu0 %v174, 4
      %v244 = vpop.permute.xlu0 %243
      %245 = vrot.lane.b32.xlu0 %v175, 4
      %v246 = vpop.permute.xlu0 %245
      %247 = vrot.lane.b32.xlu0 %v176, 4
      %v248 = vpop.permute.xlu0 %247
      %249 = vrot.lane.b32.xlu0 %v177, 4
      %v250 = vpop.permute.xlu0 %249
      %251 = vrot.lane.b32.xlu0 %v178, 4
      %v252 = vpop.permute.xlu0 %251
      %269 = vrot.lane.b32.xlu0 %v229, 8
      %v270 = vpop.permute.xlu0 %269
      %271 = vrot.lane.b32.xlu0 %v230, 8
      %v272 = vpop.permute.xlu0 %271
      %273 = vrot.lane.b32.xlu0 %v231, 8
      %v274 = vpop.permute.xlu0 %273
      %275 = vrot.lane.b32.xlu0 %v232, 8
      %v276 = vpop.permute.xlu0 %275
      %277 = vrot.lane.b32.xlu0 %v233, 8
      %v278 = vpop.permute.xlu0 %277
      %279 = vrot.lane.b32.xlu0 %v234, 8
      %v280 = vpop.permute.xlu0 %279
      %281 = vrot.lane.b32.xlu0 %v235, 8
      %v282 = vpop.permute.xlu0 %281
      %283 = vrot.lane.b32.xlu0 %v236, 8
      %v284 = vpop.permute.xlu0 %283
      %vm293 = vcmask 31744
      %v294 = vsel %vm293, %v204, %v238
      %v295 = vsel %vm293, %v205, %v240
      %v296 = vsel %vm293, %v206, %v242
      %v297 = vsel %vm293, %v207, %v244
      %v298 = vsel %vm293, %v208, %v246
      %v299 = vsel %vm293, %v209, %v248
      %v300 = vsel %vm293, %v210, %v250
      %v301 = vsel %vm293, %v211, %v252
      %vm302 = vcmask 64512
      %v303 = vsel %vm302, %v294, %v270
      %v304 = vsel %vm302, %v295, %v272
      %v305 = vsel %vm302, %v296, %v274
      %v306 = vsel %vm302, %v297, %v276
      %v307 = vsel %vm302, %v298, %v278
      %v308 = vsel %vm302, %v299, %v280
      %v309 = vsel %vm302, %v300, %v282
      %v310 = vsel %vm302, %v301, %v284
      %v311 = vld [vmem:[%s1] sm:$0xff]
      %v312 = vld [vmem:[%s1 + $0x8] sm:$0xff]
      %v313 = vld [vmem:[%s1 + $0x10] sm:$0xf]
      %v314 = vld [vmem:[%s1 + $0x18] sm:$0xf]
      %vm315 = vcmask 97280
      %v317 = vsel %vm315, %v303, 0
      %v320 = vsel %vm315, %v304, 0
      %v323 = vsel %vm315, %v305, 0
      %v326 = vsel %vm315, %v306, 0
      %v329 = vsel %vm315, %v307, 0
      %v332 = vsel %vm315, %v308, 0
      %v335 = vsel %vm315, %v309, 0
      %v338 = vsel %vm315, %v310, 0
      %vm340 = vcmask 1043456
      %v342 = vsel %vm340, %v313, 0
      %v345 = vsel %vm340, %v314, 0
      %347 = vmatprep.subr.mxu0 0.0
      %348 = vmatpush1.msra.mxu0 0.0
      %349 = vmatprep.subr.mxu0 0.0
      %350 = vmatpush1.msra.mxu0 0.0
      %351 = vmatprep.subr.mxu0 0.0
      %352 = vmatpush1.msra.mxu0 0.0
      %353 = vmatprep.subr.mxu0 0.0
      %354 = vmatpush1.msra.mxu0 0.0
      %355 = vmatprep.subr.mxu0 0.0
      %356 = vmatpush1.msra.mxu0 0.0
      %357 = vmatprep.subr.mxu0 0.0
      %358 = vmatpush1.msra.mxu0 0.0
      %359 = vmatprep.subr.mxu0 0.0
      %360 = vmatpush1.msra.mxu0 0.0
      %361 = vmatprep.subr.mxu0 0.0
      %362 = vmatpush1.msra.mxu0 0.0
      %363 = vmatprep.subr.mxu0 0.0
      %364 = vmatpush1.msra.mxu0 0.0
      %365 = vmatprep.subr.mxu0 0.0
      %366 = vmatpush1.msra.mxu0 0.0
      %367 = vmatprep.subr.mxu0 0.0
      %368 = vmatpush1.msra.mxu0 0.0
      %369 = vmatprep.subr.mxu0 0.0
      %370 = vmatpush1.msra.mxu0 0.0
      %371 = vmatprep.subr.mxu0 0.0
      %372 = vmatpush1.msra.mxu0 0.0
      %373 = vmatprep.subr.mxu0 0.0
      %374 = vmatpush1.msra.mxu0 0.0
      %375 = vmatprep.subr.mxu0 %v345
      %376 = vmatpush1.msra.mxu0 %v342
      %377 = vmatprep.subr.mxu0 %v312
      %378 = vmatpush1.msra.mxu0 %v311
      %379 = vmatprep.subr.mxu0 0.0
      %380 = vmatpush2.msra.mxu0 0.0
      %381 = vmatprep.subr.mxu0 0.0
      %382 = vmatpush2.msra.mxu0 0.0
      %383 = vmatprep.subr.mxu0 0.0
      %384 = vmatpush2.msra.mxu0 0.0
      %385 = vmatprep.subr.mxu0 0.0
      %386 = vmatpush2.msra.mxu0 0.0
      %387 = vmatprep.subr.mxu0 0.0
      %388 = vmatpush2.msra.mxu0 0.0
      %389 = vmatprep.subr.mxu0 0.0
      %390 = vmatpush2.msra.mxu0 0.0
      %391 = vmatprep.subr.mxu0 0.0
      %392 = vmatpush2.msra.mxu0 0.0
      %393 = vmatprep.subr.mxu0 0.0
      %394 = vmatpush2.msra.mxu0 0.0
      %395 = vmatprep.subr.mxu0 0.0
      %396 = vmatpush2.msra.mxu0 0.0
      %397 = vmatprep.subr.mxu0 0.0
      %398 = vmatpush2.msra.mxu0 0.0
      %399 = vmatprep.subr.mxu0 0.0
      %400 = vmatpush2.msra.mxu0 0.0
      %401 = vmatprep.subr.mxu0 0.0
      %402 = vmatpush2.msra.mxu0 0.0
      %403 = vmatprep.subr.mxu0 0.0
      %404 = vmatpush2.msra.mxu0 0.0
      %405 = vmatprep.subr.mxu0 0.0
      %406 = vmatpush2.msra.mxu0 0.0
      %407 = vmatprep.subr.mxu0 0.0
      %408 = vmatpush2.msra.mxu0 0.0
      %409 = vmatprep.subr.mxu0 0.0
      %410 = vmatpush2.msra.mxu0 0.0
      %411 = vmatprep.mubr.f32.mxu0 0.0
      %412 = vmatmul.mubr.f32.gmra.mxu0 %v317
      %v413 = vpop.f32.mrf.mxu0
      %v414 = vadd.f32 0.0, %v413
      %v415 = vpop.f32.mrf.mxu0
      %416 = vmatprep.mubr.f32.mxu0 0.0
      %417 = vmatmul.mubr.f32.gmra.mxu0 %v320
      %v418 = vpop.f32.mrf.mxu0
      %v419 = vadd.f32 0.0, %v418
      %v420 = vpop.f32.mrf.mxu0
      %v421 = vadd.f32 0.0, %v420
      %422 = vmatprep.mubr.f32.mxu0 0.0
      %423 = vmatmul.mubr.f32.gmra.mxu0 %v323
      %v424 = vpop.f32.mrf.mxu0
      %v425 = vadd.f32 0.0, %v424
      %v426 = vpop.f32.mrf.mxu0
      %v427 = vadd.f32 0.0, %v426
      %428 = vmatprep.mubr.f32.mxu0 0.0
      %429 = vmatmul.mubr.f32.gmra.mxu0 %v326
      %v430 = vpop.f32.mrf.mxu0
      %v431 = vadd.f32 0.0, %v430
      %v432 = vpop.f32.mrf.mxu0
      %v433 = vadd.f32 0.0, %v432
      %434 = vmatprep.mubr.f32.mxu0 0.0
      %435 = vmatmul.mubr.f32.gmra.mxu0 %v329
      %v436 = vpop.f32.mrf.mxu0
      %v437 = vadd.f32 0.0, %v436
      %v438 = vpop.f32.mrf.mxu0
      %v439 = vadd.f32 0.0, %v438
      %440 = vmatprep.mubr.f32.mxu0 0.0
      %441 = vmatmul.mubr.f32.gmra.mxu0 %v332
      %v442 = vpop.f32.mrf.mxu0
      %v443 = vadd.f32 0.0, %v442
      %v444 = vpop.f32.mrf.mxu0
      %v445 = vadd.f32 0.0, %v444
      %446 = vmatprep.mubr.f32.mxu0 0.0
      %447 = vmatmul.mubr.f32.gmra.mxu0 %v335
      %v448 = vpop.f32.mrf.mxu0
      %v449 = vadd.f32 0.0, %v448
      %v450 = vpop.f32.mrf.mxu0
      %v451 = vadd.f32 0.0, %v450
      %452 = vmatprep.mubr.f32.mxu0 0.0
      %453 = vmatmul.mubr.f32.gmra.mxu0 %v338
      %v454 = vpop.f32.mrf.mxu0
      %v455 = vadd.f32 0.0, %v454
      %v456 = vpop.f32.mrf.mxu0
      %v457 = vadd.f32 0.0, %v456
      %458 = vdwg.mxu0
      %467 = vrot.lane.b32.xlu0 0.0, 64
      %v468 = vpop.permute.xlu0 %467
      %469 = vrot.lane.b32.xlu0 %v414, 64
      %v470 = vpop.permute.xlu0 %469
      %471 = vrot.lane.b32.xlu0 %v419, 64
      %v472 = vpop.permute.xlu0 %471
      %473 = vrot.lane.b32.xlu0 %v425, 64
      %v474 = vpop.permute.xlu0 %473
      %475 = vrot.lane.b32.xlu0 %v431, 64
      %v476 = vpop.permute.xlu0 %475
      %477 = vrot.lane.b32.xlu0 %v437, 64
      %v478 = vpop.permute.xlu0 %477
      %479 = vrot.lane.b32.xlu0 %v443, 64
      %v480 = vpop.permute.xlu0 %479
      %481 = vrot.lane.b32.xlu0 %v449, 64
      %v482 = vpop.permute.xlu0 %481
      %v491 = vadd.f32 %v414, %v468
      %v492 = vadd.f32 %v419, %v470
      %v493 = vadd.f32 %v425, %v472
      %v494 = vadd.f32 %v431, %v474
      %v495 = vadd.f32 %v437, %v476
      %v496 = vadd.f32 %v443, %v478
      %v497 = vadd.f32 %v449, %v480
      %v498 = vadd.f32 %v455, %v482
      %506 = vrot.lane.b32.xlu0 %v421, 64
      %v507 = vpop.permute.xlu0 %506
      %508 = vrot.lane.b32.xlu0 %v427, 64
      %v509 = vpop.permute.xlu0 %508
      %510 = vrot.lane.b32.xlu0 %v433, 64
      %v511 = vpop.permute.xlu0 %510
      %512 = vrot.lane.b32.xlu0 %v439, 64
      %v513 = vpop.permute.xlu0 %512
      %514 = vrot.lane.b32.xlu0 %v445, 64
      %v515 = vpop.permute.xlu0 %514
      %516 = vrot.lane.b32.xlu0 %v451, 64
      %v517 = vpop.permute.xlu0 %516
      %518 = vrot.lane.b32.xlu0 %v457, 64
      %v519 = vpop.permute.xlu0 %518
      %v527 = vadd.f32 %v491, %v507
      %v528 = vadd.f32 %v492, %v509
      %v529 = vadd.f32 %v493, %v511
      %v530 = vadd.f32 %v494, %v513
      %v531 = vadd.f32 %v495, %v515
      %v532 = vadd.f32 %v496, %v517
      %v533 = vadd.f32 %v497, %v519
      %v534 = vadd.f32 %v498, %v468
      %v535 = vld [vmem:[%s2] sm:$0x1]
      %v537 = vlaneseq
      %v538 = vshrl.u32 %v537, 7
      %v539 = vsub.s32 0, %v538
      %v540 = vrot.slane %v535, %v539
      %541 = vrot.lane.b32.xlu0 %v540, 64
      %v542 = vpop.permute.xlu0 %541
      %v544 = vadd.f32 %v527, %v542
      %v545 = vadd.f32 %v528, %v542
      %v546 = vadd.f32 %v529, %v542
      %v547 = vadd.f32 %v530, %v542
      %v548 = vadd.f32 %v531, %v542
      %v549 = vadd.f32 %v532, %v542
      %v550 = vadd.f32 %v533, %v542
      %v551 = vadd.f32 %v534, %v542
      %vm552 = vcmp.ge.f32.partialorder %v544, 0.0
      %vm553 = vcmp.ge.f32.partialorder %v545, 0.0
      %vm554 = vcmp.ge.f32.partialorder %v546, 0.0
      %vm555 = vcmp.ge.f32.partialorder %v547, 0.0
      %vm556 = vcmp.ge.f32.partialorder %v548, 0.0
      %vm557 = vcmp.ge.f32.partialorder %v549, 0.0
      %vm558 = vcmp.ge.f32.partialorder %v550, 0.0
      %vm559 = vcmp.ge.f32.partialorder %v551, 0.0
      %v560 = vmul.f32 %v544, 0.2
      %v561 = vmul.f32 %v545, 0.2
      %v562 = vmul.f32 %v546, 0.2
      %v563 = vmul.f32 %v547, 0.2
      %v564 = vmul.f32 %v548, 0.2
      %v565 = vmul.f32 %v549, 0.2
      %v566 = vmul.f32 %v550, 0.2
      %v567 = vmul.f32 %v551, 0.2
      %v568 = vsel %vm552, %v544, %v560
      %v569 = vsel %vm553, %v545, %v561
      %v570 = vsel %vm554, %v546, %v562
      %v571 = vsel %vm555, %v547, %v563
      %v572 = vsel %vm556, %v548, %v564
      %v573 = vsel %vm557, %v549, %v565
      %v574 = vsel %vm558, %v550, %v566
      %v575 = vsel %vm559, %v551, %v567
      %584 = vrot.lane.b32.xlu0 %v568, 64
      %v585 = vpop.permute.xlu0 %584
      %586 = vrot.lane.b32.xlu0 %v569, 64
      %v587 = vpop.permute.xlu0 %586
      %588 = vrot.lane.b32.xlu0 %v570, 64
      %v589 = vpop.permute.xlu0 %588
      %590 = vrot.lane.b32.xlu0 %v571, 64
      %v591 = vpop.permute.xlu0 %590
      %592 = vrot.lane.b32.xlu0 %v572, 64
      %v593 = vpop.permute.xlu0 %592
      %594 = vrot.lane.b32.xlu0 %v573, 64
      %v595 = vpop.permute.xlu0 %594
      %596 = vrot.lane.b32.xlu0 %v574, 64
      %v597 = vpop.permute.xlu0 %596
      %598 = vrot.lane.b32.xlu0 %v575, 64
      %v599 = vpop.permute.xlu0 %598
      %vm608 = vcmask 523264
      %609 = vst.msk [vmem:[%s170] sm:$0xff] %vm608, %v585
      %610 = vst.msk [vmem:[%s170 + $0x8] sm:$0xff] %vm608, %v587
      %611 = vst.msk [vmem:[%s170 + $0x10] sm:$0xff] %vm608, %v589
      %612 = vst.msk [vmem:[%s170 + $0x18] sm:$0xff] %vm608, %v591
      %613 = vst.msk [vmem:[%s170 + $0x20] sm:$0xff] %vm608, %v593
      %614 = vst.msk [vmem:[%s170 + $0x28] sm:$0xff] %vm608, %v595
      %615 = vst.msk [vmem:[%s170 + $0x30] sm:$0xff] %vm608, %v597
      %616 = vst.msk [vmem:[%s170 + $0x38] sm:$0xff] %vm608, %v599
      %p617 = scmp.lt.s32.totalorder %s14, 1
      %s618 = scalar_select %p617, %s14, 1
      %s619 = smul.addr %s618, 8
      %s620 = smul.addr %s619, 8
      %s621 = scalar_lea.vmem %s3, %s620
      // Predicated region
      $region33: #{conv_decoder_forward.4} parent=31 // pred_check
        %p622 = pneg %p100
      $region34: #{conv_decoder_forward.4} parent=31 // pred_check_branch
        %624 = sbr.rel (%p622) target = $region36
      $region35: #{conv_decoder_forward.4} parent=31 // pred_region
        _
      $region36: #{conv_decoder_forward.4} parent=31 // pred_fallthru
        _
    $region32: #{conv_decoder_forward.4} parent=5 // pred_fallthru
      _
    %p625 = scmp.le.s32.totalorder 2, %s9
    // Predicated region
    $region37: #{conv_decoder_forward.4} parent=5 // pred_check
      %p626 = pneg %p625
    $region38: #{conv_decoder_forward.4} parent=5 // pred_check_branch
      %628 = sbr.rel (%p626) target = $region40
    $region39: #{conv_decoder_forward.4} parent=5 // pred_region
      %s629 = ssub.s32 %s9, 2
      // Predicated region
      $region41: #{conv_decoder_forward.4} parent=39 // pred_check
        %p630 = pneg %p106
      $region42: #{conv_decoder_forward.4} parent=39 // pred_check_branch
        %632 = sbr.rel (%p630) target = $region44
      $region43: #{conv_decoder_forward.4} parent=39 // pred_region
        %p633 = scmp.lt.s32.totalorder %s15, 1
        %s634 = scalar_select %p633, %s15, 1
        %s635 = smul.addr %s634, 8
        %s636 = smul.addr %s635, 8
        %s637 = scalar_lea.vmem %s3, %s636
      $region44: #{conv_decoder_forward.4} parent=39 // pred_fallthru
        _
    $region40: #{conv_decoder_forward.4} parent=5 // pred_fallthru
      _
  $region6: #{conv_decoder_forward.4} parent=0 // loop_footer
    %s13 = sadd.s32 1, %s9
  $region7: #{conv_decoder_forward.4} parent=0 // loop_footer_branch
    %8 = sbr.rel target = $region3
  $region8: #{conv_decoder_forward.4} parent=0 // loop_exit
    _

// kernel: conv_decoder_forward.6
$region0: #{conv_decoder_forward.6}
  #allocation0 [shape = 'u32[]', space=smem, size = 0x4, offset = 0x4, fixed_abs, tag = 'smem constant byte address 0x4 - core index']
  #allocation1 [shape = 'u32[144,128]{1,0:T(1,128)}', space=vmem, size = 0x12000, scoped, tag = 'internal scratch']
  %s0 = inlined_call_operand.vmem [shape: f32[2,8,8,64], index: 0, kind: input, shape index: {}]
  %s1 = inlined_call_operand.vmem [shape: f32[192,192], index: 1, kind: input, shape index: {}]
  %s2 = inlined_call_operand.vmem [shape: f32[1,64], index: 2, kind: input, shape index: {}]
  %s3 = inlined_call_operand.vmem [shape: f32[2,1,64], index: 3, kind: input, shape index: {}]
  %s4 = inlined_call_operand.vmem [shape: f32[2,1,64], index: 4, kind: input, shape index: {}]
  %s5 = inlined_call_operand.vmem [shape: f32[64,32], index: 5, kind: input, shape index: {}]
  %s6 = inlined_call_operand.vmem [shape: f32[32,64], index: 6, kind: input, shape index: {}]
  %s7 = inlined_call_operand.vmem [shape: f32[2,8,2,8,128], index: 7, kind: output, shape index: {}]
  %s8 = sld [smem:[#allocation0]]
  $region61: #{conv_decoder_forward.6} parent=0
    _
  %s10 = ssub.s32 1, %s8
  %s11 = scalar_select 0, %s10, %s8
  loop: start=0, step=1, limit=4
  $region2: #{conv_decoder_forward.6} parent=0 // loop_pre_header
    _
  $region3: #{conv_decoder_forward.6} parent=0 // loop_header
    %s13 = sphi 0, %s17
    %p14 = scmp.ge.s32.totalorder %s13, 4
    %s23 = sphi 0, %s25
    %s26 = sphi 0, %s23
    %s27 = sphi 0, %s26
    %s43 = sphi 0, %s27
    %s47 = sphi 0, %s47
    %s49 = sphi 0, %s47
    %s50 = sphi 0, %s49
    %s64 = sphi 0, %s50
    %s68 = sphi 0, %s68
    %s70 = sphi 0, %s68
    %s71 = sphi 0, %s70
    %s85 = sphi 0, %s71
    %s91 = sphi 0, %s93
    %s94 = sphi 0, %s91
    %s95 = sphi 0, %s94
    %s111 = sphi 0, %s95
    %s117 = sphi 0, %s119
    %s120 = sphi 0, %s117
    %s121 = sphi 0, %s120
    %s137 = sphi 0, %s121
    %s141 = sphi 0, %s141
    %s143 = sphi 0, %s141
    %s144 = sphi 0, %s143
    %s158 = sphi 0, %s144
    %s162 = sphi 0, %s162
    %s164 = sphi 0, %s162
    %s165 = sphi 0, %s164
    %s179 = sphi 0, %s165
    %s185 = sphi 0, %s187
    %s188 = sphi 0, %s185
    %s189 = sphi 0, %s188
    %s205 = sphi 0, %s189
  $region4: #{conv_decoder_forward.6} parent=0 // loop_header_branch
    %16 = sbr.rel (%p14) target = $region8
  $region5: #{conv_decoder_forward.6} parent=0 // loop_body
    %s18 = ssub.s32 %s13, 1
    %s19 = ssub.s32 %s13, 2
    %s20 = sadd.s32 %s13, 1
    %s21 = ssub.s32 %s13, %s20
    %p22 = scmp.eq.s32.totalorder %s21, 0
    %s24 = sadd.s32 %s23, 1
    %s25 = scalar_select %p22, %s23, %s24
    %p28 = pneg %p22
    %p29 = scmp.eq.s32.totalorder %s13, 1
    %p30 = por %p28, %p29
    %p31 = scmp.ne.s32.totalorder %s23, %s26
    %p32 = scmp.eq.s32.totalorder %s13, 0
    %p33 = por %p31, %p32
    %p34 = scmp.ne.s32.totalorder %s23, %s26
    %p35 = scmp.eq.s32.totalorder %s18, 1
    %p36 = por %p34, %p35
    %p37 = scmp.ne.s32.totalorder %s26, %s27
    %p38 = scmp.eq.s32.totalorder %s18, 0
    %p39 = por %p37, %p38
    %p40 = scmp.ne.s32.totalorder %s26, %s27
    %p41 = scmp.eq.s32.totalorder %s19, 1
    %p42 = por %p40, %p41
    %p44 = scmp.ne.s32.totalorder %s27, %s43
    %p45 = scmp.eq.s32.totalorder %s19, 0
    %p46 = por %p44, %p45
    %s48 = sadd.s32 %s47, 1
    %p51 = scmp.eq.s32.totalorder %s13, 1
    %p52 = scmp.ne.s32.totalorder %s47, %s49
    %p53 = scmp.eq.s32.totalorder %s13, 0
    %p54 = por %p52, %p53
    %p55 = scmp.ne.s32.totalorder %s47, %s49
    %p56 = scmp.eq.s32.totalorder %s18, 1
    %p57 = por %p55, %p56
    %p58 = scmp.ne.s32.totalorder %s49, %s50
    %p59 = scmp.eq.s32.totalorder %s18, 0
    %p60 = por %p58, %p59
    %p61 = scmp.ne.s32.totalorder %s49, %s50
    %p62 = scmp.eq.s32.totalorder %s19, 1
    %p63 = por %p61, %p62
    %p65 = scmp.ne.s32.totalorder %s50, %s64
    %p66 = scmp.eq.s32.totalorder %s19, 0
    %p67 = por %p65, %p66
    %s69 = sadd.s32 %s68, 1
    %p72 = scmp.eq.s32.totalorder %s13, 1
    %p73 = scmp.ne.s32.totalorder %s68, %s70
    %p74 = scmp.eq.s32.totalorder %s13, 0
    %p75 = por %p73, %p74
    %p76 = scmp.ne.s32.totalorder %s68, %s70
    %p77 = scmp.eq.s32.totalorder %s18, 1
    %p78 = por %p76, %p77
    %p79 = scmp.ne.s32.totalorder %s70, %s71
    %p80 = scmp.eq.s32.totalorder %s18, 0
    %p81 = por %p79, %p80
    %p82 = scmp.ne.s32.totalorder %s70, %s71
    %p83 = scmp.eq.s32.totalorder %s19, 1
    %p84 = por %p82, %p83
    %p86 = scmp.ne.s32.totalorder %s71, %s85
    %p87 = scmp.eq.s32.totalorder %s19, 0
    %p88 = por %p86, %p87
    %s89 = ssub.s32 %s13, %s20
    %p90 = scmp.eq.s32.totalorder %s89, 0
    %s92 = sadd.s32 %s91, 1
    %s93 = scalar_select %p90, %s91, %s92
    %p96 = pneg %p90
    %p97 = scmp.eq.s32.totalorder %s13, 1
    %p98 = por %p96, %p97
    %p99 = scmp.ne.s32.totalorder %s91, %s94
    %p100 = scmp.eq.s32.totalorder %s13, 0
    %p101 = por %p99, %p100
    %p102 = scmp.ne.s32.totalorder %s91, %s94
    %p103 = scmp.eq.s32.totalorder %s18, 1
    %p104 = por %p102, %p103
    %p105 = scmp.ne.s32.totalorder %s94, %s95
    %p106 = scmp.eq.s32.totalorder %s18, 0
    %p107 = por %p105, %p106
    %p108 = scmp.ne.s32.totalorder %s94, %s95
    %p109 = scmp.eq.s32.totalorder %s19, 1
    %p110 = por %p108, %p109
    %p112 = scmp.ne.s32.totalorder %s95, %s111
    %p113 = scmp.eq.s32.totalorder %s19, 0
    %p114 = por %p112, %p113
    %s115 = ssub.s32 %s13, %s20
    %p116 = scmp.eq.s32.totalorder %s115, 0
    %s118 = sadd.s32 %s117, 1
    %s119 = scalar_select %p116, %s117, %s118
    %p122 = pneg %p116
    %p123 = scmp.eq.s32.totalorder %s13, 1
    %p124 = por %p122, %p123
    %p125 = scmp.ne.s32.totalorder %s117, %s120
    %p126 = scmp.eq.s32.totalorder %s13, 0
    %p127 = por %p125, %p126
    %p128 = scmp.ne.s32.totalorder %s117, %s120
    %p129 = scmp.eq.s32.totalorder %s18, 1
    %p130 = por %p128, %p129
    %p131 = scmp.ne.s32.totalorder %s120, %s121
    %p132 = scmp.eq.s32.totalorder %s18, 0
    %p133 = por %p131, %p132
    %p134 = scmp.ne.s32.totalorder %s120, %s121
    %p135 = scmp.eq.s32.totalorder %s19, 1
    %p136 = por %p134, %p135
    %p138 = scmp.ne.s32.totalorder %s121, %s137
    %p139 = scmp.eq.s32.totalorder %s19, 0
    %p140 = por %p138, %p139
    %s142 = sadd.s32 %s141, 1
    %p145 = scmp.eq.s32.totalorder %s13, 1
    %p146 = scmp.ne.s32.totalorder %s141, %s143
    %p147 = scmp.eq.s32.totalorder %s13, 0
    %p148 = por %p146, %p147
    %p149 = scmp.ne.s32.totalorder %s141, %s143
    %p150 = scmp.eq.s32.totalorder %s18, 1
    %p151 = por %p149, %p150
    %p152 = scmp.ne.s32.totalorder %s143, %s144
    %p153 = scmp.eq.s32.totalorder %s18, 0
    %p154 = por %p152, %p153
    %p155 = scmp.ne.s32.totalorder %s143, %s144
    %p156 = scmp.eq.s32.totalorder %s19, 1
    %p157 = por %p155, %p156
    %p159 = scmp.ne.s32.totalorder %s144, %s158
    %p160 = scmp.eq.s32.totalorder %s19, 0
    %p161 = por %p159, %p160
    %s163 = sadd.s32 %s162, 1
    %p166 = scmp.eq.s32.totalorder %s13, 1
    %p167 = scmp.ne.s32.totalorder %s162, %s164
    %p168 = scmp.eq.s32.totalorder %s13, 0
    %p169 = por %p167, %p168
    %p170 = scmp.ne.s32.totalorder %s162, %s164
    %p171 = scmp.eq.s32.totalorder %s18, 1
    %p172 = por %p170, %p171
    %p173 = scmp.ne.s32.totalorder %s164, %s165
    %p174 = scmp.eq.s32.totalorder %s18, 0
    %p175 = por %p173, %p174
    %p176 = scmp.ne.s32.totalorder %s164, %s165
    %p177 = scmp.eq.s32.totalorder %s19, 1
    %p178 = por %p176, %p177
    %p180 = scmp.ne.s32.totalorder %s165, %s179
    %p181 = scmp.eq.s32.totalorder %s19, 0
    %p182 = por %p180, %p181
    %s183 = ssub.s32 %s13, %s20
    %p184 = scmp.eq.s32.totalorder %s183, 0
    %s186 = sadd.s32 %s185, 1
    %s187 = scalar_select %p184, %s185, %s186
    %p190 = pneg %p184
    %p191 = scmp.eq.s32.totalorder %s13, 1
    %p192 = por %p190, %p191
    %p193 = scmp.ne.s32.totalorder %s185, %s188
    %p194 = scmp.eq.s32.totalorder %s13, 0
    %p195 = por %p193, %p194
    %p196 = scmp.ne.s32.totalorder %s185, %s188
    %p197 = scmp.eq.s32.totalorder %s18, 1
    %p198 = por %p196, %p197
    %p199 = scmp.ne.s32.totalorder %s188, %s189
    %p200 = scmp.eq.s32.totalorder %s18, 0
    %p201 = por %p199, %p200
    %p202 = scmp.ne.s32.totalorder %s188, %s189
    %p203 = scmp.eq.s32.totalorder %s19, 1
    %p204 = por %p202, %p203
    %p206 = scmp.ne.s32.totalorder %s189, %s205
    %p207 = scmp.eq.s32.totalorder %s19, 0
    %p208 = por %p206, %p207
    %p209 = scmp.le.s32.totalorder 1, %s13
    %p210 = scmp.lt.s32.totalorder %s13, 3
    %p211 = pnand %p209, %p210
    %p212 = pneg %p211
    // Predicated region
    $region9: #{conv_decoder_forward.6} parent=5 // pred_check
      _
    $region10: #{conv_decoder_forward.6} parent=5 // pred_check_branch
      %214 = sbr.rel (%p211) target = $region12
    $region11: #{conv_decoder_forward.6} parent=5 // pred_region
      %s215 = ssub.s32 %s13, 1
      // Predicated region
      $region13: #{conv_decoder_forward.6} parent=11 // pred_check
        %p216 = pneg %p60
      $region14: #{conv_decoder_forward.6} parent=11 // pred_check_branch
        %218 = sbr.rel (%p216) target = $region16
      $region15: #{conv_decoder_forward.6} parent=11 // pred_region
        _
      $region16: #{conv_decoder_forward.6} parent=11 // pred_fallthru
        _
      // Predicated region
      $region17: #{conv_decoder_forward.6} parent=11 // pred_check
        %p219 = pneg %p81
      $region18: #{conv_decoder_forward.6} parent=11 // pred_check_branch
        %221 = sbr.rel (%p219) target = $region20
      $region19: #{conv_decoder_forward.6} parent=11 // pred_region
        _
      $region20: #{conv_decoder_forward.6} parent=11 // pred_fallthru
        _
      // Predicated region
      $region21: #{conv_decoder_forward.6} parent=11 // pred_check
        %p222 = pneg %p154
      $region22: #{conv_decoder_forward.6} parent=11 // pred_check_branch
        %224 = sbr.rel (%p222) target = $region24
      $region23: #{conv_decoder_forward.6} parent=11 // pred_region
        _
      $region24: #{conv_decoder_forward.6} parent=11 // pred_fallthru
        _
      // Predicated region
      $region25: #{conv_decoder_forward.6} parent=11 // pred_check
        %p225 = pneg %p175
      $region26: #{conv_decoder_forward.6} parent=11 // pred_check_branch
        %227 = sbr.rel (%p225) target = $region28
      $region27: #{conv_decoder_forward.6} parent=11 // pred_region
        _
      $region28: #{conv_decoder_forward.6} parent=11 // pred_fallthru
        _
    $region12: #{conv_decoder_forward.6} parent=5 // pred_fallthru
      _
    %p228 = scmp.lt.s32.totalorder %s13, 2
    // Predicated region
    $region29: #{conv_decoder_forward.6} parent=5 // pred_check
      %p229 = pneg %p228
    $region30: #{conv_decoder_forward.6} parent=5 // pred_check_branch
      %231 = sbr.rel (%p229) target = $region32
    $region31: #{conv_decoder_forward.6} parent=5 // pred_region
      // Predicated region
      $region33: #{conv_decoder_forward.6} parent=31 // pred_check
        %p232 = pneg %p33
      $region34: #{conv_decoder_forward.6} parent=31 // pred_check_branch
        %234 = sbr.rel (%p232) target = $region36
      $region35: #{conv_decoder_forward.6} parent=31 // pred_region
        %p235 = scmp.lt.s32.totalorder %s13, 1
        %s236 = scalar_select %p235, %s13, 1
        %s237 = smul.addr %s236, 8
        %s238 = smul.addr %s237, 8
        %s239 = scalar_lea.vmem %s0, %s238
      $region36: #{conv_decoder_forward.6} parent=31 // pred_fallthru
        _
      // Predicated region
      $region37: #{conv_decoder_forward.6} parent=31 // pred_check
        %p240 = pneg %p101
      $region38: #{conv_decoder_forward.6} parent=31 // pred_check_branch
        %242 = sbr.rel (%p240) target = $region40
      $region39: #{conv_decoder_forward.6} parent=31 // pred_region
        %p243 = scmp.lt.s32.totalorder %s13, 1
        %s244 = scalar_select %p243, %s13, 1
        %s245 = scalar_lea.vmem %s3, %s244
      $region40: #{conv_decoder_forward.6} parent=31 // pred_fallthru
        _
      // Predicated region
      $region41: #{conv_decoder_forward.6} parent=31 // pred_check
        %p246 = pneg %p127
      $region42: #{conv_decoder_forward.6} parent=31 // pred_check_branch
        %248 = sbr.rel (%p246) target = $region44
      $region43: #{conv_decoder_forward.6} parent=31 // pred_region
        %p249 = scmp.lt.s32.totalorder %s13, 1
        %s250 = scalar_select %p249, %s13, 1
        %s251 = scalar_lea.vmem %s4, %s250
      $region44: #{conv_decoder_forward.6} parent=31 // pred_fallthru
        _
    $region32: #{conv_decoder_forward.6} parent=5 // pred_fallthru
      _
    %p252 = scmp.le.s32.totalorder 1, %s13
    %p253 = scmp.lt.s32.totalorder %s13, 3
    %p254 = pnand %p252, %p253
    %p255 = pneg %p254
    // Predicated region
    $region45: #{conv_decoder_forward.6} parent=5 // pred_check
      _
    $region46: #{conv_decoder_forward.6} parent=5 // pred_check_branch
      %257 = sbr.rel (%p254) target = $region48
    $region47: #{conv_decoder_forward.6} parent=5 // pred_region
      %s258 = ssub.s32 %s13, 1
      %p259 = scmp.lt.s32.totalorder %s18, 1
      %s260 = scalar_select %p259, %s18, 1
      %s261 = smul.addr %s260, 8
      %s262 = smul.addr %s261, 8
      %s263 = scalar_lea.vmem %s0, %s262
      %p264 = pneg %p39
      %p265 = pneg %p36
      %p266 = pneg %p60
      %p267 = pneg %p57
      %p268 = pneg %p81
      %p269 = pneg %p78
      %p270 = scmp.lt.s32.totalorder %s18, 1
      %s271 = scalar_select %p270, %s18, 1
      %s272 = scalar_lea.vmem %s3, %s271
      %p273 = pneg %p107
      %p274 = pneg %p104
      %p275 = scmp.lt.s32.totalorder %s18, 1
      %s276 = scalar_select %p275, %s18, 1
      %s277 = scalar_lea.vmem %s4, %s276
      %p278 = pneg %p133
      %p279 = pneg %p130
      %p280 = pneg %p154
      %p281 = pneg %p151
      %p282 = pneg %p175
      %p283 = pneg %p172
      %p284 = pneg %p201
      %p285 = pneg %p198
      %p286 = scmp.lt.s32.totalorder %s18, 1
      %s287 = scalar_select %p286, %s18, 1
      %s288 = smul.addr %s287, 16
      %s289 = smul.addr %s288, 8
      %s290 = scalar_lea.vmem %s7, %s289
      %p291 = scmp.lt.s32.totalorder %s18, 1
      %s292 = scalar_select %p291, %s18, 1
      %s293 = smul.addr %s292, 8
      %s294 = smul.addr %s293, 8
      %s295 = scalar_lea.vmem %s0, %s294
      %p296 = scmp.lt.s32.totalorder %s18, 1
      %s297 = scalar_select %p296, %s18, 1
      %s298 = scalar_lea.vmem %s3, %s297
      %p299 = scmp.lt.s32.totalorder %s18, 1
      %s300 = scalar_select %p299, %s18, 1
      %s301 = scalar_lea.vmem %s4, %s300
      %p302 = scmp.lt.s32.totalorder %s18, 1
      %s303 = scalar_select %p302, %s18, 1
      %s304 = smul.addr %s303, 16
      %s305 = smul.addr %s304, 8
      %s306 = scalar_lea.vmem %s7, %s305
      %v307 = vld [vmem:[%s295] sm:$0xff]
      %v308 = vld [vmem:[%s295 + $0x8] sm:$0xff]
      %v309 = vld [vmem:[%s295 + $0x10] sm:$0xff]
      %v310 = vld [vmem:[%s295 + $0x18] sm:$0xff]
      %v311 = vld [vmem:[%s295 + $0x20] sm:$0xff]
      %v312 = vld [vmem:[%s295 + $0x28] sm:$0xff]
      %v313 = vld [vmem:[%s295 + $0x30] sm:$0xff]
      %v314 = vld [vmem:[%s295 + $0x38] sm:$0xff]
      %v323 = vrot.slane %v307, 7
      %v324 = vrot.slane %v308, 7
      %v325 = vrot.slane %v309, 7
      %v326 = vrot.slane %v310, 7
      %v327 = vrot.slane %v311, 7
      %v328 = vrot.slane %v312, 7
      %v329 = vrot.slane %v313, 7
      %v330 = vrot.slane %v314, 7
      %vm339 = vcmask 1040384
      %v340 = vsel %vm339, 0.0, %v323
      %v341 = vsel %vm339, 0.0, %v324
      %v342 = vsel %vm339, 0.0, %v325
      %v343 = vsel %vm339, 0.0, %v326
      %v344 = vsel %vm339, 0.0, %v327
      %v345 = vsel %vm339, 0.0, %v328
      %v346 = vsel %vm339, 0.0, %v329
      %v347 = vsel %vm339, 0.0, %v330
      %v348 = vrot.slane %v307, 1
      %v349 = vrot.slane %v308, 1
      %v350 = vrot.slane %v309, 1
      %v351 = vrot.slane %v310, 1
      %v352 = vrot.slane %v311, 1
      %v353 = vrot.slane %v312, 1
      %v354 = vrot.slane %v313, 1
      %v355 = vrot.slane %v314, 1
      %vm364 = vcmask 1046528
      %v365 = vsel %vm364, %v348, 0.0
      %v366 = vsel %vm364, %v349, 0.0
      %v367 = vsel %vm364, %v350, 0.0
      %v368 = vsel %vm364, %v351, 0.0
      %v369 = vsel %vm364, %v352, 0.0
      %v370 = vsel %vm364, %v353, 0.0
      %v371 = vsel %vm364, %v354, 0.0
      %v372 = vsel %vm364, %v355, 0.0
      %373 = vrot.lane.b32.xlu0 %v307, 64
      %v374 = vpop.permute.xlu0 %373
      %375 = vrot.lane.b32.xlu0 %v308, 64
      %v376 = vpop.permute.xlu0 %375
      %377 = vrot.lane.b32.xlu0 %v309, 64
      %v378 = vpop.permute.xlu0 %377
      %379 = vrot.lane.b32.xlu0 %v310, 64
      %v380 = vpop.permute.xlu0 %379
      %381 = vrot.lane.b32.xlu0 %v311, 64
      %v382 = vpop.permute.xlu0 %381
      %383 = vrot.lane.b32.xlu0 %v312, 64
      %v384 = vpop.permute.xlu0 %383
      %385 = vrot.lane.b32.xlu0 %v313, 64
      %v386 = vpop.permute.xlu0 %385
      %387 = vrot.lane.b32.xlu0 %v314, 64
      %v388 = vpop.permute.xlu0 %387
      %vm397 = vcmask 523264
      %v398 = vsel %vm397, %v340, %v374
      %v399 = vsel %vm397, %v341, %v376
      %v400 = vsel %vm397, %v342, %v378
      %v401 = vsel %vm397, %v343, %v380
      %v402 = vsel %vm397, %v344, %v382
      %v403 = vsel %vm397, %v345, %v384
      %v404 = vsel %vm397, %v346, %v386
      %v405 = vsel %vm397, %v347, %v388
      %v406 = vld [vmem:[%s1] sm:$0xff]
      %v407 = vld [vmem:[%s1 + $0x8] sm:$0xff]
      %v408 = vld [vmem:[%s1 + $0x10] sm:$0xff]
      %v409 = vld [vmem:[%s1 + $0x18] sm:$0xff]
      %v410 = vld [vmem:[%s1 + $0x20] sm:$0xff]
      %v411 = vld [vmem:[%s1 + $0x28] sm:$0xff]
      %v412 = vld [vmem:[%s1 + $0x30] sm:$0xff]
      %v413 = vld [vmem:[%s1 + $0x38] sm:$0xff]
      %v414 = vld [vmem:[%s1 + $0x40] sm:$0xff]
      %v415 = vld [vmem:[%s1 + $0x48] sm:$0xff]
      %v416 = vld [vmem:[%s1 + $0x50] sm:$0xff]
      %v417 = vld [vmem:[%s1 + $0x58] sm:$0xff]
      %v418 = vld [vmem:[%s1 + $0x60] sm:$0xff]
      %v419 = vld [vmem:[%s1 + $0x68] sm:$0xff]
      %v420 = vld [vmem:[%s1 + $0x70] sm:$0xff]
      %v421 = vld [vmem:[%s1 + $0x78] sm:$0xff]
      %v422 = vld [vmem:[%s1 + $0x80] sm:$0xff]
      %v423 = vld [vmem:[%s1 + $0x88] sm:$0xff]
      %v424 = vld [vmem:[%s1 + $0x90] sm:$0xff]
      %v425 = vld [vmem:[%s1 + $0x98] sm:$0xff]
      %v426 = vld [vmem:[%s1 + $0xa0] sm:$0xff]
      %v427 = vld [vmem:[%s1 + $0xa8] sm:$0xff]
      %v428 = vld [vmem:[%s1 + $0xb0] sm:$0xff]
      %v429 = vld [vmem:[%s1 + $0xb8] sm:$0xff]
      %v430 = vld [vmem:[%s1 + $0xc0] sm:$0xff]
      %v431 = vld [vmem:[%s1 + $0xc8] sm:$0xff]
      %v432 = vld [vmem:[%s1 + $0xd0] sm:$0xff]
      %v433 = vld [vmem:[%s1 + $0xd8] sm:$0xff]
      %v434 = vld [vmem:[%s1 + $0xe0] sm:$0xff]
      %v435 = vld [vmem:[%s1 + $0xe8] sm:$0xff]
      %v436 = vld [vmem:[%s1 + $0xf0] sm:$0xff]
      %v437 = vld [vmem:[%s1 + $0xf8] sm:$0xff]
      %v438 = vld [vmem:[%s1 + $0x100] sm:$0xff]
      %v439 = vld [vmem:[%s1 + $0x108] sm:$0xff]
      %v440 = vld [vmem:[%s1 + $0x110] sm:$0xff]
      %v441 = vld [vmem:[%s1 + $0x118] sm:$0xff]
      %v442 = vld [vmem:[%s1 + $0x120] sm:$0xff]
      %v443 = vld [vmem:[%s1 + $0x128] sm:$0xff]
      %v444 = vld [vmem:[%s1 + $0x130] sm:$0xff]
      %v445 = vld [vmem:[%s1 + $0x138] sm:$0xff]
      %v446 = vld [vmem:[%s1 + $0x140] sm:$0xff]
      %v447 = vld [vmem:[%s1 + $0x148] sm:$0xff]
      %v448 = vld [vmem:[%s1 + $0x150] sm:$0xff]
      %v449 = vld [vmem:[%s1 + $0x158] sm:$0xff]
      %v450 = vld [vmem:[%s1 + $0x160] sm:$0xff]
      %v451 = vld [vmem:[%s1 + $0x168] sm:$0xff]
      %v452 = vld [vmem:[%s1 + $0x170] sm:$0xff]
      %v453 = vld [vmem:[%s1 + $0x178] sm:$0xff]
      %v455 = vsel %vm397, %v365, 0
      %v458 = vsel %vm397, %v366, 0
      %v461 = vsel %vm397, %v367, 0
      %v464 = vsel %vm397, %v368, 0
      %v467 = vsel %vm397, %v369, 0
      %v470 = vsel %vm397, %v370, 0
      %v473 = vsel %vm397, %v371, 0
      %v476 = vsel %vm397, %v372, 0
      %478 = vmatprep.subr.mxu0 %v437
      %479 = vmatpush1.msra.mxu0 %v436
      %480 = vmatprep.subr.mxu0 %v435
      %481 = vmatpush1.msra.mxu0 %v434
      %482 = vmatprep.subr.mxu0 %v433
      %483 = vmatpush1.msra.mxu0 %v432
      %484 = vmatprep.subr.mxu0 %v431
      %485 = vmatpush1.msra.mxu0 %v430
      %486 = vmatprep.subr.mxu0 %v429
      %487 = vmatpush1.msra.mxu0 %v428
      %488 = vmatprep.subr.mxu0 %v427
      %489 = vmatpush1.msra.mxu0 %v426
      %490 = vmatprep.subr.mxu0 %v425
      %491 = vmatpush1.msra.mxu0 %v424
      %492 = vmatprep.subr.mxu0 %v423
      %493 = vmatpush1.msra.mxu0 %v422
      %494 = vmatprep.subr.mxu0 %v421
      %495 = vmatpush1.msra.mxu0 %v420
      %496 = vmatprep.subr.mxu0 %v419
      %497 = vmatpush1.msra.mxu0 %v418
      %498 = vmatprep.subr.mxu0 %v417
      %499 = vmatpush1.msra.mxu0 %v416
      %500 = vmatprep.subr.mxu0 %v415
      %501 = vmatpush1.msra.mxu0 %v414
      %502 = vmatprep.subr.mxu0 %v413
      %503 = vmatpush1.msra.mxu0 %v412
      %504 = vmatprep.subr.mxu0 %v411
      %505 = vmatpush1.msra.mxu0 %v410
      %506 = vmatprep.subr.mxu0 %v409
      %507 = vmatpush1.msra.mxu0 %v408
      %508 = vmatprep.subr.mxu0 %v407
      %509 = vmatpush1.msra.mxu0 %v406
      %510 = vmatprep.subr.mxu0 0.0
      %511 = vmatpush2.msra.mxu0 0.0
      %512 = vmatprep.subr.mxu0 0.0
      %513 = vmatpush2.msra.mxu0 0.0
      %514 = vmatprep.subr.mxu0 0.0
      %515 = vmatpush2.msra.mxu0 0.0
      %516 = vmatprep.subr.mxu0 0.0
      %517 = vmatpush2.msra.mxu0 0.0
      %518 = vmatprep.subr.mxu0 0.0
      %519 = vmatpush2.msra.mxu0 0.0
      %520 = vmatprep.subr.mxu0 0.0
      %521 = vmatpush2.msra.mxu0 0.0
      %522 = vmatprep.subr.mxu0 0.0
      %523 = vmatpush2.msra.mxu0 0.0
      %524 = vmatprep.subr.mxu0 0.0
      %525 = vmatpush2.msra.mxu0 0.0
      %526 = vmatprep.subr.mxu0 %v453
      %527 = vmatpush2.msra.mxu0 %v452
      %528 = vmatprep.subr.mxu0 %v451
      %529 = vmatpush2.msra.mxu0 %v450
      %530 = vmatprep.subr.mxu0 %v449
      %531 = vmatpush2.msra.mxu0 %v448
      %532 = vmatprep.subr.mxu0 %v447
      %533 = vmatpush2.msra.mxu0 %v446
      %534 = vmatprep.subr.mxu0 %v445
      %535 = vmatpush2.msra.mxu0 %v444
      %536 = vmatprep.subr.mxu0 %v443
      %537 = vmatpush2.msra.mxu0 %v442
      %538 = vmatprep.subr.mxu0 %v441
      %539 = vmatpush2.msra.mxu0 %v440
      %540 = vmatprep.subr.mxu0 %v439
      %541 = vmatpush2.msra.mxu0 %v438
      %542 = vmatprep.mubr.f32.mxu0 %v455
      %543 = vmatmul.mubr.f32.gmra.mxu0 %v398
      %v544 = vpop.f32.mrf.mxu0
      %v545 = vadd.f32 0.0, %v544
      %v546 = vpop.f32.mrf.mxu0
      %547 = vmatprep.mubr.f32.mxu0 %v458
      %548 = vmatmul.mubr.f32.gmra.mxu0 %v399
      %v549 = vpop.f32.mrf.mxu0
      %v550 = vadd.f32 0.0, %v549
      %v551 = vpop.f32.mrf.mxu0
      %v552 = vadd.f32 0.0, %v551
      %553 = vmatprep.mubr.f32.mxu0 %v461
      %554 = vmatmul.mubr.f32.gmra.mxu0 %v400
      %v555 = vpop.f32.mrf.mxu0
      %v556 = vadd.f32 0.0, %v555
      %v557 = vpop.f32.mrf.mxu0
      %v558 = vadd.f32 0.0, %v557
      %559 = vmatprep.mubr.f32.mxu0 %v464
      %560 = vmatmul.mubr.f32.gmra.mxu0 %v401
      %v561 = vpop.f32.mrf.mxu0
      %v562 = vadd.f32 0.0, %v561
      %v563 = vpop.f32.mrf.mxu0
      %v564 = vadd.f32 0.0, %v563
      %565 = vmatprep.mubr.f32.mxu0 %v467
      %566 = vmatmul.mubr.f32.gmra.mxu0 %v402
      %v567 = vpop.f32.mrf.mxu0
      %v568 = vadd.f32 0.0, %v567
      %v569 = vpop.f32.mrf.mxu0
      %v570 = vadd.f32 0.0, %v569
      %571 = vmatprep.mubr.f32.mxu0 %v470
      %572 = vmatmul.mubr.f32.gmra.mxu0 %v403
      %v573 = vpop.f32.mrf.mxu0
      %v574 = vadd.f32 0.0, %v573
      %v575 = vpop.f32.mrf.mxu0
      %v576 = vadd.f32 0.0, %v575
      %577 = vmatprep.mubr.f32.mxu0 %v473
      %578 = vmatmul.mubr.f32.gmra.mxu0 %v404
      %v579 = vpop.f32.mrf.mxu0
      %v580 = vadd.f32 0.0, %v579
      %v581 = vpop.f32.mrf.mxu0
      %v582 = vadd.f32 0.0, %v581
      %583 = vmatprep.mubr.f32.mxu0 %v476
      %584 = vmatmul.mubr.f32.gmra.mxu0 %v405
      %v585 = vpop.f32.mrf.mxu0
      %v586 = vadd.f32 0.0, %v585
      %v587 = vpop.f32.mrf.mxu0
      %v588 = vadd.f32 0.0, %v587
      %589 = vdwg.mxu0
      %598 = vrot.lane.b32.xlu0 0.0, 64
      %v599 = vpop.permute.xlu0 %598
      %600 = vrot.lane.b32.xlu0 %v545, 64
      %v601 = vpop.permute.xlu0 %600
      %602 = vrot.lane.b32.xlu0 %v550, 64
      %v603 = vpop.permute.xlu0 %602
      %604 = vrot.lane.b32.xlu0 %v556, 64
      %v605 = vpop.permute.xlu0 %604
      %606 = vrot.lane.b32.xlu0 %v562, 64
      %v607 = vpop.permute.xlu0 %606
      %608 = vrot.lane.b32.xlu0 %v568, 64
      %v609 = vpop.permute.xlu0 %608
      %610 = vrot.lane.b32.xlu0 %v574, 64
      %v611 = vpop.permute.xlu0 %610
      %612 = vrot.lane.b32.xlu0 %v580, 64
      %v613 = vpop.permute.xlu0 %612
      %v622 = vadd.f32 %v545, %v599
      %v623 = vadd.f32 %v550, %v601
      %v624 = vadd.f32 %v556, %v603
      %v625 = vadd.f32 %v562, %v605
      %v626 = vadd.f32 %v568, %v607
      %v627 = vadd.f32 %v574, %v609
      %v628 = vadd.f32 %v580, %v611
      %v629 = vadd.f32 %v586, %v613
      %637 = vrot.lane.b32.xlu0 %v552, 64
      %v638 = vpop.permute.xlu0 %637
      %639 = vrot.lane.b32.xlu0 %v558, 64
      %v640 = vpop.permute.xlu0 %639
      %641 = vrot.lane.b32.xlu0 %v564, 64
      %v642 = vpop.permute.xlu0 %641
      %643 = vrot.lane.b32.xlu0 %v570, 64
      %v644 = vpop.permute.xlu0 %643
      %645 = vrot.lane.b32.xlu0 %v576, 64
      %v646 = vpop.permute.xlu0 %645
      %647 = vrot.lane.b32.xlu0 %v582, 64
      %v648 = vpop.permute.xlu0 %647
      %649 = vrot.lane.b32.xlu0 %v588, 64
      %v650 = vpop.permute.xlu0 %649
      %v658 = vadd.f32 %v622, %v638
      %v659 = vadd.f32 %v623, %v640
      %v660 = vadd.f32 %v624, %v642
      %v661 = vadd.f32 %v625, %v644
      %v662 = vadd.f32 %v626, %v646
      %v663 = vadd.f32 %v627, %v648
      %v664 = vadd.f32 %v628, %v650
      %v665 = vadd.f32 %v629, %v599
      %v666 = vld [vmem:[%s2] sm:$0x1]
      %v668 = vlaneseq
      %v669 = vshrl.u32 %v668, 7
      %v670 = vsub.s32 0, %v669
      %v671 = vrot.slane %v666, %v670
      %672 = vrot.lane.b32.xlu0 %v671, 64
      %v673 = vpop.permute.xlu0 %672
      %v675 = vadd.f32 %v658, %v673
      %v676 = vadd.f32 %v659, %v673
      %v677 = vadd.f32 %v660, %v673
      %v678 = vadd.f32 %v661, %v673
      %v679 = vadd.f32 %v662, %v673
      %v680 = vadd.f32 %v663, %v673
      %v681 = vadd.f32 %v664, %v673
      %v682 = vadd.f32 %v665, %v673
      %v683 = vld [vmem:[%s5] sm:$0xff]
      %v684 = vld [vmem:[%s5 + $0x8] sm:$0xff]
      %v685 = vld [vmem:[%s5 + $0x10] sm:$0xff]
      %v686 = vld [vmem:[%s5 + $0x18] sm:$0xff]
      %v687 = vld [vmem:[%s5 + $0x20] sm:$0xff]
      %v688 = vld [vmem:[%s5 + $0x28] sm:$0xff]
      %v689 = vld [vmem:[%s5 + $0x30] sm:$0xff]
      %v690 = vld [vmem:[%s5 + $0x38] sm:$0xff]
      %v691 = vld [vmem:[%s6] sm:$0xff]
      %v692 = vld [vmem:[%s6 + $0x8] sm:$0xff]
      %v693 = vld [vmem:[%s6 + $0x10] sm:$0xff]
      %v694 = vld [vmem:[%s6 + $0x18] sm:$0xff]
      %vm695 = vcmask 1048064
      %v696 = vsel %vm695, %v675, 0.0
      %v697 = vsel %vm695, %v676, 0.0
      %v698 = vadd.f32 %v696, %v697
      %v699 = vsel %vm695, %v677, 0.0
      %v700 = vadd.f32 %v698, %v699
      %v701 = vsel %vm695, %v678, 0.0
      %v702 = vadd.f32 %v700, %v701
      %v703 = vsel %vm695, %v679, 0.0
      %v704 = vadd.f32 %v702, %v703
      %v705 = vsel %vm695, %v680, 0.0
      %v706 = vadd.f32 %v704, %v705
      %v707 = vsel %vm695, %v681, 0.0
      %v708 = vadd.f32 %v706, %v707
      %v709 = vsel %vm695, %v682, 0.0
      %v710 = vadd.f32 %v708, %v709
      %v711 = vrot.slane %v710, 4
      %v712 = vadd.f32 %v710, %v711
      %v713 = vrot.slane %v712, 2
      %v714 = vadd.f32 %v712, %v713
      %v715 = vrot.slane %v714, 1
      %v716 = vadd.f32 %v714, %v715
      %718 = vrot.lane.b32.xlu0 %v716, 64
      %v719 = vpop.permute.xlu0 %718
      %v720 = vsel %vm397, %v719, 0
      %722 = vmatprep.subr.mxu0 0.0
      %723 = vmatpush1.msra.mxu0 0.0
      %724 = vmatprep.subr.mxu0 0.0
      %725 = vmatpush1.msra.mxu0 0.0
      %726 = vmatprep.subr.mxu0 0.0
      %727 = vmatpush1.msra.mxu0 0.0
      %728 = vmatprep.subr.mxu0 0.0
      %729 = vmatpush1.msra.mxu0 0.0
      %730 = vmatprep.subr.mxu0 0.0
      %731 = vmatpush1.msra.mxu0 0.0
      %732 = vmatprep.subr.mxu0 0.0
      %733 = vmatpush1.msra.mxu0 0.0
      %734 = vmatprep.subr.mxu0 0.0
      %735 = vmatpush1.msra.mxu0 0.0
      %736 = vmatprep.subr.mxu0 0.0
      %737 = vmatpush1.msra.mxu0 0.0
      %738 = vmatprep.subr.mxu0 0.0
      %739 = vmatpush1.msra.mxu0 %v690
      %740 = vmatprep.subr.mxu0 0.0
      %741 = vmatpush1.msra.mxu0 %v689
      %742 = vmatprep.subr.mxu0 0.0
      %743 = vmatpush1.msra.mxu0 %v688
      %744 = vmatprep.subr.mxu0 0.0
      %745 = vmatpush1.msra.mxu0 %v687
      %746 = vmatprep.subr.mxu0 0.0
      %747 = vmatpush1.msra.mxu0 %v686
      %748 = vmatprep.subr.mxu0 0.0
      %749 = vmatpush1.msra.mxu0 %v685
      %750 = vmatprep.subr.mxu0 0.0
      %751 = vmatpush1.msra.mxu0 %v684
      %752 = vmatprep.subr.mxu0 0.0
      %753 = vmatpush1.msra.mxu0 %v683
      %754 = vmatprep.subr.mxu0 0.0
      %755 = vmatpush2.msra.mxu0 0.0
      %756 = vmatprep.subr.mxu0 0.0
      %757 = vmatpush2.msra.mxu0 0.0
      %758 = vmatprep.subr.mxu0 0.0
      %759 = vmatpush2.msra.mxu0 0.0
      %760 = vmatprep.subr.mxu0 0.0
      %761 = vmatpush2.msra.mxu0 0.0
      %762 = vmatprep.subr.mxu0 0.0
      %763 = vmatpush2.msra.mxu0 0.0
      %764 = vmatprep.subr.mxu0 0.0
      %765 = vmatpush2.msra.mxu0 0.0
      %766 = vmatprep.subr.mxu0 0.0
      %767 = vmatpush2.msra.mxu0 0.0
      %768 = vmatprep.subr.mxu0 0.0
      %769 = vmatpush2.msra.mxu0 0.0
      %770 = vmatprep.subr.mxu0 0.0
      %771 = vmatpush2.msra.mxu0 0.0
      %772 = vmatprep.subr.mxu0 0.0
      %773 = vmatpush2.msra.mxu0 0.0
      %774 = vmatprep.subr.mxu0 0.0
      %775 = vmatpush2.msra.mxu0 0.0
      %776 = vmatprep.subr.mxu0 0.0
      %777 = vmatpush2.msra.mxu0 0.0
      %778 = vmatprep.subr.mxu0 0.0
      %779 = vmatpush2.msra.mxu0 0.0
      %780 = vmatprep.subr.mxu0 0.0
      %781 = vmatpush2.msra.mxu0 0.0
      %782 = vmatprep.subr.mxu0 0.0
      %783 = vmatpush2.msra.mxu0 0.0
      %784 = vmatprep.subr.mxu0 0.0
      %785 = vmatpush2.msra.mxu0 0.0
      %786 = vmatprep.mubr.f32.mxu0 0.0
      %787 = vmatmul.mubr.f32.gmra.mxu0 %v720
      %v788 = vpop.f32.mrf.mxu0
      %v789 = vadd.f32 0.0, %v788
      %v790 = vpop.f32.mrf.mxu0
      %791 = vdwg.mxu0
      %v792 = vmul.f32 %v789, 0.0078125
      %vm793 = vcmask 261120
      %v795 = vsel %vm793, %v792, 0
      %797 = vmatprep.subr.mxu0 0.0
      %798 = vmatpush1.msra.mxu0 0.0
      %799 = vmatprep.subr.mxu0 0.0
      %800 = vmatpush1.msra.mxu0 0.0
      %801 = vmatprep.subr.mxu0 0.0
      %802 = vmatpush1.msra.mxu0 0.0
      %803 = vmatprep.subr.mxu0 0.0
      %804 = vmatpush1.msra.mxu0 0.0
      %805 = vmatprep.subr.mxu0 0.0
      %806 = vmatpush1.msra.mxu0 0.0
      %807 = vmatprep.subr.mxu0 0.0
      %808 = vmatpush1.msra.mxu0 0.0
      %809 = vmatprep.subr.mxu0 0.0
      %810 = vmatpush1.msra.mxu0 0.0
      %811 = vmatprep.subr.mxu0 0.0
      %812 = vmatpush1.msra.mxu0 0.0
      %813 = vmatprep.subr.mxu0 0.0
      %814 = vmatpush1.msra.mxu0 0.0
      %815 = vmatprep.subr.mxu0 0.0
      %816 = vmatpush1.msra.mxu0 0.0
      %817 = vmatprep.subr.mxu0 0.0
      %818 = vmatpush1.msra.mxu0 0.0
      %819 = vmatprep.subr.mxu0 0.0
      %820 = vmatpush1.msra.mxu0 0.0
      %821 = vmatprep.subr.mxu0 0.0
      %822 = vmatpush1.msra.mxu0 %v694
      %823 = vmatprep.subr.mxu0 0.0
      %824 = vmatpush1.msra.mxu0 %v693
      %825 = vmatprep.subr.mxu0 0.0
      %826 = vmatpush1.msra.mxu0 %v692
      %827 = vmatprep.subr.mxu0 0.0
      %828 = vmatpush1.msra.mxu0 %v691
      %829 = vmatprep.subr.mxu0 0.0
      %830 = vmatpush2.msra.mxu0 0.0
      %831 = vmatprep.subr.mxu0 0.0
      %832 = vmatpush2.msra.mxu0 0.0
      %833 = vmatprep.subr.mxu0 0.0
      %834 = vmatpush2.msra.mxu0 0.0
      %835 = vmatprep.subr.mxu0 0.0
      %836 = vmatpush2.msra.mxu0 0.0
      %837 = vmatprep.subr.mxu0 0.0
      %838 = vmatpush2.msra.mxu0 0.0
      %839 = vmatprep.subr.mxu0 0.0
      %840 = vmatpush2.msra.mxu0 0.0
      %841 = vmatprep.subr.mxu0 0.0
      %842 = vmatpush2.msra.mxu0 0.0
      %843 = vmatprep.subr.mxu0 0.0
      %844 = vmatpush2.msra.mxu0 0.0
      %845 = vmatprep.subr.mxu0 0.0
      %846 = vmatpush2.msra.mxu0 0.0
      %847 = vmatprep.subr.mxu0 0.0
      %848 = vmatpush2.msra.mxu0 0.0
      %849 = vmatprep.subr.mxu0 0.0
      %850 = vmatpush2.msra.mxu0 0.0
      %851 = vmatprep.subr.mxu0 0.0
      %852 = vmatpush2.msra.mxu0 0.0
      %853 = vmatprep.subr.mxu0 0.0
      %854 = vmatpush2.msra.mxu0 0.0
      %855 = vmatprep.subr.mxu0 0.0
      %856 = vmatpush2.msra.mxu0 0.0
      %857 = vmatprep.subr.mxu0 0.0
      %858 = vmatpush2.msra.mxu0 0.0
      %859 = vmatprep.subr.mxu0 0.0
      %860 = vmatpush2.msra.mxu0 0.0
      %861 = vmatprep.mubr.f32.mxu0 0.0
      %862 = vmatmul.mubr.f32.gmra.mxu0 %v795
      %v863 = vpop.f32.mrf.mxu0
      %v864 = vadd.f32 0.0, %v863
      %v865 = vpop.f32.mrf.mxu0
      %866 = vdwg.mxu0
      %v867 = vlaneseq
      %v868 = vshrl.u32 %v867, 7
      %v869 = vsub.s32 0, %v868
      %v870 = vrot.slane %v864, %v869
      %872 = vrot.lane.b32.xlu0 %v870, 64
      %v873 = vpop.permute.xlu0 %872
      %v875 = vsub.f32 %v675, %v873
      %v876 = vsub.f32 %v676, %v873
      %v877 = vsub.f32 %v677, %v873
      %v878 = vsub.f32 %v678, %v873
      %v879 = vsub.f32 %v679, %v873
      %v880 = vsub.f32 %v680, %v873
      %v881 = vsub.f32 %v681, %v873
      %v882 = vsub.f32 %v682, %v873
      %v883 = vmul.f32 %v875, %v875
      %v884 = vmul.f32 %v876, %v876
      %v885 = vmul.f32 %v877, %v877
      %v886 = vmul.f32 %v878, %v878
      %v887 = vmul.f32 %v879, %v879
      %v888 = vmul.f32 %v880, %v880
      %v889 = vmul.f32 %v881, %v881
      %v890 = vmul.f32 %v882, %v882
      %v891 = vsel %vm695, %v883, 0.0
      %v892 = vsel %vm695, %v884, 0.0
      %v893 = vadd.f32 %v891, %v892
      %v894 = vsel %vm695, %v885, 0.0
      %v895 = vadd.f32 %v893, %v894
      %v896 = vsel %vm695, %v886, 0.0
      %v897 = vadd.f32 %v895, %v896
      %v898 = vsel %vm695, %v887, 0.0
      %v899 = vadd.f32 %v897, %v898
      %v900 = vsel %vm695, %v888, 0.0
      %v901 = vadd.f32 %v899, %v900
      %v902 = vsel %vm695, %v889, 0.0
      %v903 = vadd.f32 %v901, %v902
      %v904 = vsel %vm695, %v890, 0.0
      %v905 = vadd.f32 %v903, %v904
      %v906 = vrot.slane %v905, 4
      %v907 = vadd.f32 %v905, %v906
      %v908 = vrot.slane %v907, 2
      %v909 = vadd.f32 %v907, %v908
      %v910 = vrot.slane %v909, 1
      %v911 = vadd.f32 %v909, %v910
      %913 = vrot.lane.b32.xlu0 %v911, 64
      %v914 = vpop.permute.xlu0 %913
      %v915 = vsel %vm397, %v914, 0
      %917 = vmatprep.subr.mxu0 0.0
      %918 = vmatpush1.msra.mxu0 0.0
      %919 = vmatprep.subr.mxu0 0.0
      %920 = vmatpush1.msra.mxu0 0.0
      %921 = vmatprep.subr.mxu0 0.0
      %922 = vmatpush1.msra.mxu0 0.0
      %923 = vmatprep.subr.mxu0 0.0
      %924 = vmatpush1.msra.mxu0 0.0
      %925 = vmatprep.subr.mxu0 0.0
      %926 = vmatpush1.msra.mxu0 0.0
      %927 = vmatprep.subr.mxu0 0.0
      %928 = vmatpush1.msra.mxu0 0.0
      %929 = vmatprep.subr.mxu0 0.0
      %930 = vmatpush1.msra.mxu0 0.0
      %931 = vmatprep.subr.mxu0 0.0
      %932 = vmatpush1.msra.mxu0 0.0
      %933 = vmatprep.subr.mxu0 0.0
      %934 = vmatpush1.msra.mxu0 %v690
      %935 = vmatprep.subr.mxu0 0.0
      %936 = vmatpush1.msra.mxu0 %v689
      %937 = vmatprep.subr.mxu0 0.0
      %938 = vmatpush1.msra.mxu0 %v688
      %939 = vmatprep.subr.mxu0 0.0
      %940 = vmatpush1.msra.mxu0 %v687
      %941 = vmatprep.subr.mxu0 0.0
      %942 = vmatpush1.msra.mxu0 %v686
      %943 = vmatprep.subr.mxu0 0.0
      %944 = vmatpush1.msra.mxu0 %v685
      %945 = vmatprep.subr.mxu0 0.0
      %946 = vmatpush1.msra.mxu0 %v684
      %947 = vmatprep.subr.mxu0 0.0
      %948 = vmatpush1.msra.mxu0 %v683
      %949 = vmatprep.subr.mxu0 0.0
      %950 = vmatpush2.msra.mxu0 0.0
      %951 = vmatprep.subr.mxu0 0.0
      %952 = vmatpush2.msra.mxu0 0.0
      %953 = vmatprep.subr.mxu0 0.0
      %954 = vmatpush2.msra.mxu0 0.0
      %955 = vmatprep.subr.mxu0 0.0
      %956 = vmatpush2.msra.mxu0 0.0
      %957 = vmatprep.subr.mxu0 0.0
      %958 = vmatpush2.msra.mxu0 0.0
      %959 = vmatprep.subr.mxu0 0.0
      %960 = vmatpush2.msra.mxu0 0.0
      %961 = vmatprep.subr.mxu0 0.0
      %962 = vmatpush2.msra.mxu0 0.0
      %963 = vmatprep.subr.mxu0 0.0
      %964 = vmatpush2.msra.mxu0 0.0
      %965 = vmatprep.subr.mxu0 0.0
      %966 = vmatpush2.msra.mxu0 0.0
      %967 = vmatprep.subr.mxu0 0.0
      %968 = vmatpush2.msra.mxu0 0.0
      %969 = vmatprep.subr.mxu0 0.0
      %970 = vmatpush2.msra.mxu0 0.0
      %971 = vmatprep.subr.mxu0 0.0
      %972 = vmatpush2.msra.mxu0 0.0
      %973 = vmatprep.subr.mxu0 0.0
      %974 = vmatpush2.msra.mxu0 0.0
      %975 = vmatprep.subr.mxu0 0.0
      %976 = vmatpush2.msra.mxu0 0.0
      %977 = vmatprep.subr.mxu0 0.0
      %978 = vmatpush2.msra.mxu0 0.0
      %979 = vmatprep.subr.mxu0 0.0
      %980 = vmatpush2.msra.mxu0 0.0
      %981 = vmatprep.mubr.f32.mxu0 0.0
      %982 = vmatmul.mubr.f32.gmra.mxu0 %v915
      %v983 = vpop.f32.mrf.mxu0
      %v984 = vadd.f32 0.0, %v983
      %v985 = vpop.f32.mrf.mxu0
      %986 = vdwg.mxu0
      %v987 = vmul.f32 %v984, 0.0078125
      %v988 = vld [vmem:[%s298] sm:$0x1]
      %v990 = vsel %vm793, %v987, 0
      %992 = vmatprep.subr.mxu0 0.0
      %993 = vmatpush1.msra.mxu0 0.0
      %994 = vmatprep.subr.mxu0 0.0
      %995 = vmatpush1.msra.mxu0 0.0
      %996 = vmatprep.subr.mxu0 0.0
      %997 = vmatpush1.msra.mxu0 0.0
      %998 = vmatprep.subr.mxu0 0.0
      %999 = vmatpush1.msra.mxu0 0.0
      %1000 = vmatprep.subr.mxu0 0.0
      %1001 = vmatpush1.msra.mxu0 0.0
      %1002 = vmatprep.subr.mxu0 0.0
      %1003 = vmatpush1.msra.mxu0 0.0
      %1004 = vmatprep.subr.mxu0 0.0
      %1005 = vmatpush1.msra.mxu0 0.0
      %1006 = vmatprep.subr.mxu0 0.0
      %1007 = vmatpush1.msra.mxu0 0.0
      %1008 = vmatprep.subr.mxu0 0.0
      %1009 = vmatpush1.msra.mxu0 0.0
      %1010 = vmatprep.subr.mxu0 0.0
      %1011 = vmatpush1.msra.mxu0 0.0
      %1012 = vmatprep.subr.mxu0 0.0
      %1013 = vmatpush1.msra.mxu0 0.0
      %1014 = vmatprep.subr.mxu0 0.0
      %1015 = vmatpush1.msra.mxu0 0.0
      %1016 = vmatprep.subr.mxu0 0.0
      %1017 = vmatpush1.msra.mxu0 %v694
      %1018 = vmatprep.subr.mxu0 0.0
      %1019 = vmatpush1.msra.mxu0 %v693
      %1020 = vmatprep.subr.mxu0 0.0
      %1021 = vmatpush1.msra.mxu0 %v692
      %1022 = vmatprep.subr.mxu0 0.0
      %1023 = vmatpush1.msra.mxu0 %v691
      %1024 = vmatprep.subr.mxu0 0.0
      %1025 = vmatpush2.msra.mxu0 0.0
      %1026 = vmatprep.subr.mxu0 0.0
      %1027 = vmatpush2.msra.mxu0 0.0
      %1028 = vmatprep.subr.mxu0 0.0
      %1029 = vmatpush2.msra.mxu0 0.0
      %1030 = vmatprep.subr.mxu0 0.0
      %1031 = vmatpush2.msra.mxu0 0.0
      %1032 = vmatprep.subr.mxu0 0.0
      %1033 = vmatpush2.msra.mxu0 0.0
      %1034 = vmatprep.subr.mxu0 0.0
      %1035 = vmatpush2.msra.mxu0 0.0
      %1036 = vmatprep.subr.mxu0 0.0
      %1037 = vmatpush2.msra.mxu0 0.0
      %1038 = vmatprep.subr.mxu0 0.0
      %1039 = vmatpush2.msra.mxu0 0.0
      %1040 = vmatprep.subr.mxu0 0.0
      %1041 = vmatpush2.msra.mxu0 0.0
      %1042 = vmatprep.subr.mxu0 0.0
      %1043 = vmatpush2.msra.mxu0 0.0
      %1044 = vmatprep.subr.mxu0 0.0
      %1045 = vmatpush2.msra.mxu0 0.0
      %1046 = vmatprep.subr.mxu0 0.0
      %1047 = vmatpush2.msra.mxu0 0.0
      %1048 = vmatprep.subr.mxu0 0.0
      %1049 = vmatpush2.msra.mxu0 0.0
      %1050 = vmatprep.subr.mxu0 0.0
      %1051 = vmatpush2.msra.mxu0 0.0
      %1052 = vmatprep.subr.mxu0 0.0
      %1053 = vmatpush2.msra.mxu0 0.0
      %1054 = vmatprep.subr.mxu0 0.0
      %1055 = vmatpush2.msra.mxu0 0.0
      %1056 = vmatprep.mubr.f32.mxu0 0.0
      %1057 = vmatmul.mubr.f32.gmra.mxu0 %v990
      %v1058 = vpop.f32.mrf.mxu0
      %v1059 = vadd.f32 1e-06, %v1058
      %v1060 = vpop.f32.mrf.mxu0
      %1061 = vdwg.mxu0
      %v1062 = vrsqrt.pop %v1059
      %v1063 = vlaneseq
      %v1064 = vshrl.u32 %v1063, 7
      %v1065 = vsub.s32 0, %v1064
      %v1066 = vrot.slane %v1062, %v1065
      %1068 = vrot.lane.b32.xlu0 %v1066, 64
      %v1069 = vpop.permute.xlu0 %1068
      %v1071 = vmul.f32 %v875, %v1069
      %v1072 = vmul.f32 %v876, %v1069
      %v1073 = vmul.f32 %v877, %v1069
      %v1074 = vmul.f32 %v878, %v1069
      %v1075 = vmul.f32 %v879, %v1069
      %v1076 = vmul.f32 %v880, %v1069
      %v1077 = vmul.f32 %v881, %v1069
      %v1078 = vmul.f32 %v882, %v1069
      %v1080 = vlaneseq
      %v1081 = vshrl.u32 %v1080, 7
      %v1082 = vsub.s32 0, %v1081
      %v1083 = vrot.slane %v988, %v1082
      %1093 = vrot.lane.b32.xlu0 %v1071, 64
      %v1094 = vpop.permute.xlu0 %1093
      %1095 = vrot.lane.b32.xlu0 %v1072, 64
      %v1096 = vpop.permute.xlu0 %1095
      %1097 = vrot.lane.b32.xlu0 %v1073, 64
      %v1098 = vpop.permute.xlu0 %1097
      %1099 = vrot.lane.b32.xlu0 %v1074, 64
      %v1100 = vpop.permute.xlu0 %1099
      %1101 = vrot.lane.b32.xlu0 %v1075, 64
      %v1102 = vpop.permute.xlu0 %1101
      %1103 = vrot.lane.b32.xlu0 %v1076, 64
      %v1104 = vpop.permute.xlu0 %1103
      %1105 = vrot.lane.b32.xlu0 %v1077, 64
      %v1106 = vpop.permute.xlu0 %1105
      %1107 = vrot.lane.b32.xlu0 %v1078, 64
      %v1108 = vpop.permute.xlu0 %1107
      %v1117 = vmul.f32 %v1083, %v1094
      %v1118 = vmul.f32 %v1083, %v1096
      %v1119 = vmul.f32 %v1083, %v1098
      %v1120 = vmul.f32 %v1083, %v1100
      %v1121 = vmul.f32 %v1083, %v1102
      %v1122 = vmul.f32 %v1083, %v1104
      %v1123 = vmul.f32 %v1083, %v1106
      %v1124 = vmul.f32 %v1083, %v1108
      %v1125 = vld [vmem:[%s301] sm:$0x1]
      %v1127 = vlaneseq
      %v1128 = vshrl.u32 %v1127, 7
      %v1129 = vsub.s32 0, %v1128
      %v1130 = vrot.slane %v1125, %v1129
      %v1132 = vadd.f32 %v1117, %v1130
      %v1133 = vadd.f32 %v1118, %v1130
      %v1134 = vadd.f32 %v1119, %v1130
      %v1135 = vadd.f32 %v1120, %v1130
      %v1136 = vadd.f32 %v1121, %v1130
      %v1137 = vadd.f32 %v1122, %v1130
      %v1138 = vadd.f32 %v1123, %v1130
      %v1139 = vadd.f32 %v1124, %v1130
      %vm1140 = vcmp.ge.f32.partialorder %v1132, 0.0
      %vm1141 = vcmp.ge.f32.partialorder %v1133, 0.0
      %vm1142 = vcmp.ge.f32.partialorder %v1134, 0.0
      %vm1143 = vcmp.ge.f32.partialorder %v1135, 0.0
      %vm1144 = vcmp.ge.f32.partialorder %v1136, 0.0
      %vm1145 = vcmp.ge.f32.partialorder %v1137, 0.0
      %vm1146 = vcmp.ge.f32.partialorder %v1138, 0.0
      %vm1147 = vcmp.ge.f32.partialorder %v1139, 0.0
      %v1148 = vmul.f32 %v1132, 0.2
      %v1149 = vmul.f32 %v1133, 0.2
      %v1150 = vmul.f32 %v1134, 0.2
      %v1151 = vmul.f32 %v1135, 0.2
      %v1152 = vmul.f32 %v1136, 0.2
      %v1153 = vmul.f32 %v1137, 0.2
      %v1154 = vmul.f32 %v1138, 0.2
      %v1155 = vmul.f32 %v1139, 0.2
      %v1156 = vsel %vm1140, %v1132, %v1148
      %v1157 = vsel %vm1141, %v1133, %v1149
      %v1158 = vsel %vm1142, %v1134, %v1150
      %v1159 = vsel %vm1143, %v1135, %v1151
      %v1160 = vsel %vm1144, %v1136, %v1152
      %v1161 = vsel %vm1145, %v1137, %v1153
      %v1162 = vsel %vm1146, %v1138, %v1154
      %v1163 = vsel %vm1147, %v1139, %v1155
      %1172 = vrot.lane.b32.xlu0 %v1156, 64
      %v1173 = vpop.permute.xlu0 %1172
      %1174 = vrot.lane.b32.xlu0 %v1157, 64
      %v1175 = vpop.permute.xlu0 %1174
      %1176 = vrot.lane.b32.xlu0 %v1158, 64
      %v1177 = vpop.permute.xlu0 %1176
      %1178 = vrot.lane.b32.xlu0 %v1159, 64
      %v1179 = vpop.permute.xlu0 %1178
      %1180 = vrot.lane.b32.xlu0 %v1160, 64
      %v1181 = vpop.permute.xlu0 %1180
      %1182 = vrot.lane.b32.xlu0 %v1161, 64
      %v1183 = vpop.permute.xlu0 %1182
      %1184 = vrot.lane.b32.xlu0 %v1162, 64
      %v1185 = vpop.permute.xlu0 %1184
      %1186 = vrot.lane.b32.xlu0 %v1163, 64
      %v1187 = vpop.permute.xlu0 %1186
      %v1196 = vsel %vm397, %v1156, %v1173
      %v1197 = vsel %vm397, %v1157, %v1175
      %v1198 = vsel %vm397, %v1158, %v1177
      %v1199 = vsel %vm397, %v1159, %v1179
      %v1200 = vsel %vm397, %v1160, %v1181
      %v1201 = vsel %vm397, %v1161, %v1183
      %v1202 = vsel %vm397, %v1162, %v1185
      %v1203 = vsel %vm397, %v1163, %v1187
      %1204 = vst [vmem:[%s306] sm:$0xff] %v1196
      %1205 = vst [vmem:[%s306 + $0x10] sm:$0xff] %v1197
      %1206 = vst [vmem:[%s306 + $0x20] sm:$0xff] %v1198
      %1207 = vst [vmem:[%s306 + $0x30] sm:$0xff] %v1199
      %1208 = vst [vmem:[%s306 + $0x40] sm:$0xff] %v1200
      %1209 = vst [vmem:[%s306 + $0x50] sm:$0xff] %v1201
      %1210 = vst [vmem:[%s306 + $0x60] sm:$0xff] %v1202
      %1211 = vst [vmem:[%s306 + $0x70] sm:$0xff] %v1203
      %s1212 = scalar_lea.vmem %s306, 8
      %1213 = vst [vmem:[%s1212] sm:$0xff] %v1196
      %1214 = vst [vmem:[%s1212 + $0x10] sm:$0xff] %v1197
      %1215 = vst [vmem:[%s1212 + $0x20] sm:$0xff] %v1198
      %1216 = vst [vmem:[%s1212 + $0x30] sm:$0xff] %v1199
      %1217 = vst [vmem:[%s1212 + $0x40] sm:$0xff] %v1200
      %1218 = vst [vmem:[%s1212 + $0x50] sm:$0xff] %v1201
      %1219 = vst [vmem:[%s1212 + $0x60] sm:$0xff] %v1202
      %1220 = vst [vmem:[%s1212 + $0x70] sm:$0xff] %v1203
      %p1221 = scmp.lt.s32.totalorder %s18, 1
      %s1222 = scalar_select %p1221, %s18, 1
      %s1223 = smul.addr %s1222, 16
      %s1224 = smul.addr %s1223, 8
      %s1225 = scalar_lea.vmem %s7, %s1224
      // Predicated region
      $region49: #{conv_decoder_forward.6} parent=47 // pred_check
        %p1226 = pneg %p198
      $region50: #{conv_decoder_forward.6} parent=47 // pred_check_branch
        %1228 = sbr.rel (%p1226) target = $region52
      $region51: #{conv_decoder_forward.6} parent=47 // pred_region
        _
      $region52: #{conv_decoder_forward.6} parent=47 // pred_fallthru
        _
    $region48: #{conv_decoder_forward.6} parent=5 // pred_fallthru
      _
    %p1229 = scmp.le.s32.totalorder 2, %s13
    // Predicated region
    $region53: #{conv_decoder_forward.6} parent=5 // pred_check
      %p1230 = pneg %p1229
    $region54: #{conv_decoder_forward.6} parent=5 // pred_check_branch
      %1232 = sbr.rel (%p1230) target = $region56
    $region55: #{conv_decoder_forward.6} parent=5 // pred_region
      %s1233 = ssub.s32 %s13, 2
      // Predicated region
      $region57: #{conv_decoder_forward.6} parent=55 // pred_check
        %p1234 = pneg %p204
      $region58: #{conv_decoder_forward.6} parent=55 // pred_check_branch
        %1236 = sbr.rel (%p1234) target = $region60
      $region59: #{conv_decoder_forward.6} parent=55 // pred_region
        %p1237 = scmp.lt.s32.totalorder %s19, 1
        %s1238 = scalar_select %p1237, %s19, 1
        %s1239 = smul.addr %s1238, 16
        %s1240 = smul.addr %s1239, 8
        %s1241 = scalar_lea.vmem %s7, %s1240
      $region60: #{conv_decoder_forward.6} parent=55 // pred_fallthru
        _
    $region56: #{conv_decoder_forward.6} parent=5 // pred_fallthru
      _
  $region6: #{conv_decoder_forward.6} parent=0 // loop_footer
    %s17 = sadd.s32 1, %s13
  $region7: #{conv_decoder_forward.6} parent=0 // loop_footer_branch
    %12 = sbr.rel target = $region3
  $region8: #{conv_decoder_forward.6} parent=0 // loop_exit
    _

// kernel: conv_decoder_forward.5
$region0: #{conv_decoder_forward.5}
  #allocation0 [shape = 'u32[]', space=smem, size = 0x4, offset = 0x4, fixed_abs, tag = 'smem constant byte address 0x4 - core index']
  #allocation1 [shape = 'u32[144,128]{1,0:T(1,128)}', space=vmem, size = 0x12000, scoped, tag = 'internal scratch']
  %s0 = inlined_call_operand.vmem [shape: f32[2,8,8,64], index: 0, kind: input, shape index: {}]
  %s1 = inlined_call_operand.vmem [shape: f32[192,192], index: 1, kind: input, shape index: {}]
  %s2 = inlined_call_operand.vmem [shape: f32[1,64], index: 2, kind: input, shape index: {}]
  %s3 = inlined_call_operand.vmem [shape: f32[2,1,64], index: 3, kind: input, shape index: {}]
  %s4 = inlined_call_operand.vmem [shape: f32[2,1,64], index: 4, kind: input, shape index: {}]
  %s5 = inlined_call_operand.vmem [shape: f32[64,32], index: 5, kind: input, shape index: {}]
  %s6 = inlined_call_operand.vmem [shape: f32[32,64], index: 6, kind: input, shape index: {}]
  %s7 = inlined_call_operand.vmem [shape: f32[2,8,8,64], index: 7, kind: output, shape index: {}]
  %s8 = sld [smem:[#allocation0]]
  $region61: #{conv_decoder_forward.5} parent=0
    _
  %s10 = ssub.s32 1, %s8
  %s11 = scalar_select 0, %s10, %s8
  loop: start=0, step=1, limit=4
  $region2: #{conv_decoder_forward.5} parent=0 // loop_pre_header
    _
  $region3: #{conv_decoder_forward.5} parent=0 // loop_header
    %s13 = sphi 0, %s17
    %p14 = scmp.ge.s32.totalorder %s13, 4
    %s23 = sphi 0, %s25
    %s26 = sphi 0, %s23
    %s27 = sphi 0, %s26
    %s43 = sphi 0, %s27
    %s47 = sphi 0, %s47
    %s49 = sphi 0, %s47
    %s50 = sphi 0, %s49
    %s64 = sphi 0, %s50
    %s68 = sphi 0, %s68
    %s70 = sphi 0, %s68
    %s71 = sphi 0, %s70
    %s85 = sphi 0, %s71
    %s91 = sphi 0, %s93
    %s94 = sphi 0, %s91
    %s95 = sphi 0, %s94
    %s111 = sphi 0, %s95
    %s117 = sphi 0, %s119
    %s120 = sphi 0, %s117
    %s121 = sphi 0, %s120
    %s137 = sphi 0, %s121
    %s141 = sphi 0, %s141
    %s143 = sphi 0, %s141
    %s144 = sphi 0, %s143
    %s158 = sphi 0, %s144
    %s162 = sphi 0, %s162
    %s164 = sphi 0, %s162
    %s165 = sphi 0, %s164
    %s179 = sphi 0, %s165
    %s185 = sphi 0, %s187
    %s188 = sphi 0, %s185
    %s189 = sphi 0, %s188
    %s205 = sphi 0, %s189
  $region4: #{conv_decoder_forward.5} parent=0 // loop_header_branch
    %16 = sbr.rel (%p14) target = $region8
  $region5: #{conv_decoder_forward.5} parent=0 // loop_body
    %s18 = ssub.s32 %s13, 1
    %s19 = ssub.s32 %s13, 2
    %s20 = sadd.s32 %s13, 1
    %s21 = ssub.s32 %s13, %s20
    %p22 = scmp.eq.s32.totalorder %s21, 0
    %s24 = sadd.s32 %s23, 1
    %s25 = scalar_select %p22, %s23, %s24
    %p28 = pneg %p22
    %p29 = scmp.eq.s32.totalorder %s13, 1
    %p30 = por %p28, %p29
    %p31 = scmp.ne.s32.totalorder %s23, %s26
    %p32 = scmp.eq.s32.totalorder %s13, 0
    %p33 = por %p31, %p32
    %p34 = scmp.ne.s32.totalorder %s23, %s26
    %p35 = scmp.eq.s32.totalorder %s18, 1
    %p36 = por %p34, %p35
    %p37 = scmp.ne.s32.totalorder %s26, %s27
    %p38 = scmp.eq.s32.totalorder %s18, 0
    %p39 = por %p37, %p38
    %p40 = scmp.ne.s32.totalorder %s26, %s27
    %p41 = scmp.eq.s32.totalorder %s19, 1
    %p42 = por %p40, %p41
    %p44 = scmp.ne.s32.totalorder %s27, %s43
    %p45 = scmp.eq.s32.totalorder %s19, 0
    %p46 = por %p44, %p45
    %s48 = sadd.s32 %s47, 1
    %p51 = scmp.eq.s32.totalorder %s13, 1
    %p52 = scmp.ne.s32.totalorder %s47, %s49
    %p53 = scmp.eq.s32.totalorder %s13, 0
    %p54 = por %p52, %p53
    %p55 = scmp.ne.s32.totalorder %s47, %s49
    %p56 = scmp.eq.s32.totalorder %s18, 1
    %p57 = por %p55, %p56
    %p58 = scmp.ne.s32.totalorder %s49, %s50
    %p59 = scmp.eq.s32.totalorder %s18, 0
    %p60 = por %p58, %p59
    %p61 = scmp.ne.s32.totalorder %s49, %s50
    %p62 = scmp.eq.s32.totalorder %s19, 1
    %p63 = por %p61, %p62
    %p65 = scmp.ne.s32.totalorder %s50, %s64
    %p66 = scmp.eq.s32.totalorder %s19, 0
    %p67 = por %p65, %p66
    %s69 = sadd.s32 %s68, 1
    %p72 = scmp.eq.s32.totalorder %s13, 1
    %p73 = scmp.ne.s32.totalorder %s68, %s70
    %p74 = scmp.eq.s32.totalorder %s13, 0
    %p75 = por %p73, %p74
    %p76 = scmp.ne.s32.totalorder %s68, %s70
    %p77 = scmp.eq.s32.totalorder %s18, 1
    %p78 = por %p76, %p77
    %p79 = scmp.ne.s32.totalorder %s70, %s71
    %p80 = scmp.eq.s32.totalorder %s18, 0
    %p81 = por %p79, %p80
    %p82 = scmp.ne.s32.totalorder %s70, %s71
    %p83 = scmp.eq.s32.totalorder %s19, 1
    %p84 = por %p82, %p83
    %p86 = scmp.ne.s32.totalorder %s71, %s85
    %p87 = scmp.eq.s32.totalorder %s19, 0
    %p88 = por %p86, %p87
    %s89 = ssub.s32 %s13, %s20
    %p90 = scmp.eq.s32.totalorder %s89, 0
    %s92 = sadd.s32 %s91, 1
    %s93 = scalar_select %p90, %s91, %s92
    %p96 = pneg %p90
    %p97 = scmp.eq.s32.totalorder %s13, 1
    %p98 = por %p96, %p97
    %p99 = scmp.ne.s32.totalorder %s91, %s94
    %p100 = scmp.eq.s32.totalorder %s13, 0
    %p101 = por %p99, %p100
    %p102 = scmp.ne.s32.totalorder %s91, %s94
    %p103 = scmp.eq.s32.totalorder %s18, 1
    %p104 = por %p102, %p103
    %p105 = scmp.ne.s32.totalorder %s94, %s95
    %p106 = scmp.eq.s32.totalorder %s18, 0
    %p107 = por %p105, %p106
    %p108 = scmp.ne.s32.totalorder %s94, %s95
    %p109 = scmp.eq.s32.totalorder %s19, 1
    %p110 = por %p108, %p109
    %p112 = scmp.ne.s32.totalorder %s95, %s111
    %p113 = scmp.eq.s32.totalorder %s19, 0
    %p114 = por %p112, %p113
    %s115 = ssub.s32 %s13, %s20
    %p116 = scmp.eq.s32.totalorder %s115, 0
    %s118 = sadd.s32 %s117, 1
    %s119 = scalar_select %p116, %s117, %s118
    %p122 = pneg %p116
    %p123 = scmp.eq.s32.totalorder %s13, 1
    %p124 = por %p122, %p123
    %p125 = scmp.ne.s32.totalorder %s117, %s120
    %p126 = scmp.eq.s32.totalorder %s13, 0
    %p127 = por %p125, %p126
    %p128 = scmp.ne.s32.totalorder %s117, %s120
    %p129 = scmp.eq.s32.totalorder %s18, 1
    %p130 = por %p128, %p129
    %p131 = scmp.ne.s32.totalorder %s120, %s121
    %p132 = scmp.eq.s32.totalorder %s18, 0
    %p133 = por %p131, %p132
    %p134 = scmp.ne.s32.totalorder %s120, %s121
    %p135 = scmp.eq.s32.totalorder %s19, 1
    %p136 = por %p134, %p135
    %p138 = scmp.ne.s32.totalorder %s121, %s137
    %p139 = scmp.eq.s32.totalorder %s19, 0
    %p140 = por %p138, %p139
    %s142 = sadd.s32 %s141, 1
    %p145 = scmp.eq.s32.totalorder %s13, 1
    %p146 = scmp.ne.s32.totalorder %s141, %s143
    %p147 = scmp.eq.s32.totalorder %s13, 0
    %p148 = por %p146, %p147
    %p149 = scmp.ne.s32.totalorder %s141, %s143
    %p150 = scmp.eq.s32.totalorder %s18, 1
    %p151 = por %p149, %p150
    %p152 = scmp.ne.s32.totalorder %s143, %s144
    %p153 = scmp.eq.s32.totalorder %s18, 0
    %p154 = por %p152, %p153
    %p155 = scmp.ne.s32.totalorder %s143, %s144
    %p156 = scmp.eq.s32.totalorder %s19, 1
    %p157 = por %p155, %p156
    %p159 = scmp.ne.s32.totalorder %s144, %s158
    %p160 = scmp.eq.s32.totalorder %s19, 0
    %p161 = por %p159, %p160
    %s163 = sadd.s32 %s162, 1
    %p166 = scmp.eq.s32.totalorder %s13, 1
    %p167 = scmp.ne.s32.totalorder %s162, %s164
    %p168 = scmp.eq.s32.totalorder %s13, 0
    %p169 = por %p167, %p168
    %p170 = scmp.ne.s32.totalorder %s162, %s164
    %p171 = scmp.eq.s32.totalorder %s18, 1
    %p172 = por %p170, %p171
    %p173 = scmp.ne.s32.totalorder %s164, %s165
    %p174 = scmp.eq.s32.totalorder %s18, 0
    %p175 = por %p173, %p174
    %p176 = scmp.ne.s32.totalorder %s164, %s165
    %p177 = scmp.eq.s32.totalorder %s19, 1
    %p178 = por %p176, %p177
    %p180 = scmp.ne.s32.totalorder %s165, %s179
    %p181 = scmp.eq.s32.totalorder %s19, 0
    %p182 = por %p180, %p181
    %s183 = ssub.s32 %s13, %s20
    %p184 = scmp.eq.s32.totalorder %s183, 0
    %s186 = sadd.s32 %s185, 1
    %s187 = scalar_select %p184, %s185, %s186
    %p190 = pneg %p184
    %p191 = scmp.eq.s32.totalorder %s13, 1
    %p192 = por %p190, %p191
    %p193 = scmp.ne.s32.totalorder %s185, %s188
    %p194 = scmp.eq.s32.totalorder %s13, 0
    %p195 = por %p193, %p194
    %p196 = scmp.ne.s32.totalorder %s185, %s188
    %p197 = scmp.eq.s32.totalorder %s18, 1
    %p198 = por %p196, %p197
    %p199 = scmp.ne.s32.totalorder %s188, %s189
    %p200 = scmp.eq.s32.totalorder %s18, 0
    %p201 = por %p199, %p200
    %p202 = scmp.ne.s32.totalorder %s188, %s189
    %p203 = scmp.eq.s32.totalorder %s19, 1
    %p204 = por %p202, %p203
    %p206 = scmp.ne.s32.totalorder %s189, %s205
    %p207 = scmp.eq.s32.totalorder %s19, 0
    %p208 = por %p206, %p207
    %p209 = scmp.le.s32.totalorder 1, %s13
    %p210 = scmp.lt.s32.totalorder %s13, 3
    %p211 = pnand %p209, %p210
    %p212 = pneg %p211
    // Predicated region
    $region9: #{conv_decoder_forward.5} parent=5 // pred_check
      _
    $region10: #{conv_decoder_forward.5} parent=5 // pred_check_branch
      %214 = sbr.rel (%p211) target = $region12
    $region11: #{conv_decoder_forward.5} parent=5 // pred_region
      %s215 = ssub.s32 %s13, 1
      // Predicated region
      $region13: #{conv_decoder_forward.5} parent=11 // pred_check
        %p216 = pneg %p60
      $region14: #{conv_decoder_forward.5} parent=11 // pred_check_branch
        %218 = sbr.rel (%p216) target = $region16
      $region15: #{conv_decoder_forward.5} parent=11 // pred_region
        _
      $region16: #{conv_decoder_forward.5} parent=11 // pred_fallthru
        _
      // Predicated region
      $region17: #{conv_decoder_forward.5} parent=11 // pred_check
        %p219 = pneg %p81
      $region18: #{conv_decoder_forward.5} parent=11 // pred_check_branch
        %221 = sbr.rel (%p219) target = $region20
      $region19: #{conv_decoder_forward.5} parent=11 // pred_region
        _
      $region20: #{conv_decoder_forward.5} parent=11 // pred_fallthru
        _
      // Predicated region
      $region21: #{conv_decoder_forward.5} parent=11 // pred_check
        %p222 = pneg %p154
      $region22: #{conv_decoder_forward.5} parent=11 // pred_check_branch
        %224 = sbr.rel (%p222) target = $region24
      $region23: #{conv_decoder_forward.5} parent=11 // pred_region
        _
      $region24: #{conv_decoder_forward.5} parent=11 // pred_fallthru
        _
      // Predicated region
      $region25: #{conv_decoder_forward.5} parent=11 // pred_check
        %p225 = pneg %p175
      $region26: #{conv_decoder_forward.5} parent=11 // pred_check_branch
        %227 = sbr.rel (%p225) target = $region28
      $region27: #{conv_decoder_forward.5} parent=11 // pred_region
        _
      $region28: #{conv_decoder_forward.5} parent=11 // pred_fallthru
        _
    $region12: #{conv_decoder_forward.5} parent=5 // pred_fallthru
      _
    %p228 = scmp.lt.s32.totalorder %s13, 2
    // Predicated region
    $region29: #{conv_decoder_forward.5} parent=5 // pred_check
      %p229 = pneg %p228
    $region30: #{conv_decoder_forward.5} parent=5 // pred_check_branch
      %231 = sbr.rel (%p229) target = $region32
    $region31: #{conv_decoder_forward.5} parent=5 // pred_region
      // Predicated region
      $region33: #{conv_decoder_forward.5} parent=31 // pred_check
        %p232 = pneg %p33
      $region34: #{conv_decoder_forward.5} parent=31 // pred_check_branch
        %234 = sbr.rel (%p232) target = $region36
      $region35: #{conv_decoder_forward.5} parent=31 // pred_region
        %p235 = scmp.lt.s32.totalorder %s13, 1
        %s236 = scalar_select %p235, %s13, 1
        %s237 = smul.addr %s236, 8
        %s238 = smul.addr %s237, 8
        %s239 = scalar_lea.vmem %s0, %s238
      $region36: #{conv_decoder_forward.5} parent=31 // pred_fallthru
        _
      // Predicated region
      $region37: #{conv_decoder_forward.5} parent=31 // pred_check
        %p240 = pneg %p101
      $region38: #{conv_decoder_forward.5} parent=31 // pred_check_branch
        %242 = sbr.rel (%p240) target = $region40
      $region39: #{conv_decoder_forward.5} parent=31 // pred_region
        %p243 = scmp.lt.s32.totalorder %s13, 1
        %s244 = scalar_select %p243, %s13, 1
        %s245 = scalar_lea.vmem %s3, %s244
      $region40: #{conv_decoder_forward.5} parent=31 // pred_fallthru
        _
      // Predicated region
      $region41: #{conv_decoder_forward.5} parent=31 // pred_check
        %p246 = pneg %p127
      $region42: #{conv_decoder_forward.5} parent=31 // pred_check_branch
        %248 = sbr.rel (%p246) target = $region44
      $region43: #{conv_decoder_forward.5} parent=31 // pred_region
        %p249 = scmp.lt.s32.totalorder %s13, 1
        %s250 = scalar_select %p249, %s13, 1
        %s251 = scalar_lea.vmem %s4, %s250
      $region44: #{conv_decoder_forward.5} parent=31 // pred_fallthru
        _
    $region32: #{conv_decoder_forward.5} parent=5 // pred_fallthru
      _
    %p252 = scmp.le.s32.totalorder 1, %s13
    %p253 = scmp.lt.s32.totalorder %s13, 3
    %p254 = pnand %p252, %p253
    %p255 = pneg %p254
    // Predicated region
    $region45: #{conv_decoder_forward.5} parent=5 // pred_check
      _
    $region46: #{conv_decoder_forward.5} parent=5 // pred_check_branch
      %257 = sbr.rel (%p254) target = $region48
    $region47: #{conv_decoder_forward.5} parent=5 // pred_region
      %s258 = ssub.s32 %s13, 1
      %p259 = scmp.lt.s32.totalorder %s18, 1
      %s260 = scalar_select %p259, %s18, 1
      %s261 = smul.addr %s260, 8
      %s262 = smul.addr %s261, 8
      %s263 = scalar_lea.vmem %s0, %s262
      %p264 = pneg %p39
      %p265 = pneg %p36
      %p266 = pneg %p60
      %p267 = pneg %p57
      %p268 = pneg %p81
      %p269 = pneg %p78
      %p270 = scmp.lt.s32.totalorder %s18, 1
      %s271 = scalar_select %p270, %s18, 1
      %s272 = scalar_lea.vmem %s3, %s271
      %p273 = pneg %p107
      %p274 = pneg %p104
      %p275 = scmp.lt.s32.totalorder %s18, 1
      %s276 = scalar_select %p275, %s18, 1
      %s277 = scalar_lea.vmem %s4, %s276
      %p278 = pneg %p133
      %p279 = pneg %p130
      %p280 = pneg %p154
      %p281 = pneg %p151
      %p282 = pneg %p175
      %p283 = pneg %p172
      %p284 = pneg %p201
      %p285 = pneg %p198
      %p286 = scmp.lt.s32.totalorder %s18, 1
      %s287 = scalar_select %p286, %s18, 1
      %s288 = smul.addr %s287, 8
      %s289 = smul.addr %s288, 8
      %s290 = scalar_lea.vmem %s7, %s289
      %p291 = scmp.lt.s32.totalorder %s18, 1
      %s292 = scalar_select %p291, %s18, 1
      %s293 = smul.addr %s292, 8
      %s294 = smul.addr %s293, 8
      %s295 = scalar_lea.vmem %s0, %s294
      %p296 = scmp.lt.s32.totalorder %s18, 1
      %s297 = scalar_select %p296, %s18, 1
      %s298 = scalar_lea.vmem %s3, %s297
      %p299 = scmp.lt.s32.totalorder %s18, 1
      %s300 = scalar_select %p299, %s18, 1
      %s301 = scalar_lea.vmem %s4, %s300
      %p302 = scmp.lt.s32.totalorder %s18, 1
      %s303 = scalar_select %p302, %s18, 1
      %s304 = smul.addr %s303, 8
      %s305 = smul.addr %s304, 8
      %s306 = scalar_lea.vmem %s7, %s305
      %v307 = vld [vmem:[%s295] sm:$0xff]
      %v308 = vld [vmem:[%s295 + $0x8] sm:$0xff]
      %v309 = vld [vmem:[%s295 + $0x10] sm:$0xff]
      %v310 = vld [vmem:[%s295 + $0x18] sm:$0xff]
      %v311 = vld [vmem:[%s295 + $0x20] sm:$0xff]
      %v312 = vld [vmem:[%s295 + $0x28] sm:$0xff]
      %v313 = vld [vmem:[%s295 + $0x30] sm:$0xff]
      %v314 = vld [vmem:[%s295 + $0x38] sm:$0xff]
      %v323 = vrot.slane %v307, 7
      %v324 = vrot.slane %v308, 7
      %v325 = vrot.slane %v309, 7
      %v326 = vrot.slane %v310, 7
      %v327 = vrot.slane %v311, 7
      %v328 = vrot.slane %v312, 7
      %v329 = vrot.slane %v313, 7
      %v330 = vrot.slane %v314, 7
      %vm339 = vcmask 1040384
      %v340 = vsel %vm339, 0.0, %v323
      %v341 = vsel %vm339, 0.0, %v324
      %v342 = vsel %vm339, 0.0, %v325
      %v343 = vsel %vm339, 0.0, %v326
      %v344 = vsel %vm339, 0.0, %v327
      %v345 = vsel %vm339, 0.0, %v328
      %v346 = vsel %vm339, 0.0, %v329
      %v347 = vsel %vm339, 0.0, %v330
      %v348 = vrot.slane %v307, 1
      %v349 = vrot.slane %v308, 1
      %v350 = vrot.slane %v309, 1
      %v351 = vrot.slane %v310, 1
      %v352 = vrot.slane %v311, 1
      %v353 = vrot.slane %v312, 1
      %v354 = vrot.slane %v313, 1
      %v355 = vrot.slane %v314, 1
      %vm364 = vcmask 1046528
      %v365 = vsel %vm364, %v348, 0.0
      %v366 = vsel %vm364, %v349, 0.0
      %v367 = vsel %vm364, %v350, 0.0
      %v368 = vsel %vm364, %v351, 0.0
      %v369 = vsel %vm364, %v352, 0.0
      %v370 = vsel %vm364, %v353, 0.0
      %v371 = vsel %vm364, %v354, 0.0
      %v372 = vsel %vm364, %v355, 0.0
      %373 = vrot.lane.b32.xlu0 %v307, 64
      %v374 = vpop.permute.xlu0 %373
      %375 = vrot.lane.b32.xlu0 %v308, 64
      %v376 = vpop.permute.xlu0 %375
      %377 = vrot.lane.b32.xlu0 %v309, 64
      %v378 = vpop.permute.xlu0 %377
      %379 = vrot.lane.b32.xlu0 %v310, 64
      %v380 = vpop.permute.xlu0 %379
      %381 = vrot.lane.b32.xlu0 %v311, 64
      %v382 = vpop.permute.xlu0 %381
      %383 = vrot.lane.b32.xlu0 %v312, 64
      %v384 = vpop.permute.xlu0 %383
      %385 = vrot.lane.b32.xlu0 %v313, 64
      %v386 = vpop.permute.xlu0 %385
      %387 = vrot.lane.b32.xlu0 %v314, 64
      %v388 = vpop.permute.xlu0 %387
      %vm397 = vcmask 523264
      %v398 = vsel %vm397, %v340, %v374
      %v399 = vsel %vm397, %v341, %v376
      %v400 = vsel %vm397, %v342, %v378
      %v401 = vsel %vm397, %v343, %v380
      %v402 = vsel %vm397, %v344, %v382
      %v403 = vsel %vm397, %v345, %v384
      %v404 = vsel %vm397, %v346, %v386
      %v405 = vsel %vm397, %v347, %v388
      %v406 = vld [vmem:[%s1] sm:$0xff]
      %v407 = vld [vmem:[%s1 + $0x8] sm:$0xff]
      %v408 = vld [vmem:[%s1 + $0x10] sm:$0xff]
      %v409 = vld [vmem:[%s1 + $0x18] sm:$0xff]
      %v410 = vld [vmem:[%s1 + $0x20] sm:$0xff]
      %v411 = vld [vmem:[%s1 + $0x28] sm:$0xff]
      %v412 = vld [vmem:[%s1 + $0x30] sm:$0xff]
      %v413 = vld [vmem:[%s1 + $0x38] sm:$0xff]
      %v414 = vld [vmem:[%s1 + $0x40] sm:$0xff]
      %v415 = vld [vmem:[%s1 + $0x48] sm:$0xff]
      %v416 = vld [vmem:[%s1 + $0x50] sm:$0xff]
      %v417 = vld [vmem:[%s1 + $0x58] sm:$0xff]
      %v418 = vld [vmem:[%s1 + $0x60] sm:$0xff]
      %v419 = vld [vmem:[%s1 + $0x68] sm:$0xff]
      %v420 = vld [vmem:[%s1 + $0x70] sm:$0xff]
      %v421 = vld [vmem:[%s1 + $0x78] sm:$0xff]
      %v422 = vld [vmem:[%s1 + $0x80] sm:$0xff]
      %v423 = vld [vmem:[%s1 + $0x88] sm:$0xff]
      %v424 = vld [vmem:[%s1 + $0x90] sm:$0xff]
      %v425 = vld [vmem:[%s1 + $0x98] sm:$0xff]
      %v426 = vld [vmem:[%s1 + $0xa0] sm:$0xff]
      %v427 = vld [vmem:[%s1 + $0xa8] sm:$0xff]
      %v428 = vld [vmem:[%s1 + $0xb0] sm:$0xff]
      %v429 = vld [vmem:[%s1 + $0xb8] sm:$0xff]
      %v430 = vld [vmem:[%s1 + $0xc0] sm:$0xff]
      %v431 = vld [vmem:[%s1 + $0xc8] sm:$0xff]
      %v432 = vld [vmem:[%s1 + $0xd0] sm:$0xff]
      %v433 = vld [vmem:[%s1 + $0xd8] sm:$0xff]
      %v434 = vld [vmem:[%s1 + $0xe0] sm:$0xff]
      %v435 = vld [vmem:[%s1 + $0xe8] sm:$0xff]
      %v436 = vld [vmem:[%s1 + $0xf0] sm:$0xff]
      %v437 = vld [vmem:[%s1 + $0xf8] sm:$0xff]
      %v438 = vld [vmem:[%s1 + $0x100] sm:$0xff]
      %v439 = vld [vmem:[%s1 + $0x108] sm:$0xff]
      %v440 = vld [vmem:[%s1 + $0x110] sm:$0xff]
      %v441 = vld [vmem:[%s1 + $0x118] sm:$0xff]
      %v442 = vld [vmem:[%s1 + $0x120] sm:$0xff]
      %v443 = vld [vmem:[%s1 + $0x128] sm:$0xff]
      %v444 = vld [vmem:[%s1 + $0x130] sm:$0xff]
      %v445 = vld [vmem:[%s1 + $0x138] sm:$0xff]
      %v446 = vld [vmem:[%s1 + $0x140] sm:$0xff]
      %v447 = vld [vmem:[%s1 + $0x148] sm:$0xff]
      %v448 = vld [vmem:[%s1 + $0x150] sm:$0xff]
      %v449 = vld [vmem:[%s1 + $0x158] sm:$0xff]
      %v450 = vld [vmem:[%s1 + $0x160] sm:$0xff]
      %v451 = vld [vmem:[%s1 + $0x168] sm:$0xff]
      %v452 = vld [vmem:[%s1 + $0x170] sm:$0xff]
      %v453 = vld [vmem:[%s1 + $0x178] sm:$0xff]
      %v455 = vsel %vm397, %v365, 0
      %v458 = vsel %vm397, %v366, 0
      %v461 = vsel %vm397, %v367, 0
      %v464 = vsel %vm397, %v368, 0
      %v467 = vsel %vm397, %v369, 0
      %v470 = vsel %vm397, %v370, 0
      %v473 = vsel %vm397, %v371, 0
      %v476 = vsel %vm397, %v372, 0
      %478 = vmatprep.subr.mxu0 %v437
      %479 = vmatpush1.msra.mxu0 %v436
      %480 = vmatprep.subr.mxu0 %v435
      %481 = vmatpush1.msra.mxu0 %v434
      %482 = vmatprep.subr.mxu0 %v433
      %483 = vmatpush1.msra.mxu0 %v432
      %484 = vmatprep.subr.mxu0 %v431
      %485 = vmatpush1.msra.mxu0 %v430
      %486 = vmatprep.subr.mxu0 %v429
      %487 = vmatpush1.msra.mxu0 %v428
      %488 = vmatprep.subr.mxu0 %v427
      %489 = vmatpush1.msra.mxu0 %v426
      %490 = vmatprep.subr.mxu0 %v425
      %491 = vmatpush1.msra.mxu0 %v424
      %492 = vmatprep.subr.mxu0 %v423
      %493 = vmatpush1.msra.mxu0 %v422
      %494 = vmatprep.subr.mxu0 %v421
      %495 = vmatpush1.msra.mxu0 %v420
      %496 = vmatprep.subr.mxu0 %v419
      %497 = vmatpush1.msra.mxu0 %v418
      %498 = vmatprep.subr.mxu0 %v417
      %499 = vmatpush1.msra.mxu0 %v416
      %500 = vmatprep.subr.mxu0 %v415
      %501 = vmatpush1.msra.mxu0 %v414
      %502 = vmatprep.subr.mxu0 %v413
      %503 = vmatpush1.msra.mxu0 %v412
      %504 = vmatprep.subr.mxu0 %v411
      %505 = vmatpush1.msra.mxu0 %v410
      %506 = vmatprep.subr.mxu0 %v409
      %507 = vmatpush1.msra.mxu0 %v408
      %508 = vmatprep.subr.mxu0 %v407
      %509 = vmatpush1.msra.mxu0 %v406
      %510 = vmatprep.subr.mxu0 0.0
      %511 = vmatpush2.msra.mxu0 0.0
      %512 = vmatprep.subr.mxu0 0.0
      %513 = vmatpush2.msra.mxu0 0.0
      %514 = vmatprep.subr.mxu0 0.0
      %515 = vmatpush2.msra.mxu0 0.0
      %516 = vmatprep.subr.mxu0 0.0
      %517 = vmatpush2.msra.mxu0 0.0
      %518 = vmatprep.subr.mxu0 0.0
      %519 = vmatpush2.msra.mxu0 0.0
      %520 = vmatprep.subr.mxu0 0.0
      %521 = vmatpush2.msra.mxu0 0.0
      %522 = vmatprep.subr.mxu0 0.0
      %523 = vmatpush2.msra.mxu0 0.0
      %524 = vmatprep.subr.mxu0 0.0
      %525 = vmatpush2.msra.mxu0 0.0
      %526 = vmatprep.subr.mxu0 %v453
      %527 = vmatpush2.msra.mxu0 %v452
      %528 = vmatprep.subr.mxu0 %v451
      %529 = vmatpush2.msra.mxu0 %v450
      %530 = vmatprep.subr.mxu0 %v449
      %531 = vmatpush2.msra.mxu0 %v448
      %532 = vmatprep.subr.mxu0 %v447
      %533 = vmatpush2.msra.mxu0 %v446
      %534 = vmatprep.subr.mxu0 %v445
      %535 = vmatpush2.msra.mxu0 %v444
      %536 = vmatprep.subr.mxu0 %v443
      %537 = vmatpush2.msra.mxu0 %v442
      %538 = vmatprep.subr.mxu0 %v441
      %539 = vmatpush2.msra.mxu0 %v440
      %540 = vmatprep.subr.mxu0 %v439
      %541 = vmatpush2.msra.mxu0 %v438
      %542 = vmatprep.mubr.f32.mxu0 %v455
      %543 = vmatmul.mubr.f32.gmra.mxu0 %v398
      %v544 = vpop.f32.mrf.mxu0
      %v545 = vadd.f32 0.0, %v544
      %v546 = vpop.f32.mrf.mxu0
      %547 = vmatprep.mubr.f32.mxu0 %v458
      %548 = vmatmul.mubr.f32.gmra.mxu0 %v399
      %v549 = vpop.f32.mrf.mxu0
      %v550 = vadd.f32 0.0, %v549
      %v551 = vpop.f32.mrf.mxu0
      %v552 = vadd.f32 0.0, %v551
      %553 = vmatprep.mubr.f32.mxu0 %v461
      %554 = vmatmul.mubr.f32.gmra.mxu0 %v400
      %v555 = vpop.f32.mrf.mxu0
      %v556 = vadd.f32 0.0, %v555
      %v557 = vpop.f32.mrf.mxu0
      %v558 = vadd.f32 0.0, %v557
      %559 = vmatprep.mubr.f32.mxu0 %v464
      %560 = vmatmul.mubr.f32.gmra.mxu0 %v401
      %v561 = vpop.f32.mrf.mxu0
      %v562 = vadd.f32 0.0, %v561
      %v563 = vpop.f32.mrf.mxu0
      %v564 = vadd.f32 0.0, %v563
      %565 = vmatprep.mubr.f32.mxu0 %v467
      %566 = vmatmul.mubr.f32.gmra.mxu0 %v402
      %v567 = vpop.f32.mrf.mxu0
      %v568 = vadd.f32 0.0, %v567
      %v569 = vpop.f32.mrf.mxu0
      %v570 = vadd.f32 0.0, %v569
      %571 = vmatprep.mubr.f32.mxu0 %v470
      %572 = vmatmul.mubr.f32.gmra.mxu0 %v403
      %v573 = vpop.f32.mrf.mxu0
      %v574 = vadd.f32 0.0, %v573
      %v575 = vpop.f32.mrf.mxu0
      %v576 = vadd.f32 0.0, %v575
      %577 = vmatprep.mubr.f32.mxu0 %v473
      %578 = vmatmul.mubr.f32.gmra.mxu0 %v404
      %v579 = vpop.f32.mrf.mxu0
      %v580 = vadd.f32 0.0, %v579
      %v581 = vpop.f32.mrf.mxu0
      %v582 = vadd.f32 0.0, %v581
      %583 = vmatprep.mubr.f32.mxu0 %v476
      %584 = vmatmul.mubr.f32.gmra.mxu0 %v405
      %v585 = vpop.f32.mrf.mxu0
      %v586 = vadd.f32 0.0, %v585
      %v587 = vpop.f32.mrf.mxu0
      %v588 = vadd.f32 0.0, %v587
      %589 = vdwg.mxu0
      %598 = vrot.lane.b32.xlu0 0.0, 64
      %v599 = vpop.permute.xlu0 %598
      %600 = vrot.lane.b32.xlu0 %v545, 64
      %v601 = vpop.permute.xlu0 %600
      %602 = vrot.lane.b32.xlu0 %v550, 64
      %v603 = vpop.permute.xlu0 %602
      %604 = vrot.lane.b32.xlu0 %v556, 64
      %v605 = vpop.permute.xlu0 %604
      %606 = vrot.lane.b32.xlu0 %v562, 64
      %v607 = vpop.permute.xlu0 %606
      %608 = vrot.lane.b32.xlu0 %v568, 64
      %v609 = vpop.permute.xlu0 %608
      %610 = vrot.lane.b32.xlu0 %v574, 64
      %v611 = vpop.permute.xlu0 %610
      %612 = vrot.lane.b32.xlu0 %v580, 64
      %v613 = vpop.permute.xlu0 %612
      %v622 = vadd.f32 %v545, %v599
      %v623 = vadd.f32 %v550, %v601
      %v624 = vadd.f32 %v556, %v603
      %v625 = vadd.f32 %v562, %v605
      %v626 = vadd.f32 %v568, %v607
      %v627 = vadd.f32 %v574, %v609
      %v628 = vadd.f32 %v580, %v611
      %v629 = vadd.f32 %v586, %v613
      %637 = vrot.lane.b32.xlu0 %v552, 64
      %v638 = vpop.permute.xlu0 %637
      %639 = vrot.lane.b32.xlu0 %v558, 64
      %v640 = vpop.permute.xlu0 %639
      %641 = vrot.lane.b32.xlu0 %v564, 64
      %v642 = vpop.permute.xlu0 %641
      %643 = vrot.lane.b32.xlu0 %v570, 64
      %v644 = vpop.permute.xlu0 %643
      %645 = vrot.lane.b32.xlu0 %v576, 64
      %v646 = vpop.permute.xlu0 %645
      %647 = vrot.lane.b32.xlu0 %v582, 64
      %v648 = vpop.permute.xlu0 %647
      %649 = vrot.lane.b32.xlu0 %v588, 64
      %v650 = vpop.permute.xlu0 %649
      %v658 = vadd.f32 %v622, %v638
      %v659 = vadd.f32 %v623, %v640
      %v660 = vadd.f32 %v624, %v642
      %v661 = vadd.f32 %v625, %v644
      %v662 = vadd.f32 %v626, %v646
      %v663 = vadd.f32 %v627, %v648
      %v664 = vadd.f32 %v628, %v650
      %v665 = vadd.f32 %v629, %v599
      %v666 = vld [vmem:[%s2] sm:$0x1]
      %v668 = vlaneseq
      %v669 = vshrl.u32 %v668, 7
      %v670 = vsub.s32 0, %v669
      %v671 = vrot.slane %v666, %v670
      %672 = vrot.lane.b32.xlu0 %v671, 64
      %v673 = vpop.permute.xlu0 %672
      %v675 = vadd.f32 %v658, %v673
      %v676 = vadd.f32 %v659, %v673
      %v677 = vadd.f32 %v660, %v673
      %v678 = vadd.f32 %v661, %v673
      %v679 = vadd.f32 %v662, %v673
      %v680 = vadd.f32 %v663, %v673
      %v681 = vadd.f32 %v664, %v673
      %v682 = vadd.f32 %v665, %v673
      %v683 = vld [vmem:[%s5] sm:$0xff]
      %v684 = vld [vmem:[%s5 + $0x8] sm:$0xff]
      %v685 = vld [vmem:[%s5 + $0x10] sm:$0xff]
      %v686 = vld [vmem:[%s5 + $0x18] sm:$0xff]
      %v687 = vld [vmem:[%s5 + $0x20] sm:$0xff]
      %v688 = vld [vmem:[%s5 + $0x28] sm:$0xff]
      %v689 = vld [vmem:[%s5 + $0x30] sm:$0xff]
      %v690 = vld [vmem:[%s5 + $0x38] sm:$0xff]
      %v691 = vld [vmem:[%s6] sm:$0xff]
      %v692 = vld [vmem:[%s6 + $0x8] sm:$0xff]
      %v693 = vld [vmem:[%s6 + $0x10] sm:$0xff]
      %v694 = vld [vmem:[%s6 + $0x18] sm:$0xff]
      %vm695 = vcmask 1048064
      %v696 = vsel %vm695, %v675, 0.0
      %v697 = vsel %vm695, %v676, 0.0
      %v698 = vadd.f32 %v696, %v697
      %v699 = vsel %vm695, %v677, 0.0
      %v700 = vadd.f32 %v698, %v699
      %v701 = vsel %vm695, %v678, 0.0
      %v702 = vadd.f32 %v700, %v701
      %v703 = vsel %vm695, %v679, 0.0
      %v704 = vadd.f32 %v702, %v703
      %v705 = vsel %vm695, %v680, 0.0
      %v706 = vadd.f32 %v704, %v705
      %v707 = vsel %vm695, %v681, 0.0
      %v708 = vadd.f32 %v706, %v707
      %v709 = vsel %vm695, %v682, 0.0
      %v710 = vadd.f32 %v708, %v709
      %v711 = vrot.slane %v710, 4
      %v712 = vadd.f32 %v710, %v711
      %v713 = vrot.slane %v712, 2
      %v714 = vadd.f32 %v712, %v713
      %v715 = vrot.slane %v714, 1
      %v716 = vadd.f32 %v714, %v715
      %718 = vrot.lane.b32.xlu0 %v716, 64
      %v719 = vpop.permute.xlu0 %718
      %v720 = vsel %vm397, %v719, 0
      %722 = vmatprep.subr.mxu0 0.0
      %723 = vmatpush1.msra.mxu0 0.0
      %724 = vmatprep.subr.mxu0 0.0
      %725 = vmatpush1.msra.mxu0 0.0
      %726 = vmatprep.subr.mxu0 0.0
      %727 = vmatpush1.msra.mxu0 0.0
      %728 = vmatprep.subr.mxu0 0.0
      %729 = vmatpush1.msra.mxu0 0.0
      %730 = vmatprep.subr.mxu0 0.0
      %731 = vmatpush1.msra.mxu0 0.0
      %732 = vmatprep.subr.mxu0 0.0
      %733 = vmatpush1.msra.mxu0 0.0
      %734 = vmatprep.subr.mxu0 0.0
      %735 = vmatpush1.msra.mxu0 0.0
      %736 = vmatprep.subr.mxu0 0.0
      %737 = vmatpush1.msra.mxu0 0.0
      %738 = vmatprep.subr.mxu0 0.0
      %739 = vmatpush1.msra.mxu0 %v690
      %740 = vmatprep.subr.mxu0 0.0
      %741 = vmatpush1.msra.mxu0 %v689
      %742 = vmatprep.subr.mxu0 0.0
      %743 = vmatpush1.msra.mxu0 %v688
      %744 = vmatprep.subr.mxu0 0.0
      %745 = vmatpush1.msra.mxu0 %v687
      %746 = vmatprep.subr.mxu0 0.0
      %747 = vmatpush1.msra.mxu0 %v686
      %748 = vmatprep.subr.mxu0 0.0
      %749 = vmatpush1.msra.mxu0 %v685
      %750 = vmatprep.subr.mxu0 0.0
      %751 = vmatpush1.msra.mxu0 %v684
      %752 = vmatprep.subr.mxu0 0.0
      %753 = vmatpush1.msra.mxu0 %v683
      %754 = vmatprep.subr.mxu0 0.0
      %755 = vmatpush2.msra.mxu0 0.0
      %756 = vmatprep.subr.mxu0 0.0
      %757 = vmatpush2.msra.mxu0 0.0
      %758 = vmatprep.subr.mxu0 0.0
      %759 = vmatpush2.msra.mxu0 0.0
      %760 = vmatprep.subr.mxu0 0.0
      %761 = vmatpush2.msra.mxu0 0.0
      %762 = vmatprep.subr.mxu0 0.0
      %763 = vmatpush2.msra.mxu0 0.0
      %764 = vmatprep.subr.mxu0 0.0
      %765 = vmatpush2.msra.mxu0 0.0
      %766 = vmatprep.subr.mxu0 0.0
      %767 = vmatpush2.msra.mxu0 0.0
      %768 = vmatprep.subr.mxu0 0.0
      %769 = vmatpush2.msra.mxu0 0.0
      %770 = vmatprep.subr.mxu0 0.0
      %771 = vmatpush2.msra.mxu0 0.0
      %772 = vmatprep.subr.mxu0 0.0
      %773 = vmatpush2.msra.mxu0 0.0
      %774 = vmatprep.subr.mxu0 0.0
      %775 = vmatpush2.msra.mxu0 0.0
      %776 = vmatprep.subr.mxu0 0.0
      %777 = vmatpush2.msra.mxu0 0.0
      %778 = vmatprep.subr.mxu0 0.0
      %779 = vmatpush2.msra.mxu0 0.0
      %780 = vmatprep.subr.mxu0 0.0
      %781 = vmatpush2.msra.mxu0 0.0
      %782 = vmatprep.subr.mxu0 0.0
      %783 = vmatpush2.msra.mxu0 0.0
      %784 = vmatprep.subr.mxu0 0.0
      %785 = vmatpush2.msra.mxu0 0.0
      %786 = vmatprep.mubr.f32.mxu0 0.0
      %787 = vmatmul.mubr.f32.gmra.mxu0 %v720
      %v788 = vpop.f32.mrf.mxu0
      %v789 = vadd.f32 0.0, %v788
      %v790 = vpop.f32.mrf.mxu0
      %791 = vdwg.mxu0
      %v792 = vmul.f32 %v789, 0.0078125
      %vm793 = vcmask 261120
      %v795 = vsel %vm793, %v792, 0
      %797 = vmatprep.subr.mxu0 0.0
      %798 = vmatpush1.msra.mxu0 0.0
      %799 = vmatprep.subr.mxu0 0.0
      %800 = vmatpush1.msra.mxu0 0.0
      %801 = vmatprep.subr.mxu0 0.0
      %802 = vmatpush1.msra.mxu0 0.0
      %803 = vmatprep.subr.mxu0 0.0
      %804 = vmatpush1.msra.mxu0 0.0
      %805 = vmatprep.subr.mxu0 0.0
      %806 = vmatpush1.msra.mxu0 0.0
      %807 = vmatprep.subr.mxu0 0.0
      %808 = vmatpush1.msra.mxu0 0.0
      %809 = vmatprep.subr.mxu0 0.0
      %810 = vmatpush1.msra.mxu0 0.0
      %811 = vmatprep.subr.mxu0 0.0
      %812 = vmatpush1.msra.mxu0 0.0
      %813 = vmatprep.subr.mxu0 0.0
      %814 = vmatpush1.msra.mxu0 0.0
      %815 = vmatprep.subr.mxu0 0.0
      %816 = vmatpush1.msra.mxu0 0.0
      %817 = vmatprep.subr.mxu0 0.0
      %818 = vmatpush1.msra.mxu0 0.0
      %819 = vmatprep.subr.mxu0 0.0
      %820 = vmatpush1.msra.mxu0 0.0
      %821 = vmatprep.subr.mxu0 0.0
      %822 = vmatpush1.msra.mxu0 %v694
      %823 = vmatprep.subr.mxu0 0.0
      %824 = vmatpush1.msra.mxu0 %v693
      %825 = vmatprep.subr.mxu0 0.0
      %826 = vmatpush1.msra.mxu0 %v692
      %827 = vmatprep.subr.mxu0 0.0
      %828 = vmatpush1.msra.mxu0 %v691
      %829 = vmatprep.subr.mxu0 0.0
      %830 = vmatpush2.msra.mxu0 0.0
      %831 = vmatprep.subr.mxu0 0.0
      %832 = vmatpush2.msra.mxu0 0.0
      %833 = vmatprep.subr.mxu0 0.0
      %834 = vmatpush2.msra.mxu0 0.0
      %835 = vmatprep.subr.mxu0 0.0
      %836 = vmatpush2.msra.mxu0 0.0
      %837 = vmatprep.subr.mxu0 0.0
      %838 = vmatpush2.msra.mxu0 0.0
      %839 = vmatprep.subr.mxu0 0.0
      %840 = vmatpush2.msra.mxu0 0.0
      %841 = vmatprep.subr.mxu0 0.0
      %842 = vmatpush2.msra.mxu0 0.0
      %843 = vmatprep.subr.mxu0 0.0
      %844 = vmatpush2.msra.mxu0 0.0
      %845 = vmatprep.subr.mxu0 0.0
      %846 = vmatpush2.msra.mxu0 0.0
      %847 = vmatprep.subr.mxu0 0.0
      %848 = vmatpush2.msra.mxu0 0.0
      %849 = vmatprep.subr.mxu0 0.0
      %850 = vmatpush2.msra.mxu0 0.0
      %851 = vmatprep.subr.mxu0 0.0
      %852 = vmatpush2.msra.mxu0 0.0
      %853 = vmatprep.subr.mxu0 0.0
      %854 = vmatpush2.msra.mxu0 0.0
      %855 = vmatprep.subr.mxu0 0.0
      %856 = vmatpush2.msra.mxu0 0.0
      %857 = vmatprep.subr.mxu0 0.0
      %858 = vmatpush2.msra.mxu0 0.0
      %859 = vmatprep.subr.mxu0 0.0
      %860 = vmatpush2.msra.mxu0 0.0
      %861 = vmatprep.mubr.f32.mxu0 0.0
      %862 = vmatmul.mubr.f32.gmra.mxu0 %v795
      %v863 = vpop.f32.mrf.mxu0
      %v864 = vadd.f32 0.0, %v863
      %v865 = vpop.f32.mrf.mxu0
      %866 = vdwg.mxu0
      %v867 = vlaneseq
      %v868 = vshrl.u32 %v867, 7
      %v869 = vsub.s32 0, %v868
      %v870 = vrot.slane %v864, %v869
      %872 = vrot.lane.b32.xlu0 %v870, 64
      %v873 = vpop.permute.xlu0 %872
      %v875 = vsub.f32 %v675, %v873
      %v876 = vsub.f32 %v676, %v873
      %v877 = vsub.f32 %v677, %v873
      %v878 = vsub.f32 %v678, %v873
      %v879 = vsub.f32 %v679, %v873
      %v880 = vsub.f32 %v680, %v873
      %v881 = vsub.f32 %v681, %v873
      %v882 = vsub.f32 %v682, %v873
      %v883 = vmul.f32 %v875, %v875
      %v884 = vmul.f32 %v876, %v876
      %v885 = vmul.f32 %v877, %v877
      %v886 = vmul.f32 %v878, %v878
      %v887 = vmul.f32 %v879, %v879
      %v888 = vmul.f32 %v880, %v880
      %v889 = vmul.f32 %v881, %v881
      %v890 = vmul.f32 %v882, %v882
      %v891 = vsel %vm695, %v883, 0.0
      %v892 = vsel %vm695, %v884, 0.0
      %v893 = vadd.f32 %v891, %v892
      %v894 = vsel %vm695, %v885, 0.0
      %v895 = vadd.f32 %v893, %v894
      %v896 = vsel %vm695, %v886, 0.0
      %v897 = vadd.f32 %v895, %v896
      %v898 = vsel %vm695, %v887, 0.0
      %v899 = vadd.f32 %v897, %v898
      %v900 = vsel %vm695, %v888, 0.0
      %v901 = vadd.f32 %v899, %v900
      %v902 = vsel %vm695, %v889, 0.0
      %v903 = vadd.f32 %v901, %v902
      %v904 = vsel %vm695, %v890, 0.0
      %v905 = vadd.f32 %v903, %v904
      %v906 = vrot.slane %v905, 4
      %v907 = vadd.f32 %v905, %v906
      %v908 = vrot.slane %v907, 2
      %v909 = vadd.f32 %v907, %v908
      %v910 = vrot.slane %v909, 1
      %v911 = vadd.f32 %v909, %v910
      %913 = vrot.lane.b32.xlu0 %v911, 64
      %v914 = vpop.permute.xlu0 %913
      %v915 = vsel %vm397, %v914, 0
      %917 = vmatprep.subr.mxu0 0.0
      %918 = vmatpush1.msra.mxu0 0.0
      %919 = vmatprep.subr.mxu0 0.0
      %920 = vmatpush1.msra.mxu0 0.0
      %921 = vmatprep.subr.mxu0 0.0
      %922 = vmatpush1.msra.mxu0 0.0
      %923 = vmatprep.subr.mxu0 0.0
      %924 = vmatpush1.msra.mxu0 0.0
      %925 = vmatprep.subr.mxu0 0.0
      %926 = vmatpush1.msra.mxu0 0.0
      %927 = vmatprep.subr.mxu0 0.0
      %928 = vmatpush1.msra.mxu0 0.0
      %929 = vmatprep.subr.mxu0 0.0
      %930 = vmatpush1.msra.mxu0 0.0
      %931 = vmatprep.subr.mxu0 0.0
      %932 = vmatpush1.msra.mxu0 0.0
      %933 = vmatprep.subr.mxu0 0.0
      %934 = vmatpush1.msra.mxu0 %v690
      %935 = vmatprep.subr.mxu0 0.0
      %936 = vmatpush1.msra.mxu0 %v689
      %937 = vmatprep.subr.mxu0 0.0
      %938 = vmatpush1.msra.mxu0 %v688
      %939 = vmatprep.subr.mxu0 0.0
      %940 = vmatpush1.msra.mxu0 %v687
      %941 = vmatprep.subr.mxu0 0.0
      %942 = vmatpush1.msra.mxu0 %v686
      %943 = vmatprep.subr.mxu0 0.0
      %944 = vmatpush1.msra.mxu0 %v685
      %945 = vmatprep.subr.mxu0 0.0
      %946 = vmatpush1.msra.mxu0 %v684
      %947 = vmatprep.subr.mxu0 0.0
      %948 = vmatpush1.msra.mxu0 %v683
      %949 = vmatprep.subr.mxu0 0.0
      %950 = vmatpush2.msra.mxu0 0.0
      %951 = vmatprep.subr.mxu0 0.0
      %952 = vmatpush2.msra.mxu0 0.0
      %953 = vmatprep.subr.mxu0 0.0
      %954 = vmatpush2.msra.mxu0 0.0
      %955 = vmatprep.subr.mxu0 0.0
      %956 = vmatpush2.msra.mxu0 0.0
      %957 = vmatprep.subr.mxu0 0.0
      %958 = vmatpush2.msra.mxu0 0.0
      %959 = vmatprep.subr.mxu0 0.0
      %960 = vmatpush2.msra.mxu0 0.0
      %961 = vmatprep.subr.mxu0 0.0
      %962 = vmatpush2.msra.mxu0 0.0
      %963 = vmatprep.subr.mxu0 0.0
      %964 = vmatpush2.msra.mxu0 0.0
      %965 = vmatprep.subr.mxu0 0.0
      %966 = vmatpush2.msra.mxu0 0.0
      %967 = vmatprep.subr.mxu0 0.0
      %968 = vmatpush2.msra.mxu0 0.0
      %969 = vmatprep.subr.mxu0 0.0
      %970 = vmatpush2.msra.mxu0 0.0
      %971 = vmatprep.subr.mxu0 0.0
      %972 = vmatpush2.msra.mxu0 0.0
      %973 = vmatprep.subr.mxu0 0.0
      %974 = vmatpush2.msra.mxu0 0.0
      %975 = vmatprep.subr.mxu0 0.0
      %976 = vmatpush2.msra.mxu0 0.0
      %977 = vmatprep.subr.mxu0 0.0
      %978 = vmatpush2.msra.mxu0 0.0
      %979 = vmatprep.subr.mxu0 0.0
      %980 = vmatpush2.msra.mxu0 0.0
      %981 = vmatprep.mubr.f32.mxu0 0.0
      %982 = vmatmul.mubr.f32.gmra.mxu0 %v915
      %v983 = vpop.f32.mrf.mxu0
      %v984 = vadd.f32 0.0, %v983
      %v985 = vpop.f32.mrf.mxu0
      %986 = vdwg.mxu0
      %v987 = vmul.f32 %v984, 0.0078125
      %v988 = vld [vmem:[%s298] sm:$0x1]
      %v990 = vsel %vm793, %v987, 0
      %992 = vmatprep.subr.mxu0 0.0
      %993 = vmatpush1.msra.mxu0 0.0
      %994 = vmatprep.subr.mxu0 0.0
      %995 = vmatpush1.msra.mxu0 0.0
      %996 = vmatprep.subr.mxu0 0.0
      %997 = vmatpush1.msra.mxu0 0.0
      %998 = vmatprep.subr.mxu0 0.0
      %999 = vmatpush1.msra.mxu0 0.0
      %1000 = vmatprep.subr.mxu0 0.0
      %1001 = vmatpush1.msra.mxu0 0.0
      %1002 = vmatprep.subr.mxu0 0.0
      %1003 = vmatpush1.msra.mxu0 0.0
      %1004 = vmatprep.subr.mxu0 0.0
      %1005 = vmatpush1.msra.mxu0 0.0
      %1006 = vmatprep.subr.mxu0 0.0
      %1007 = vmatpush1.msra.mxu0 0.0
      %1008 = vmatprep.subr.mxu0 0.0
      %1009 = vmatpush1.msra.mxu0 0.0
      %1010 = vmatprep.subr.mxu0 0.0
      %1011 = vmatpush1.msra.mxu0 0.0
      %1012 = vmatprep.subr.mxu0 0.0
      %1013 = vmatpush1.msra.mxu0 0.0
      %1014 = vmatprep.subr.mxu0 0.0
      %1015 = vmatpush1.msra.mxu0 0.0
      %1016 = vmatprep.subr.mxu0 0.0
      %1017 = vmatpush1.msra.mxu0 %v694
      %1018 = vmatprep.subr.mxu0 0.0
      %1019 = vmatpush1.msra.mxu0 %v693
      %1020 = vmatprep.subr.mxu0 0.0
      %1021 = vmatpush1.msra.mxu0 %v692
      %1022 = vmatprep.subr.mxu0 0.0
      %1023 = vmatpush1.msra.mxu0 %v691
      %1024 = vmatprep.subr.mxu0 0.0
      %1025 = vmatpush2.msra.mxu0 0.0
      %1026 = vmatprep.subr.mxu0 0.0
      %1027 = vmatpush2.msra.mxu0 0.0
      %1028 = vmatprep.subr.mxu0 0.0
      %1029 = vmatpush2.msra.mxu0 0.0
      %1030 = vmatprep.subr.mxu0 0.0
      %1031 = vmatpush2.msra.mxu0 0.0
      %1032 = vmatprep.subr.mxu0 0.0
      %1033 = vmatpush2.msra.mxu0 0.0
      %1034 = vmatprep.subr.mxu0 0.0
      %1035 = vmatpush2.msra.mxu0 0.0
      %1036 = vmatprep.subr.mxu0 0.0
      %1037 = vmatpush2.msra.mxu0 0.0
      %1038 = vmatprep.subr.mxu0 0.0
      %1039 = vmatpush2.msra.mxu0 0.0
      %1040 = vmatprep.subr.mxu0 0.0
      %1041 = vmatpush2.msra.mxu0 0.0
      %1042 = vmatprep.subr.mxu0 0.0
      %1043 = vmatpush2.msra.mxu0 0.0
      %1044 = vmatprep.subr.mxu0 0.0
      %1045 = vmatpush2.msra.mxu0 0.0
      %1046 = vmatprep.subr.mxu0 0.0
      %1047 = vmatpush2.msra.mxu0 0.0
      %1048 = vmatprep.subr.mxu0 0.0
      %1049 = vmatpush2.msra.mxu0 0.0
      %1050 = vmatprep.subr.mxu0 0.0
      %1051 = vmatpush2.msra.mxu0 0.0
      %1052 = vmatprep.subr.mxu0 0.0
      %1053 = vmatpush2.msra.mxu0 0.0
      %1054 = vmatprep.subr.mxu0 0.0
      %1055 = vmatpush2.msra.mxu0 0.0
      %1056 = vmatprep.mubr.f32.mxu0 0.0
      %1057 = vmatmul.mubr.f32.gmra.mxu0 %v990
      %v1058 = vpop.f32.mrf.mxu0
      %v1059 = vadd.f32 1e-06, %v1058
      %v1060 = vpop.f32.mrf.mxu0
      %1061 = vdwg.mxu0
      %v1062 = vrsqrt.pop %v1059
      %v1063 = vlaneseq
      %v1064 = vshrl.u32 %v1063, 7
      %v1065 = vsub.s32 0, %v1064
      %v1066 = vrot.slane %v1062, %v1065
      %1068 = vrot.lane.b32.xlu0 %v1066, 64
      %v1069 = vpop.permute.xlu0 %1068
      %v1071 = vmul.f32 %v875, %v1069
      %v1072 = vmul.f32 %v876, %v1069
      %v1073 = vmul.f32 %v877, %v1069
      %v1074 = vmul.f32 %v878, %v1069
      %v1075 = vmul.f32 %v879, %v1069
      %v1076 = vmul.f32 %v880, %v1069
      %v1077 = vmul.f32 %v881, %v1069
      %v1078 = vmul.f32 %v882, %v1069
      %v1080 = vlaneseq
      %v1081 = vshrl.u32 %v1080, 7
      %v1082 = vsub.s32 0, %v1081
      %v1083 = vrot.slane %v988, %v1082
      %1093 = vrot.lane.b32.xlu0 %v1071, 64
      %v1094 = vpop.permute.xlu0 %1093
      %1095 = vrot.lane.b32.xlu0 %v1072, 64
      %v1096 = vpop.permute.xlu0 %1095
      %1097 = vrot.lane.b32.xlu0 %v1073, 64
      %v1098 = vpop.permute.xlu0 %1097
      %1099 = vrot.lane.b32.xlu0 %v1074, 64
      %v1100 = vpop.permute.xlu0 %1099
      %1101 = vrot.lane.b32.xlu0 %v1075, 64
      %v1102 = vpop.permute.xlu0 %1101
      %1103 = vrot.lane.b32.xlu0 %v1076, 64
      %v1104 = vpop.permute.xlu0 %1103
      %1105 = vrot.lane.b32.xlu0 %v1077, 64
      %v1106 = vpop.permute.xlu0 %1105
      %1107 = vrot.lane.b32.xlu0 %v1078, 64
      %v1108 = vpop.permute.xlu0 %1107
      %v1117 = vmul.f32 %v1083, %v1094
      %v1118 = vmul.f32 %v1083, %v1096
      %v1119 = vmul.f32 %v1083, %v1098
      %v1120 = vmul.f32 %v1083, %v1100
      %v1121 = vmul.f32 %v1083, %v1102
      %v1122 = vmul.f32 %v1083, %v1104
      %v1123 = vmul.f32 %v1083, %v1106
      %v1124 = vmul.f32 %v1083, %v1108
      %v1125 = vld [vmem:[%s301] sm:$0x1]
      %v1127 = vlaneseq
      %v1128 = vshrl.u32 %v1127, 7
      %v1129 = vsub.s32 0, %v1128
      %v1130 = vrot.slane %v1125, %v1129
      %v1132 = vadd.f32 %v1117, %v1130
      %v1133 = vadd.f32 %v1118, %v1130
      %v1134 = vadd.f32 %v1119, %v1130
      %v1135 = vadd.f32 %v1120, %v1130
      %v1136 = vadd.f32 %v1121, %v1130
      %v1137 = vadd.f32 %v1122, %v1130
      %v1138 = vadd.f32 %v1123, %v1130
      %v1139 = vadd.f32 %v1124, %v1130
      %vm1140 = vcmp.ge.f32.partialorder %v1132, 0.0
      %vm1141 = vcmp.ge.f32.partialorder %v1133, 0.0
      %vm1142 = vcmp.ge.f32.partialorder %v1134, 0.0
      %vm1143 = vcmp.ge.f32.partialorder %v1135, 0.0
      %vm1144 = vcmp.ge.f32.partialorder %v1136, 0.0
      %vm1145 = vcmp.ge.f32.partialorder %v1137, 0.0
      %vm1146 = vcmp.ge.f32.partialorder %v1138, 0.0
      %vm1147 = vcmp.ge.f32.partialorder %v1139, 0.0
      %v1148 = vmul.f32 %v1132, 0.2
      %v1149 = vmul.f32 %v1133, 0.2
      %v1150 = vmul.f32 %v1134, 0.2
      %v1151 = vmul.f32 %v1135, 0.2
      %v1152 = vmul.f32 %v1136, 0.2
      %v1153 = vmul.f32 %v1137, 0.2
      %v1154 = vmul.f32 %v1138, 0.2
      %v1155 = vmul.f32 %v1139, 0.2
      %v1156 = vsel %vm1140, %v1132, %v1148
      %v1157 = vsel %vm1141, %v1133, %v1149
      %v1158 = vsel %vm1142, %v1134, %v1150
      %v1159 = vsel %vm1143, %v1135, %v1151
      %v1160 = vsel %vm1144, %v1136, %v1152
      %v1161 = vsel %vm1145, %v1137, %v1153
      %v1162 = vsel %vm1146, %v1138, %v1154
      %v1163 = vsel %vm1147, %v1139, %v1155
      %1164 = vst.msk [vmem:[%s306] sm:$0xff] %vm397, %v1156
      %1165 = vst.msk [vmem:[%s306 + $0x8] sm:$0xff] %vm397, %v1157
      %1166 = vst.msk [vmem:[%s306 + $0x10] sm:$0xff] %vm397, %v1158
      %1167 = vst.msk [vmem:[%s306 + $0x18] sm:$0xff] %vm397, %v1159
      %1168 = vst.msk [vmem:[%s306 + $0x20] sm:$0xff] %vm397, %v1160
      %1169 = vst.msk [vmem:[%s306 + $0x28] sm:$0xff] %vm397, %v1161
      %1170 = vst.msk [vmem:[%s306 + $0x30] sm:$0xff] %vm397, %v1162
      %1171 = vst.msk [vmem:[%s306 + $0x38] sm:$0xff] %vm397, %v1163
      %p1172 = scmp.lt.s32.totalorder %s18, 1
      %s1173 = scalar_select %p1172, %s18, 1
      %s1174 = smul.addr %s1173, 8
      %s1175 = smul.addr %s1174, 8
      %s1176 = scalar_lea.vmem %s7, %s1175
      // Predicated region
      $region49: #{conv_decoder_forward.5} parent=47 // pred_check
        %p1177 = pneg %p198
      $region50: #{conv_decoder_forward.5} parent=47 // pred_check_branch
        %1179 = sbr.rel (%p1177) target = $region52
      $region51: #{conv_decoder_forward.5} parent=47 // pred_region
        _
      $region52: #{conv_decoder_forward.5} parent=47 // pred_fallthru
        _
    $region48: #{conv_decoder_forward.5} parent=5 // pred_fallthru
      _
    %p1180 = scmp.le.s32.totalorder 2, %s13
    // Predicated region
    $region53: #{conv_decoder_forward.5} parent=5 // pred_check
      %p1181 = pneg %p1180
    $region54: #{conv_decoder_forward.5} parent=5 // pred_check_branch
      %1183 = sbr.rel (%p1181) target = $region56
    $region55: #{conv_decoder_forward.5} parent=5 // pred_region
      %s1184 = ssub.s32 %s13, 2
      // Predicated region
      $region57: #{conv_decoder_forward.5} parent=55 // pred_check
        %p1185 = pneg %p204
      $region58: #{conv_decoder_forward.5} parent=55 // pred_check_branch
        %1187 = sbr.rel (%p1185) target = $region60
      $region59: #{conv_decoder_forward.5} parent=55 // pred_region
        %p1188 = scmp.lt.s32.totalorder %s19, 1
        %s1189 = scalar_select %p1188, %s19, 1
        %s1190 = smul.addr %s1189, 8
        %s1191 = smul.addr %s1190, 8
        %s1192 = scalar_lea.vmem %s7, %s1191
      $region60: #{conv_decoder_forward.5} parent=55 // pred_fallthru
        _
    $region56: #{conv_decoder_forward.5} parent=5 // pred_fallthru
      _
  $region6: #{conv_decoder_forward.5} parent=0 // loop_footer
    %s17 = sadd.s32 1, %s13
  $region7: #{conv_decoder_forward.5} parent=0 // loop_footer_branch
    %12 = sbr.rel target = $region3
  $region8: #{conv_decoder_forward.5} parent=0 // loop_exit
    _

// kernel: conv_decoder_forward.7
$region0: #{conv_decoder_forward.7}
  #allocation0 [shape = 'u32[]', space=smem, size = 0x4, offset = 0x4, fixed_abs, tag = 'smem constant byte address 0x4 - core index']
  #allocation1 [shape = 'u32[144,128]{1,0:T(1,128)}', space=vmem, size = 0x12000, scoped, tag = 'internal scratch']
  %s0 = inlined_call_operand.vmem [shape: f32[2,16,16,64], index: 0, kind: input, shape index: {}]
  %s1 = inlined_call_operand.vmem [shape: f32[192,9], index: 1, kind: input, shape index: {}]
  %s2 = inlined_call_operand.vmem [shape: f32[1,3], index: 2, kind: input, shape index: {}]
  %s3 = inlined_call_operand.vmem [shape: f32[2,16,16,3], index: 3, kind: output, shape index: {}]
  %s4 = sld [smem:[#allocation0]]
  $region45: #{conv_decoder_forward.7} parent=0
    _
  %s6 = ssub.s32 1, %s4
  %s7 = scalar_select 0, %s6, %s4
  loop: start=0, step=1, limit=4
  $region2: #{conv_decoder_forward.7} parent=0 // loop_pre_header
    _
  $region3: #{conv_decoder_forward.7} parent=0 // loop_header
    %s9 = sphi 0, %s13
    %p10 = scmp.ge.s32.totalorder %s9, 4
    %s19 = sphi 0, %s21
    %s22 = sphi 0, %s19
    %s23 = sphi 0, %s22
    %s39 = sphi 0, %s23
    %s43 = sphi 0, %s43
    %s45 = sphi 0, %s43
    %s46 = sphi 0, %s45
    %s60 = sphi 0, %s46
    %s64 = sphi 0, %s64
    %s66 = sphi 0, %s64
    %s67 = sphi 0, %s66
    %s81 = sphi 0, %s67
    %s87 = sphi 0, %s89
    %s90 = sphi 0, %s87
    %s91 = sphi 0, %s90
    %s107 = sphi 0, %s91
  $region4: #{conv_decoder_forward.7} parent=0 // loop_header_branch
    %12 = sbr.rel (%p10) target = $region8
  $region5: #{conv_decoder_forward.7} parent=0 // loop_body
    %s14 = ssub.s32 %s9, 1
    %s15 = ssub.s32 %s9, 2
    %s16 = sadd.s32 %s9, 1
    %s17 = ssub.s32 %s9, %s16
    %p18 = scmp.eq.s32.totalorder %s17, 0
    %s20 = sadd.s32 %s19, 1
    %s21 = scalar_select %p18, %s19, %s20
    %p24 = pneg %p18
    %p25 = scmp.eq.s32.totalorder %s9, 1
    %p26 = por %p24, %p25
    %p27 = scmp.ne.s32.totalorder %s19, %s22
    %p28 = scmp.eq.s32.totalorder %s9, 0
    %p29 = por %p27, %p28
    %p30 = scmp.ne.s32.totalorder %s19, %s22
    %p31 = scmp.eq.s32.totalorder %s14, 1
    %p32 = por %p30, %p31
    %p33 = scmp.ne.s32.totalorder %s22, %s23
    %p34 = scmp.eq.s32.totalorder %s14, 0
    %p35 = por %p33, %p34
    %p36 = scmp.ne.s32.totalorder %s22, %s23
    %p37 = scmp.eq.s32.totalorder %s15, 1
    %p38 = por %p36, %p37
    %p40 = scmp.ne.s32.totalorder %s23, %s39
    %p41 = scmp.eq.s32.totalorder %s15, 0
    %p42 = por %p40, %p41
    %s44 = sadd.s32 %s43, 1
    %p47 = scmp.eq.s32.totalorder %s9, 1
    %p48 = scmp.ne.s32.totalorder %s43, %s45
    %p49 = scmp.eq.s32.totalorder %s9, 0
    %p50 = por %p48, %p49
    %p51 = scmp.ne.s32.totalorder %s43, %s45
    %p52 = scmp.eq.s32.totalorder %s14, 1
    %p53 = por %p51, %p52
    %p54 = scmp.ne.s32.totalorder %s45, %s46
    %p55 = scmp.eq.s32.totalorder %s14, 0
    %p56 = por %p54, %p55
    %p57 = scmp.ne.s32.totalorder %s45, %s46
    %p58 = scmp.eq.s32.totalorder %s15, 1
    %p59 = por %p57, %p58
    %p61 = scmp.ne.s32.totalorder %s46, %s60
    %p62 = scmp.eq.s32.totalorder %s15, 0
    %p63 = por %p61, %p62
    %s65 = sadd.s32 %s64, 1
    %p68 = scmp.eq.s32.totalorder %s9, 1
    %p69 = scmp.ne.s32.totalorder %s64, %s66
    %p70 = scmp.eq.s32.totalorder %s9, 0
    %p71 = por %p69, %p70
    %p72 = scmp.ne.s32.totalorder %s64, %s66
    %p73 = scmp.eq.s32.totalorder %s14, 1
    %p74 = por %p72, %p73
    %p75 = scmp.ne.s32.totalorder %s66, %s67
    %p76 = scmp.eq.s32.totalorder %s14, 0
    %p77 = por %p75, %p76
    %p78 = scmp.ne.s32.totalorder %s66, %s67
    %p79 = scmp.eq.s32.totalorder %s15, 1
    %p80 = por %p78, %p79
    %p82 = scmp.ne.s32.totalorder %s67, %s81
    %p83 = scmp.eq.s32.totalorder %s15, 0
    %p84 = por %p82, %p83
    %s85 = ssub.s32 %s9, %s16
    %p86 = scmp.eq.s32.totalorder %s85, 0
    %s88 = sadd.s32 %s87, 1
    %s89 = scalar_select %p86, %s87, %s88
    %p92 = pneg %p86
    %p93 = scmp.eq.s32.totalorder %s9, 1
    %p94 = por %p92, %p93
    %p95 = scmp.ne.s32.totalorder %s87, %s90
    %p96 = scmp.eq.s32.totalorder %s9, 0
    %p97 = por %p95, %p96
    %p98 = scmp.ne.s32.totalorder %s87, %s90
    %p99 = scmp.eq.s32.totalorder %s14, 1
    %p100 = por %p98, %p99
    %p101 = scmp.ne.s32.totalorder %s90, %s91
    %p102 = scmp.eq.s32.totalorder %s14, 0
    %p103 = por %p101, %p102
    %p104 = scmp.ne.s32.totalorder %s90, %s91
    %p105 = scmp.eq.s32.totalorder %s15, 1
    %p106 = por %p104, %p105
    %p108 = scmp.ne.s32.totalorder %s91, %s107
    %p109 = scmp.eq.s32.totalorder %s15, 0
    %p110 = por %p108, %p109
    %p111 = scmp.le.s32.totalorder 1, %s9
    %p112 = scmp.lt.s32.totalorder %s9, 3
    %p113 = pnand %p111, %p112
    %p114 = pneg %p113
    // Predicated region
    $region9: #{conv_decoder_forward.7} parent=5 // pred_check
      _
    $region10: #{conv_decoder_forward.7} parent=5 // pred_check_branch
      %116 = sbr.rel (%p113) target = $region12
    $region11: #{conv_decoder_forward.7} parent=5 // pred_region
      %s117 = ssub.s32 %s9, 1
      // Predicated region
      $region13: #{conv_decoder_forward.7} parent=11 // pred_check
        %p118 = pneg %p56
      $region14: #{conv_decoder_forward.7} parent=11 // pred_check_branch
        %120 = sbr.rel (%p118) target = $region16
      $region15: #{conv_decoder_forward.7} parent=11 // pred_region
        _
      $region16: #{conv_decoder_forward.7} parent=11 // pred_fallthru
        _
      // Predicated region
      $region17: #{conv_decoder_forward.7} parent=11 // pred_check
        %p121 = pneg %p77
      $region18: #{conv_decoder_forward.7} parent=11 // pred_check_branch
        %123 = sbr.rel (%p121) target = $region20
      $region19: #{conv_decoder_forward.7} parent=11 // pred_region
        _
      $region20: #{conv_decoder_forward.7} parent=11 // pred_fallthru
        _
    $region12: #{conv_decoder_forward.7} parent=5 // pred_fallthru
      _
    %p124 = scmp.lt.s32.totalorder %s9, 2
    // Predicated region
    $region21: #{conv_decoder_forward.7} parent=5 // pred_check
      %p125 = pneg %p124
    $region22: #{conv_decoder_forward.7} parent=5 // pred_check_branch
      %127 = sbr.rel (%p125) target = $region24
    $region23: #{conv_decoder_forward.7} parent=5 // pred_region
      // Predicated region
      $region25: #{conv_decoder_forward.7} parent=23 // pred_check
        %p128 = pneg %p29
      $region26: #{conv_decoder_forward.7} parent=23 // pred_check_branch
        %130 = sbr.rel (%p128) target = $region28
      $region27: #{conv_decoder_forward.7} parent=23 // pred_region
        %p131 = scmp.lt.s32.totalorder %s9, 1
        %s132 = scalar_select %p131, %s9, 1
        %s133 = smul.addr %s132, 32
        %s134 = smul.addr %s133, 8
        %s135 = scalar_lea.vmem %s0, %s134
      $region28: #{conv_decoder_forward.7} parent=23 // pred_fallthru
        _
    $region24: #{conv_decoder_forward.7} parent=5 // pred_fallthru
      _
    %p136 = scmp.le.s32.totalorder 1, %s9
    %p137 = scmp.lt.s32.totalorder %s9, 3
    %p138 = pnand %p136, %p137
    %p139 = pneg %p138
    // Predicated region
    $region29: #{conv_decoder_forward.7} parent=5 // pred_check
      _
    $region30: #{conv_decoder_forward.7} parent=5 // pred_check_branch
      %141 = sbr.rel (%p138) target = $region32
    $region31: #{conv_decoder_forward.7} parent=5 // pred_region
      %s142 = ssub.s32 %s9, 1
      %p143 = scmp.lt.s32.totalorder %s14, 1
      %s144 = scalar_select %p143, %s14, 1
      %s145 = smul.addr %s144, 32
      %s146 = smul.addr %s145, 8
      %s147 = scalar_lea.vmem %s0, %s146
      %p148 = pneg %p35
      %p149 = pneg %p32
      %p150 = pneg %p56
      %p151 = pneg %p53
      %p152 = pneg %p77
      %p153 = pneg %p74
      %p154 = pneg %p103
      %p155 = pneg %p100
      %p156 = scmp.lt.s32.totalorder %s14, 1
      %s157 = scalar_select %p156, %s14, 1
      %s158 = smul.addr %s157, 32
      %s159 = smul.addr %s158, 8
      %s160 = scalar_lea.vmem %s3, %s159
      %p161 = scmp.lt.s32.totalorder %s14, 1
      %s162 = scalar_select %p161, %s14, 1
      %s163 = smul.addr %s162, 32
      %s164 = smul.addr %s163, 8
      %s165 = scalar_lea.vmem %s0, %s164
      %p166 = scmp.lt.s32.totalorder %s14, 1
      %s167 = scalar_select %p166, %s14, 1
      %s168 = smul.addr %s167, 32
      %s169 = smul.addr %s168, 8
      %s170 = scalar_lea.vmem %s3, %s169
      %v171 = vld [vmem:[%s165] sm:$0xff]
      %v172 = vld [vmem:[%s165 + $0x8] sm:$0xff]
      %v173 = vld [vmem:[%s165 + $0x10] sm:$0xff]
      %v174 = vld [vmem:[%s165 + $0x18] sm:$0xff]
      %v175 = vld [vmem:[%s165 + $0x20] sm:$0xff]
      %v176 = vld [vmem:[%s165 + $0x28] sm:$0xff]
      %v177 = vld [vmem:[%s165 + $0x30] sm:$0xff]
      %v178 = vld [vmem:[%s165 + $0x38] sm:$0xff]
      %v179 = vld [vmem:[%s165 + $0x40] sm:$0xff]
      %v180 = vld [vmem:[%s165 + $0x48] sm:$0xff]
      %v181 = vld [vmem:[%s165 + $0x50] sm:$0xff]
      %v182 = vld [vmem:[%s165 + $0x58] sm:$0xff]
      %v183 = vld [vmem:[%s165 + $0x60] sm:$0xff]
      %v184 = vld [vmem:[%s165 + $0x68] sm:$0xff]
      %v185 = vld [vmem:[%s165 + $0x70] sm:$0xff]
      %v186 = vld [vmem:[%s165 + $0x78] sm:$0xff]
      %v187 = vld [vmem:[%s165 + $0x80] sm:$0xff]
      %v188 = vld [vmem:[%s165 + $0x88] sm:$0xff]
      %v189 = vld [vmem:[%s165 + $0x90] sm:$0xff]
      %v190 = vld [vmem:[%s165 + $0x98] sm:$0xff]
      %v191 = vld [vmem:[%s165 + $0xa0] sm:$0xff]
      %v192 = vld [vmem:[%s165 + $0xa8] sm:$0xff]
      %v193 = vld [vmem:[%s165 + $0xb0] sm:$0xff]
      %v194 = vld [vmem:[%s165 + $0xb8] sm:$0xff]
      %v195 = vld [vmem:[%s165 + $0xc0] sm:$0xff]
      %v196 = vld [vmem:[%s165 + $0xc8] sm:$0xff]
      %v197 = vld [vmem:[%s165 + $0xd0] sm:$0xff]
      %v198 = vld [vmem:[%s165 + $0xd8] sm:$0xff]
      %v199 = vld [vmem:[%s165 + $0xe0] sm:$0xff]
      %v200 = vld [vmem:[%s165 + $0xe8] sm:$0xff]
      %v201 = vld [vmem:[%s165 + $0xf0] sm:$0xff]
      %v202 = vld [vmem:[%s165 + $0xf8] sm:$0xff]
      %vm235 = vcmask 1040384
      %v236 = vrot.slane %v171, 7
      %v237 = vrot.slane %v172, 7
      %v238 = vsel %vm235, %v236, %v237
      %v239 = vrot.slane %v173, 7
      %v240 = vrot.slane %v174, 7
      %v241 = vsel %vm235, %v239, %v240
      %v242 = vrot.slane %v175, 7
      %v243 = vrot.slane %v176, 7
      %v244 = vsel %vm235, %v242, %v243
      %v245 = vrot.slane %v177, 7
      %v246 = vrot.slane %v178, 7
      %v247 = vsel %vm235, %v245, %v246
      %v248 = vrot.slane %v179, 7
      %v249 = vrot.slane %v180, 7
      %v250 = vsel %vm235, %v248, %v249
      %v251 = vrot.slane %v181, 7
      %v252 = vrot.slane %v182, 7
      %v253 = vsel %vm235, %v251, %v252
      %v254 = vrot.slane %v183, 7
      %v255 = vrot.slane %v184, 7
      %v256 = vsel %vm235, %v254, %v255
      %v257 = vrot.slane %v185, 7
      %v258 = vrot.slane %v186, 7
      %v259 = vsel %vm235, %v257, %v258
      %v260 = vrot.slane %v187, 7
      %v261 = vrot.slane %v188, 7
      %v262 = vsel %vm235, %v260, %v261
      %v263 = vrot.slane %v189, 7
      %v264 = vrot.slane %v190, 7
      %v265 = vsel %vm235, %v263, %v264
      %v266 = vrot.slane %v191, 7
      %v267 = vrot.slane %v192, 7
      %v268 = vsel %vm235, %v266, %v267
      %v269 = vrot.slane %v193, 7
      %v270 = vrot.slane %v194, 7
      %v271 = vsel %vm235, %v269, %v270
      %v272 = vrot.slane %v195, 7
      %v273 = vrot.slane %v196, 7
      %v274 = vsel %vm235, %v272, %v273
      %v275 = vrot.slane %v197, 7
      %v276 = vrot.slane %v198, 7
      %v277 = vsel %vm235, %v275, %v276
      %v278 = vrot.slane %v199, 7
      %v279 = vrot.slane %v200, 7
      %v280 = vsel %vm235, %v278, %v279
      %v281 = vrot.slane %v201, 7
      %v282 = vrot.slane %v202, 7
      %v283 = vsel %vm235, %v281, %v282
      %v316 = vsel %vm235, 0.0, %v236
      %v317 = vsel %vm235, 0.0, %v239
      %v318 = vsel %vm235, 0.0, %v242
      %v319 = vsel %vm235, 0.0, %v245
      %v320 = vsel %vm235, 0.0, %v248
      %v321 = vsel %vm235, 0.0, %v251
      %v322 = vsel %vm235, 0.0, %v254
      %v323 = vsel %vm235, 0.0, %v257
      %v324 = vsel %vm235, 0.0, %v260
      %v325 = vsel %vm235, 0.0, %v263
      %v326 = vsel %vm235, 0.0, %v266
      %v327 = vsel %vm235, 0.0, %v269
      %v328 = vsel %vm235, 0.0, %v272
      %v329 = vsel %vm235, 0.0, %v275
      %v330 = vsel %vm235, 0.0, %v278
      %v331 = vsel %vm235, 0.0, %v281
      %vm332 = vcmask 1046528
      %v333 = vrot.slane %v171, 1
      %v334 = vrot.slane %v172, 1
      %v335 = vsel %vm332, %v333, %v334
      %v336 = vrot.slane %v173, 1
      %v337 = vrot.slane %v174, 1
      %v338 = vsel %vm332, %v336, %v337
      %v339 = vrot.slane %v175, 1
      %v340 = vrot.slane %v176, 1
      %v341 = vsel %vm332, %v339, %v340
      %v342 = vrot.slane %v177, 1
      %v343 = vrot.slane %v178, 1
      %v344 = vsel %vm332, %v342, %v343
      %v345 = vrot.slane %v179, 1
      %v346 = vrot.slane %v180, 1
      %v347 = vsel %vm332, %v345, %v346
      %v348 = vrot.slane %v181, 1
      %v349 = vrot.slane %v182, 1
      %v350 = vsel %vm332, %v348, %v349
      %v351 = vrot.slane %v183, 1
      %v352 = vrot.slane %v184, 1
      %v353 = vsel %vm332, %v351, %v352
      %v354 = vrot.slane %v185, 1
      %v355 = vrot.slane %v186, 1
      %v356 = vsel %vm332, %v354, %v355
      %v357 = vrot.slane %v187, 1
      %v358 = vrot.slane %v188, 1
      %v359 = vsel %vm332, %v357, %v358
      %v360 = vrot.slane %v189, 1
      %v361 = vrot.slane %v190, 1
      %v362 = vsel %vm332, %v360, %v361
      %v363 = vrot.slane %v191, 1
      %v364 = vrot.slane %v192, 1
      %v365 = vsel %vm332, %v363, %v364
      %v366 = vrot.slane %v193, 1
      %v367 = vrot.slane %v194, 1
      %v368 = vsel %vm332, %v366, %v367
      %v369 = vrot.slane %v195, 1
      %v370 = vrot.slane %v196, 1
      %v371 = vsel %vm332, %v369, %v370
      %v372 = vrot.slane %v197, 1
      %v373 = vrot.slane %v198, 1
      %v374 = vsel %vm332, %v372, %v373
      %v375 = vrot.slane %v199, 1
      %v376 = vrot.slane %v200, 1
      %v377 = vsel %vm332, %v375, %v376
      %v378 = vrot.slane %v201, 1
      %v379 = vrot.slane %v202, 1
      %v380 = vsel %vm332, %v378, %v379
      %v397 = vsel %vm332, %v334, 0.0
      %v398 = vsel %vm332, %v337, 0.0
      %v399 = vsel %vm332, %v340, 0.0
      %v400 = vsel %vm332, %v343, 0.0
      %v401 = vsel %vm332, %v346, 0.0
      %v402 = vsel %vm332, %v349, 0.0
      %v403 = vsel %vm332, %v352, 0.0
      %v404 = vsel %vm332, %v355, 0.0
      %v405 = vsel %vm332, %v358, 0.0
      %v406 = vsel %vm332, %v361, 0.0
      %v407 = vsel %vm332, %v364, 0.0
      %v408 = vsel %vm332, %v367, 0.0
      %v409 = vsel %vm332, %v370, 0.0
      %v410 = vsel %vm332, %v373, 0.0
      %v411 = vsel %vm332, %v376, 0.0
      %v412 = vsel %vm332, %v379, 0.0
      %413 = vrot.lane.b32.xlu0 %v171, 64
      %v414 = vpop.permute.xlu0 %413
      %415 = vrot.lane.b32.xlu0 %v172, 64
      %v416 = vpop.permute.xlu0 %415
      %417 = vrot.lane.b32.xlu0 %v173, 64
      %v418 = vpop.permute.xlu0 %417
      %419 = vrot.lane.b32.xlu0 %v174, 64
      %v420 = vpop.permute.xlu0 %419
      %421 = vrot.lane.b32.xlu0 %v175, 64
      %v422 = vpop.permute.xlu0 %421
      %423 = vrot.lane.b32.xlu0 %v176, 64
      %v424 = vpop.permute.xlu0 %423
      %425 = vrot.lane.b32.xlu0 %v177, 64
      %v426 = vpop.permute.xlu0 %425
      %427 = vrot.lane.b32.xlu0 %v178, 64
      %v428 = vpop.permute.xlu0 %427
      %429 = vrot.lane.b32.xlu0 %v179, 64
      %v430 = vpop.permute.xlu0 %429
      %431 = vrot.lane.b32.xlu0 %v180, 64
      %v432 = vpop.permute.xlu0 %431
      %433 = vrot.lane.b32.xlu0 %v181, 64
      %v434 = vpop.permute.xlu0 %433
      %435 = vrot.lane.b32.xlu0 %v182, 64
      %v436 = vpop.permute.xlu0 %435
      %437 = vrot.lane.b32.xlu0 %v183, 64
      %v438 = vpop.permute.xlu0 %437
      %439 = vrot.lane.b32.xlu0 %v184, 64
      %v440 = vpop.permute.xlu0 %439
      %441 = vrot.lane.b32.xlu0 %v185, 64
      %v442 = vpop.permute.xlu0 %441
      %443 = vrot.lane.b32.xlu0 %v186, 64
      %v444 = vpop.permute.xlu0 %443
      %445 = vrot.lane.b32.xlu0 %v187, 64
      %v446 = vpop.permute.xlu0 %445
      %447 = vrot.lane.b32.xlu0 %v188, 64
      %v448 = vpop.permute.xlu0 %447
      %449 = vrot.lane.b32.xlu0 %v189, 64
      %v450 = vpop.permute.xlu0 %449
      %451 = vrot.lane.b32.xlu0 %v190, 64
      %v452 = vpop.permute.xlu0 %451
      %453 = vrot.lane.b32.xlu0 %v191, 64
      %v454 = vpop.permute.xlu0 %453
      %455 = vrot.lane.b32.xlu0 %v192, 64
      %v456 = vpop.permute.xlu0 %455
      %457 = vrot.lane.b32.xlu0 %v193, 64
      %v458 = vpop.permute.xlu0 %457
      %459 = vrot.lane.b32.xlu0 %v194, 64
      %v460 = vpop.permute.xlu0 %459
      %461 = vrot.lane.b32.xlu0 %v195, 64
      %v462 = vpop.permute.xlu0 %461
      %463 = vrot.lane.b32.xlu0 %v196, 64
      %v464 = vpop.permute.xlu0 %463
      %465 = vrot.lane.b32.xlu0 %v197, 64
      %v466 = vpop.permute.xlu0 %465
      %467 = vrot.lane.b32.xlu0 %v198, 64
      %v468 = vpop.permute.xlu0 %467
      %469 = vrot.lane.b32.xlu0 %v199, 64
      %v470 = vpop.permute.xlu0 %469
      %471 = vrot.lane.b32.xlu0 %v200, 64
      %v472 = vpop.permute.xlu0 %471
      %473 = vrot.lane.b32.xlu0 %v201, 64
      %v474 = vpop.permute.xlu0 %473
      %475 = vrot.lane.b32.xlu0 %v202, 64
      %v476 = vpop.permute.xlu0 %475
      %vm509 = vcmask 523264
      %v510 = vsel %vm509, %v316, %v414
      %v511 = vsel %vm509, %v238, %v416
      %v512 = vsel %vm509, %v317, %v418
      %v513 = vsel %vm509, %v241, %v420
      %v514 = vsel %vm509, %v318, %v422
      %v515 = vsel %vm509, %v244, %v424
      %v516 = vsel %vm509, %v319, %v426
      %v517 = vsel %vm509, %v247, %v428
      %v518 = vsel %vm509, %v320, %v430
      %v519 = vsel %vm509, %v250, %v432
      %v520 = vsel %vm509, %v321, %v434
      %v521 = vsel %vm509, %v253, %v436
      %v522 = vsel %vm509, %v322, %v438
      %v523 = vsel %vm509, %v256, %v440
      %v524 = vsel %vm509, %v323, %v442
      %v525 = vsel %vm509, %v259, %v444
      %v526 = vsel %vm509, %v324, %v446
      %v527 = vsel %vm509, %v262, %v448
      %v528 = vsel %vm509, %v325, %v450
      %v529 = vsel %vm509, %v265, %v452
      %v530 = vsel %vm509, %v326, %v454
      %v531 = vsel %vm509, %v268, %v456
      %v532 = vsel %vm509, %v327, %v458
      %v533 = vsel %vm509, %v271, %v460
      %v534 = vsel %vm509, %v328, %v462
      %v535 = vsel %vm509, %v274, %v464
      %v536 = vsel %vm509, %v329, %v466
      %v537 = vsel %vm509, %v277, %v468
      %v538 = vsel %vm509, %v330, %v470
      %v539 = vsel %vm509, %v280, %v472
      %v540 = vsel %vm509, %v331, %v474
      %v541 = vsel %vm509, %v283, %v476
      %v542 = vld [vmem:[%s1] sm:$0xff]
      %v543 = vld [vmem:[%s1 + $0x8] sm:$0xff]
      %v544 = vld [vmem:[%s1 + $0x10] sm:$0xff]
      %v545 = vld [vmem:[%s1 + $0x18] sm:$0xff]
      %v546 = vld [vmem:[%s1 + $0x20] sm:$0xff]
      %v547 = vld [vmem:[%s1 + $0x28] sm:$0xff]
      %v548 = vld [vmem:[%s1 + $0x30] sm:$0xff]
      %v549 = vld [vmem:[%s1 + $0x38] sm:$0xff]
      %v550 = vld [vmem:[%s1 + $0x40] sm:$0xff]
      %v551 = vld [vmem:[%s1 + $0x48] sm:$0xff]
      %v552 = vld [vmem:[%s1 + $0x50] sm:$0xff]
      %v553 = vld [vmem:[%s1 + $0x58] sm:$0xff]
      %v554 = vld [vmem:[%s1 + $0x60] sm:$0xff]
      %v555 = vld [vmem:[%s1 + $0x68] sm:$0xff]
      %v556 = vld [vmem:[%s1 + $0x70] sm:$0xff]
      %v557 = vld [vmem:[%s1 + $0x78] sm:$0xff]
      %v558 = vld [vmem:[%s1 + $0x80] sm:$0xff]
      %v559 = vld [vmem:[%s1 + $0x88] sm:$0xff]
      %v560 = vld [vmem:[%s1 + $0x90] sm:$0xff]
      %v561 = vld [vmem:[%s1 + $0x98] sm:$0xff]
      %v562 = vld [vmem:[%s1 + $0xa0] sm:$0xff]
      %v563 = vld [vmem:[%s1 + $0xa8] sm:$0xff]
      %v564 = vld [vmem:[%s1 + $0xb0] sm:$0xff]
      %v565 = vld [vmem:[%s1 + $0xb8] sm:$0xff]
      %v566 = vsel %vm509, %v335, 0
      %v569 = vsel %vm509, %v397, 0
      %v571 = vsel %vm509, %v338, 0
      %v574 = vsel %vm509, %v398, 0
      %v576 = vsel %vm509, %v341, 0
      %v579 = vsel %vm509, %v399, 0
      %v581 = vsel %vm509, %v344, 0
      %v584 = vsel %vm509, %v400, 0
      %v586 = vsel %vm509, %v347, 0
      %v589 = vsel %vm509, %v401, 0
      %v591 = vsel %vm509, %v350, 0
      %v594 = vsel %vm509, %v402, 0
      %v596 = vsel %vm509, %v353, 0
      %v599 = vsel %vm509, %v403, 0
      %v601 = vsel %vm509, %v356, 0
      %v604 = vsel %vm509, %v404, 0
      %v606 = vsel %vm509, %v359, 0
      %v609 = vsel %vm509, %v405, 0
      %v611 = vsel %vm509, %v362, 0
      %v614 = vsel %vm509, %v406, 0
      %v616 = vsel %vm509, %v365, 0
      %v619 = vsel %vm509, %v407, 0
      %v621 = vsel %vm509, %v368, 0
      %v624 = vsel %vm509, %v408, 0
      %v626 = vsel %vm509, %v371, 0
      %v629 = vsel %vm509, %v409, 0
      %v631 = vsel %vm509, %v374, 0
      %v634 = vsel %vm509, %v410, 0
      %v636 = vsel %vm509, %v377, 0
      %v639 = vsel %vm509, %v411, 0
      %v641 = vsel %vm509, %v380, 0
      %v644 = vsel %vm509, %v412, 0
      %646 = vmatprep.subr.mxu0 0.0
      %647 = vmatpush1.msra.mxu0 %v557
      %648 = vmatprep.subr.mxu0 0.0
      %649 = vmatpush1.msra.mxu0 %v556
      %650 = vmatprep.subr.mxu0 0.0
      %651 = vmatpush1.msra.mxu0 %v555
      %652 = vmatprep.subr.mxu0 0.0
      %653 = vmatpush1.msra.mxu0 %v554
      %654 = vmatprep.subr.mxu0 0.0
      %655 = vmatpush1.msra.mxu0 %v553
      %656 = vmatprep.subr.mxu0 0.0
      %657 = vmatpush1.msra.mxu0 %v552
      %658 = vmatprep.subr.mxu0 0.0
      %659 = vmatpush1.msra.mxu0 %v551
      %660 = vmatprep.subr.mxu0 0.0
      %661 = vmatpush1.msra.mxu0 %v550
      %662 = vmatprep.subr.mxu0 0.0
      %663 = vmatpush1.msra.mxu0 %v549
      %664 = vmatprep.subr.mxu0 0.0
      %665 = vmatpush1.msra.mxu0 %v548
      %666 = vmatprep.subr.mxu0 0.0
      %667 = vmatpush1.msra.mxu0 %v547
      %668 = vmatprep.subr.mxu0 0.0
      %669 = vmatpush1.msra.mxu0 %v546
      %670 = vmatprep.subr.mxu0 0.0
      %671 = vmatpush1.msra.mxu0 %v545
      %672 = vmatprep.subr.mxu0 0.0
      %673 = vmatpush1.msra.mxu0 %v544
      %674 = vmatprep.subr.mxu0 0.0
      %675 = vmatpush1.msra.mxu0 %v543
      %676 = vmatprep.subr.mxu0 0.0
      %677 = vmatpush1.msra.mxu0 %v542
      %678 = vmatprep.subr.mxu0 0.0
      %679 = vmatpush2.msra.mxu0 0.0
      %680 = vmatprep.subr.mxu0 0.0
      %681 = vmatpush2.msra.mxu0 0.0
      %682 = vmatprep.subr.mxu0 0.0
      %683 = vmatpush2.msra.mxu0 0.0
      %684 = vmatprep.subr.mxu0 0.0
      %685 = vmatpush2.msra.mxu0 0.0
      %686 = vmatprep.subr.mxu0 0.0
      %687 = vmatpush2.msra.mxu0 0.0
      %688 = vmatprep.subr.mxu0 0.0
      %689 = vmatpush2.msra.mxu0 0.0
      %690 = vmatprep.subr.mxu0 0.0
      %691 = vmatpush2.msra.mxu0 0.0
      %692 = vmatprep.subr.mxu0 0.0
      %693 = vmatpush2.msra.mxu0 0.0
      %694 = vmatprep.subr.mxu0 0.0
      %695 = vmatpush2.msra.mxu0 %v565
      %696 = vmatprep.subr.mxu0 0.0
      %697 = vmatpush2.msra.mxu0 %v564
      %698 = vmatprep.subr.mxu0 0.0
      %699 = vmatpush2.msra.mxu0 %v563
      %700 = vmatprep.subr.mxu0 0.0
      %701 = vmatpush2.msra.mxu0 %v562
      %702 = vmatprep.subr.mxu0 0.0
      %703 = vmatpush2.msra.mxu0 %v561
      %704 = vmatprep.subr.mxu0 0.0
      %705 = vmatpush2.msra.mxu0 %v560
      %706 = vmatprep.subr.mxu0 0.0
      %707 = vmatpush2.msra.mxu0 %v559
      %708 = vmatprep.subr.mxu0 0.0
      %709 = vmatpush2.msra.mxu0 %v558
      %710 = vmatprep.mubr.f32.mxu0 %v566
      %711 = vmatmul.mubr.f32.gmra.mxu0 %v510
      %v712 = vpop.f32.mrf.mxu0
      %v713 = vadd.f32 0.0, %v712
      %v714 = vpop.f32.mrf.mxu0
      %715 = vmatprep.mubr.f32.mxu0 %v569
      %716 = vmatmul.mubr.f32.gmra.mxu0 %v511
      %v717 = vpop.f32.mrf.mxu0
      %v718 = vadd.f32 0.0, %v717
      %v719 = vpop.f32.mrf.mxu0
      %720 = vmatprep.mubr.f32.mxu0 %v571
      %721 = vmatmul.mubr.f32.gmra.mxu0 %v512
      %v722 = vpop.f32.mrf.mxu0
      %v723 = vadd.f32 0.0, %v722
      %v724 = vpop.f32.mrf.mxu0
      %725 = vmatprep.mubr.f32.mxu0 %v574
      %726 = vmatmul.mubr.f32.gmra.mxu0 %v513
      %v727 = vpop.f32.mrf.mxu0
      %v728 = vadd.f32 0.0, %v727
      %v729 = vpop.f32.mrf.mxu0
      %730 = vmatprep.mubr.f32.mxu0 %v576
      %731 = vmatmul.mubr.f32.gmra.mxu0 %v514
      %v732 = vpop.f32.mrf.mxu0
      %v733 = vadd.f32 0.0, %v732
      %v734 = vpop.f32.mrf.mxu0
      %735 = vmatprep.mubr.f32.mxu0 %v579
      %736 = vmatmul.mubr.f32.gmra.mxu0 %v515
      %v737 = vpop.f32.mrf.mxu0
      %v738 = vadd.f32 0.0, %v737
      %v739 = vpop.f32.mrf.mxu0
      %740 = vmatprep.mubr.f32.mxu0 %v581
      %741 = vmatmul.mubr.f32.gmra.mxu0 %v516
      %v742 = vpop.f32.mrf.mxu0
      %v743 = vadd.f32 0.0, %v742
      %v744 = vpop.f32.mrf.mxu0
      %745 = vmatprep.mubr.f32.mxu0 %v584
      %746 = vmatmul.mubr.f32.gmra.mxu0 %v517
      %v747 = vpop.f32.mrf.mxu0
      %v748 = vadd.f32 0.0, %v747
      %v749 = vpop.f32.mrf.mxu0
      %750 = vmatprep.mubr.f32.mxu0 %v586
      %751 = vmatmul.mubr.f32.gmra.mxu0 %v518
      %v752 = vpop.f32.mrf.mxu0
      %v753 = vadd.f32 0.0, %v752
      %v754 = vpop.f32.mrf.mxu0
      %755 = vmatprep.mubr.f32.mxu0 %v589
      %756 = vmatmul.mubr.f32.gmra.mxu0 %v519
      %v757 = vpop.f32.mrf.mxu0
      %v758 = vadd.f32 0.0, %v757
      %v759 = vpop.f32.mrf.mxu0
      %760 = vmatprep.mubr.f32.mxu0 %v591
      %761 = vmatmul.mubr.f32.gmra.mxu0 %v520
      %v762 = vpop.f32.mrf.mxu0
      %v763 = vadd.f32 0.0, %v762
      %v764 = vpop.f32.mrf.mxu0
      %765 = vmatprep.mubr.f32.mxu0 %v594
      %766 = vmatmul.mubr.f32.gmra.mxu0 %v521
      %v767 = vpop.f32.mrf.mxu0
      %v768 = vadd.f32 0.0, %v767
      %v769 = vpop.f32.mrf.mxu0
      %770 = vmatprep.mubr.f32.mxu0 %v596
      %771 = vmatmul.mubr.f32.gmra.mxu0 %v522
      %v772 = vpop.f32.mrf.mxu0
      %v773 = vadd.f32 0.0, %v772
      %v774 = vpop.f32.mrf.mxu0
      %775 = vmatprep.mubr.f32.mxu0 %v599
      %776 = vmatmul.mubr.f32.gmra.mxu0 %v523
      %v777 = vpop.f32.mrf.mxu0
      %v778 = vadd.f32 0.0, %v777
      %v779 = vpop.f32.mrf.mxu0
      %780 = vmatprep.mubr.f32.mxu0 %v601
      %781 = vmatmul.mubr.f32.gmra.mxu0 %v524
      %v782 = vpop.f32.mrf.mxu0
      %v783 = vadd.f32 0.0, %v782
      %v784 = vpop.f32.mrf.mxu0
      %785 = vmatprep.mubr.f32.mxu0 %v604
      %786 = vmatmul.mubr.f32.gmra.mxu0 %v525
      %v787 = vpop.f32.mrf.mxu0
      %v788 = vadd.f32 0.0, %v787
      %v789 = vpop.f32.mrf.mxu0
      %790 = vmatprep.mubr.f32.mxu0 %v606
      %791 = vmatmul.mubr.f32.gmra.mxu0 %v526
      %v792 = vpop.f32.mrf.mxu0
      %v793 = vadd.f32 0.0, %v792
      %v794 = vpop.f32.mrf.mxu0
      %795 = vmatprep.mubr.f32.mxu0 %v609
      %796 = vmatmul.mubr.f32.gmra.mxu0 %v527
      %v797 = vpop.f32.mrf.mxu0
      %v798 = vadd.f32 0.0, %v797
      %v799 = vpop.f32.mrf.mxu0
      %800 = vmatprep.mubr.f32.mxu0 %v611
      %801 = vmatmul.mubr.f32.gmra.mxu0 %v528
      %v802 = vpop.f32.mrf.mxu0
      %v803 = vadd.f32 0.0, %v802
      %v804 = vpop.f32.mrf.mxu0
      %805 = vmatprep.mubr.f32.mxu0 %v614
      %806 = vmatmul.mubr.f32.gmra.mxu0 %v529
      %v807 = vpop.f32.mrf.mxu0
      %v808 = vadd.f32 0.0, %v807
      %v809 = vpop.f32.mrf.mxu0
      %810 = vmatprep.mubr.f32.mxu0 %v616
      %811 = vmatmul.mubr.f32.gmra.mxu0 %v530
      %v812 = vpop.f32.mrf.mxu0
      %v813 = vadd.f32 0.0, %v812
      %v814 = vpop.f32.mrf.mxu0
      %815 = vmatprep.mubr.f32.mxu0 %v619
      %816 = vmatmul.mubr.f32.gmra.mxu0 %v531
      %v817 = vpop.f32.mrf.mxu0
      %v818 = vadd.f32 0.0, %v817
      %v819 = vpop.f32.mrf.mxu0
      %820 = vmatprep.mubr.f32.mxu0 %v621
      %821 = vmatmul.mubr.f32.gmra.mxu0 %v532
      %v822 = vpop.f32.mrf.mxu0
      %v823 = vadd.f32 0.0, %v822
      %v824 = vpop.f32.mrf.mxu0
      %825 = vmatprep.mubr.f32.mxu0 %v624
      %826 = vmatmul.mubr.f32.gmra.mxu0 %v533
      %v827 = vpop.f32.mrf.mxu0
      %v828 = vadd.f32 0.0, %v827
      %v829 = vpop.f32.mrf.mxu0
      %830 = vmatprep.mubr.f32.mxu0 %v626
      %831 = vmatmul.mubr.f32.gmra.mxu0 %v534
      %v832 = vpop.f32.mrf.mxu0
      %v833 = vadd.f32 0.0, %v832
      %v834 = vpop.f32.mrf.mxu0
      %835 = vmatprep.mubr.f32.mxu0 %v629
      %836 = vmatmul.mubr.f32.gmra.mxu0 %v535
      %v837 = vpop.f32.mrf.mxu0
      %v838 = vadd.f32 0.0, %v837
      %v839 = vpop.f32.mrf.mxu0
      %840 = vmatprep.mubr.f32.mxu0 %v631
      %841 = vmatmul.mubr.f32.gmra.mxu0 %v536
      %v842 = vpop.f32.mrf.mxu0
      %v843 = vadd.f32 0.0, %v842
      %v844 = vpop.f32.mrf.mxu0
      %845 = vmatprep.mubr.f32.mxu0 %v634
      %846 = vmatmul.mubr.f32.gmra.mxu0 %v537
      %v847 = vpop.f32.mrf.mxu0
      %v848 = vadd.f32 0.0, %v847
      %v849 = vpop.f32.mrf.mxu0
      %850 = vmatprep.mubr.f32.mxu0 %v636
      %851 = vmatmul.mubr.f32.gmra.mxu0 %v538
      %v852 = vpop.f32.mrf.mxu0
      %v853 = vadd.f32 0.0, %v852
      %v854 = vpop.f32.mrf.mxu0
      %855 = vmatprep.mubr.f32.mxu0 %v639
      %856 = vmatmul.mubr.f32.gmra.mxu0 %v539
      %v857 = vpop.f32.mrf.mxu0
      %v858 = vadd.f32 0.0, %v857
      %v859 = vpop.f32.mrf.mxu0
      %860 = vmatprep.mubr.f32.mxu0 %v641
      %861 = vmatmul.mubr.f32.gmra.mxu0 %v540
      %v862 = vpop.f32.mrf.mxu0
      %v863 = vadd.f32 0.0, %v862
      %v864 = vpop.f32.mrf.mxu0
      %865 = vmatprep.mubr.f32.mxu0 %v644
      %866 = vmatmul.mubr.f32.gmra.mxu0 %v541
      %v867 = vpop.f32.mrf.mxu0
      %v868 = vadd.f32 0.0, %v867
      %v869 = vpop.f32.mrf.mxu0
      %870 = vdwg.mxu0
      %902 = vrot.lane.b32.xlu0 0.0, 3
      %v903 = vpop.permute.xlu0 %902
      %904 = vrot.lane.b32.xlu0 %v713, 3
      %v905 = vpop.permute.xlu0 %904
      %906 = vrot.lane.b32.xlu0 %v718, 3
      %v907 = vpop.permute.xlu0 %906
      %908 = vrot.lane.b32.xlu0 %v723, 3
      %v909 = vpop.permute.xlu0 %908
      %910 = vrot.lane.b32.xlu0 %v728, 3
      %v911 = vpop.permute.xlu0 %910
      %912 = vrot.lane.b32.xlu0 %v733, 3
      %v913 = vpop.permute.xlu0 %912
      %914 = vrot.lane.b32.xlu0 %v738, 3
      %v915 = vpop.permute.xlu0 %914
      %916 = vrot.lane.b32.xlu0 %v743, 3
      %v917 = vpop.permute.xlu0 %916
      %918 = vrot.lane.b32.xlu0 %v748, 3
      %v919 = vpop.permute.xlu0 %918
      %920 = vrot.lane.b32.xlu0 %v753, 3
      %v921 = vpop.permute.xlu0 %920
      %922 = vrot.lane.b32.xlu0 %v758, 3
      %v923 = vpop.permute.xlu0 %922
      %924 = vrot.lane.b32.xlu0 %v763, 3
      %v925 = vpop.permute.xlu0 %924
      %926 = vrot.lane.b32.xlu0 %v768, 3
      %v927 = vpop.permute.xlu0 %926
      %928 = vrot.lane.b32.xlu0 %v773, 3
      %v929 = vpop.permute.xlu0 %928
      %930 = vrot.lane.b32.xlu0 %v778, 3
      %v931 = vpop.permute.xlu0 %930
      %932 = vrot.lane.b32.xlu0 %v783, 3
      %v933 = vpop.permute.xlu0 %932
      %934 = vrot.lane.b32.xlu0 %v788, 3
      %v935 = vpop.permute.xlu0 %934
      %936 = vrot.lane.b32.xlu0 %v793, 3
      %v937 = vpop.permute.xlu0 %936
      %938 = vrot.lane.b32.xlu0 %v798, 3
      %v939 = vpop.permute.xlu0 %938
      %940 = vrot.lane.b32.xlu0 %v803, 3
      %v941 = vpop.permute.xlu0 %940
      %942 = vrot.lane.b32.xlu0 %v808, 3
      %v943 = vpop.permute.xlu0 %942
      %944 = vrot.lane.b32.xlu0 %v813, 3
      %v945 = vpop.permute.xlu0 %944
      %946 = vrot.lane.b32.xlu0 %v818, 3
      %v947 = vpop.permute.xlu0 %946
      %948 = vrot.lane.b32.xlu0 %v823, 3
      %v949 = vpop.permute.xlu0 %948
      %950 = vrot.lane.b32.xlu0 %v828, 3
      %v951 = vpop.permute.xlu0 %950
      %952 = vrot.lane.b32.xlu0 %v833, 3
      %v953 = vpop.permute.xlu0 %952
      %954 = vrot.lane.b32.xlu0 %v838, 3
      %v955 = vpop.permute.xlu0 %954
      %956 = vrot.lane.b32.xlu0 %v843, 3
      %v957 = vpop.permute.xlu0 %956
      %958 = vrot.lane.b32.xlu0 %v848, 3
      %v959 = vpop.permute.xlu0 %958
      %960 = vrot.lane.b32.xlu0 %v853, 3
      %v961 = vpop.permute.xlu0 %960
      %962 = vrot.lane.b32.xlu0 %v858, 3
      %v963 = vpop.permute.xlu0 %962
      %v995 = vadd.f32 %v713, %v903
      %v996 = vadd.f32 %v718, %v903
      %v997 = vadd.f32 %v723, %v905
      %v998 = vadd.f32 %v728, %v907
      %v999 = vadd.f32 %v733, %v909
      %v1000 = vadd.f32 %v738, %v911
      %v1001 = vadd.f32 %v743, %v913
      %v1002 = vadd.f32 %v748, %v915
      %v1003 = vadd.f32 %v753, %v917
      %v1004 = vadd.f32 %v758, %v919
      %v1005 = vadd.f32 %v763, %v921
      %v1006 = vadd.f32 %v768, %v923
      %v1007 = vadd.f32 %v773, %v925
      %v1008 = vadd.f32 %v778, %v927
      %v1009 = vadd.f32 %v783, %v929
      %v1010 = vadd.f32 %v788, %v931
      %v1011 = vadd.f32 %v793, %v933
      %v1012 = vadd.f32 %v798, %v935
      %v1013 = vadd.f32 %v803, %v937
      %v1014 = vadd.f32 %v808, %v939
      %v1015 = vadd.f32 %v813, %v941
      %v1016 = vadd.f32 %v818, %v943
      %v1017 = vadd.f32 %v823, %v945
      %v1018 = vadd.f32 %v828, %v947
      %v1019 = vadd.f32 %v833, %v949
      %v1020 = vadd.f32 %v838, %v951
      %v1021 = vadd.f32 %v843, %v953
      %v1022 = vadd.f32 %v848, %v955
      %v1023 = vadd.f32 %v853, %v957
      %v1024 = vadd.f32 %v858, %v959
      %v1025 = vadd.f32 %v863, %v961
      %v1026 = vadd.f32 %v868, %v963
      %1029 = vrot.lane.b32.xlu0 %v723, 125
      %v1030 = vpop.permute.xlu0 %1029
      %1031 = vrot.lane.b32.xlu0 %v728, 125
      %v1032 = vpop.permute.xlu0 %1031
      %1033 = vrot.lane.b32.xlu0 %v733, 125
      %v1034 = vpop.permute.xlu0 %1033
      %1035 = vrot.lane.b32.xlu0 %v738, 125
      %v1036 = vpop.permute.xlu0 %1035
      %1037 = vrot.lane.b32.xlu0 %v743, 125
      %v1038 = vpop.permute.xlu0 %1037
      %1039 = vrot.lane.b32.xlu0 %v748, 125
      %v1040 = vpop.permute.xlu0 %1039
      %1041 = vrot.lane.b32.xlu0 %v753, 125
      %v1042 = vpop.permute.xlu0 %1041
      %1043 = vrot.lane.b32.xlu0 %v758, 125
      %v1044 = vpop.permute.xlu0 %1043
      %1045 = vrot.lane.b32.xlu0 %v763, 125
      %v1046 = vpop.permute.xlu0 %1045
      %1047 = vrot.lane.b32.xlu0 %v768, 125
      %v1048 = vpop.permute.xlu0 %1047
      %1049 = vrot.lane.b32.xlu0 %v773, 125
      %v1050 = vpop.permute.xlu0 %1049
      %1051 = vrot.lane.b32.xlu0 %v778, 125
      %v1052 = vpop.permute.xlu0 %1051
      %1053 = vrot.lane.b32.xlu0 %v783, 125
      %v1054 = vpop.permute.xlu0 %1053
      %1055 = vrot.lane.b32.xlu0 %v788, 125
      %v1056 = vpop.permute.xlu0 %1055
      %1057 = vrot.lane.b32.xlu0 %v793, 125
      %v1058 = vpop.permute.xlu0 %1057
      %1059 = vrot.lane.b32.xlu0 %v798, 125
      %v1060 = vpop.permute.xlu0 %1059
      %1061 = vrot.lane.b32.xlu0 %v803, 125
      %v1062 = vpop.permute.xlu0 %1061
      %1063 = vrot.lane.b32.xlu0 %v808, 125
      %v1064 = vpop.permute.xlu0 %1063
      %1065 = vrot.lane.b32.xlu0 %v813, 125
      %v1066 = vpop.permute.xlu0 %1065
      %1067 = vrot.lane.b32.xlu0 %v818, 125
      %v1068 = vpop.permute.xlu0 %1067
      %1069 = vrot.lane.b32.xlu0 %v823, 125
      %v1070 = vpop.permute.xlu0 %1069
      %1071 = vrot.lane.b32.xlu0 %v828, 125
      %v1072 = vpop.permute.xlu0 %1071
      %1073 = vrot.lane.b32.xlu0 %v833, 125
      %v1074 = vpop.permute.xlu0 %1073
      %1075 = vrot.lane.b32.xlu0 %v838, 125
      %v1076 = vpop.permute.xlu0 %1075
      %1077 = vrot.lane.b32.xlu0 %v843, 125
      %v1078 = vpop.permute.xlu0 %1077
      %1079 = vrot.lane.b32.xlu0 %v848, 125
      %v1080 = vpop.permute.xlu0 %1079
      %1081 = vrot.lane.b32.xlu0 %v853, 125
      %v1082 = vpop.permute.xlu0 %1081
      %1083 = vrot.lane.b32.xlu0 %v858, 125
      %v1084 = vpop.permute.xlu0 %1083
      %1085 = vrot.lane.b32.xlu0 %v863, 125
      %v1086 = vpop.permute.xlu0 %1085
      %1087 = vrot.lane.b32.xlu0 %v868, 125
      %v1088 = vpop.permute.xlu0 %1087
      %1089 = vrot.lane.b32.xlu0 0.0, 125
      %v1090 = vpop.permute.xlu0 %1089
      %v1122 = vadd.f32 %v995, %v1030
      %v1123 = vadd.f32 %v996, %v1032
      %v1124 = vadd.f32 %v997, %v1034
      %v1125 = vadd.f32 %v998, %v1036
      %v1126 = vadd.f32 %v999, %v1038
      %v1127 = vadd.f32 %v1000, %v1040
      %v1128 = vadd.f32 %v1001, %v1042
      %v1129 = vadd.f32 %v1002, %v1044
      %v1130 = vadd.f32 %v1003, %v1046
      %v1131 = vadd.f32 %v1004, %v1048
      %v1132 = vadd.f32 %v1005, %v1050
      %v1133 = vadd.f32 %v1006, %v1052
      %v1134 = vadd.f32 %v1007, %v1054
      %v1135 = vadd.f32 %v1008, %v1056
      %v1136 = vadd.f32 %v1009, %v1058
      %v1137 = vadd.f32 %v1010, %v1060
      %v1138 = vadd.f32 %v1011, %v1062
      %v1139 = vadd.f32 %v1012, %v1064
      %v1140 = vadd.f32 %v1013, %v1066
      %v1141 = vadd.f32 %v1014, %v1068
      %v1142 = vadd.f32 %v1015, %v1070
      %v1143 = vadd.f32 %v1016, %v1072
      %v1144 = vadd.f32 %v1017, %v1074
      %v1145 = vadd.f32 %v1018, %v1076
      %v1146 = vadd.f32 %v1019, %v1078
      %v1147 = vadd.f32 %v1020, %v1080
      %v1148 = vadd.f32 %v1021, %v1082
      %v1149 = vadd.f32 %v1022, %v1084
      %v1150 = vadd.f32 %v1023, %v1086
      %v1151 = vadd.f32 %v1024, %v1088
      %v1152 = vadd.f32 %v1025, %v1090
      %v1153 = vadd.f32 %v1026, %v1090
      %v1154 = vld [vmem:[%s2] sm:$0x1]
      %v1156 = vlaneseq
      %v1157 = vshrl.u32 %v1156, 7
      %v1158 = vsub.s32 0, %v1157
      %v1159 = vrot.slane %v1154, %v1158
      %1160 = vrot.lane.b32.xlu0 %v1159, 3
      %v1161 = vpop.permute.xlu0 %1160
      %v1163 = vadd.f32 %v1122, %v1161
      %v1164 = vadd.f32 %v1123, %v1161
      %v1165 = vadd.f32 %v1124, %v1161
      %v1166 = vadd.f32 %v1125, %v1161
      %v1167 = vadd.f32 %v1126, %v1161
      %v1168 = vadd.f32 %v1127, %v1161
      %v1169 = vadd.f32 %v1128, %v1161
      %v1170 = vadd.f32 %v1129, %v1161
      %v1171 = vadd.f32 %v1130, %v1161
      %v1172 = vadd.f32 %v1131, %v1161
      %v1173 = vadd.f32 %v1132, %v1161
      %v1174 = vadd.f32 %v1133, %v1161
      %v1175 = vadd.f32 %v1134, %v1161
      %v1176 = vadd.f32 %v1135, %v1161
      %v1177 = vadd.f32 %v1136, %v1161
      %v1178 = vadd.f32 %v1137, %v1161
      %v1179 = vadd.f32 %v1138, %v1161
      %v1180 = vadd.f32 %v1139, %v1161
      %v1181 = vadd.f32 %v1140, %v1161
      %v1182 = vadd.f32 %v1141, %v1161
      %v1183 = vadd.f32 %v1142, %v1161
      %v1184 = vadd.f32 %v1143, %v1161
      %v1185 = vadd.f32 %v1144, %v1161
      %v1186 = vadd.f32 %v1145, %v1161
      %v1187 = vadd.f32 %v1146, %v1161
      %v1188 = vadd.f32 %v1147, %v1161
      %v1189 = vadd.f32 %v1148, %v1161
      %v1190 = vadd.f32 %v1149, %v1161
      %v1191 = vadd.f32 %v1150, %v1161
      %v1192 = vadd.f32 %v1151, %v1161
      %v1193 = vadd.f32 %v1152, %v1161
      %v1194 = vadd.f32 %v1153, %v1161
      %1227 = vrot.lane.b32.xlu0 %v1163, 125
      %v1228 = vpop.permute.xlu0 %1227
      %1229 = vrot.lane.b32.xlu0 %v1164, 125
      %v1230 = vpop.permute.xlu0 %1229
      %1231 = vrot.lane.b32.xlu0 %v1165, 125
      %v1232 = vpop.permute.xlu0 %1231
      %1233 = vrot.lane.b32.xlu0 %v1166, 125
      %v1234 = vpop.permute.xlu0 %1233
      %1235 = vrot.lane.b32.xlu0 %v1167, 125
      %v1236 = vpop.permute.xlu0 %1235
      %1237 = vrot.lane.b32.xlu0 %v1168, 125
      %v1238 = vpop.permute.xlu0 %1237
      %1239 = vrot.lane.b32.xlu0 %v1169, 125
      %v1240 = vpop.permute.xlu0 %1239
      %1241 = vrot.lane.b32.xlu0 %v1170, 125
      %v1242 = vpop.permute.xlu0 %1241
      %1243 = vrot.lane.b32.xlu0 %v1171, 125
      %v1244 = vpop.permute.xlu0 %1243
      %1245 = vrot.lane.b32.xlu0 %v1172, 125
      %v1246 = vpop.permute.xlu0 %1245
      %1247 = vrot.lane.b32.xlu0 %v1173, 125
      %v1248 = vpop.permute.xlu0 %1247
      %1249 = vrot.lane.b32.xlu0 %v1174, 125
      %v1250 = vpop.permute.xlu0 %1249
      %1251 = vrot.lane.b32.xlu0 %v1175, 125
      %v1252 = vpop.permute.xlu0 %1251
      %1253 = vrot.lane.b32.xlu0 %v1176, 125
      %v1254 = vpop.permute.xlu0 %1253
      %1255 = vrot.lane.b32.xlu0 %v1177, 125
      %v1256 = vpop.permute.xlu0 %1255
      %1257 = vrot.lane.b32.xlu0 %v1178, 125
      %v1258 = vpop.permute.xlu0 %1257
      %1259 = vrot.lane.b32.xlu0 %v1179, 125
      %v1260 = vpop.permute.xlu0 %1259
      %1261 = vrot.lane.b32.xlu0 %v1180, 125
      %v1262 = vpop.permute.xlu0 %1261
      %1263 = vrot.lane.b32.xlu0 %v1181, 125
      %v1264 = vpop.permute.xlu0 %1263
      %1265 = vrot.lane.b32.xlu0 %v1182, 125
      %v1266 = vpop.permute.xlu0 %1265
      %1267 = vrot.lane.b32.xlu0 %v1183, 125
      %v1268 = vpop.permute.xlu0 %1267
      %1269 = vrot.lane.b32.xlu0 %v1184, 125
      %v1270 = vpop.permute.xlu0 %1269
      %1271 = vrot.lane.b32.xlu0 %v1185, 125
      %v1272 = vpop.permute.xlu0 %1271
      %1273 = vrot.lane.b32.xlu0 %v1186, 125
      %v1274 = vpop.permute.xlu0 %1273
      %1275 = vrot.lane.b32.xlu0 %v1187, 125
      %v1276 = vpop.permute.xlu0 %1275
      %1277 = vrot.lane.b32.xlu0 %v1188, 125
      %v1278 = vpop.permute.xlu0 %1277
      %1279 = vrot.lane.b32.xlu0 %v1189, 125
      %v1280 = vpop.permute.xlu0 %1279
      %1281 = vrot.lane.b32.xlu0 %v1190, 125
      %v1282 = vpop.permute.xlu0 %1281
      %1283 = vrot.lane.b32.xlu0 %v1191, 125
      %v1284 = vpop.permute.xlu0 %1283
      %1285 = vrot.lane.b32.xlu0 %v1192, 125
      %v1286 = vpop.permute.xlu0 %1285
      %1287 = vrot.lane.b32.xlu0 %v1193, 125
      %v1288 = vpop.permute.xlu0 %1287
      %1289 = vrot.lane.b32.xlu0 %v1194, 125
      %v1290 = vpop.permute.xlu0 %1289
      %vm1323 = vcmask 23552
      %1324 = vst.msk [vmem:[%s170] sm:$0xff] %vm1323, %v1228
      %1325 = vst.msk [vmem:[%s170 + $0x8] sm:$0xff] %vm1323, %v1230
      %1326 = vst.msk [vmem:[%s170 + $0x10] sm:$0xff] %vm1323, %v1232
      %1327 = vst.msk [vmem:[%s170 + $0x18] sm:$0xff] %vm1323, %v1234
      %1328 = vst.msk [vmem:[%s170 + $0x20] sm:$0xff] %vm1323, %v1236
      %1329 = vst.msk [vmem:[%s170 + $0x28] sm:$0xff] %vm1323, %v1238
      %1330 = vst.msk [vmem:[%s170 + $0x30] sm:$0xff] %vm1323, %v1240
      %1331 = vst.msk [vmem:[%s170 + $0x38] sm:$0xff] %vm1323, %v1242
      %1332 = vst.msk [vmem:[%s170 + $0x40] sm:$0xff] %vm1323, %v1244
      %1333 = vst.msk [vmem:[%s170 + $0x48] sm:$0xff] %vm1323, %v1246
      %1334 = vst.msk [vmem:[%s170 + $0x50] sm:$0xff] %vm1323, %v1248
      %1335 = vst.msk [vmem:[%s170 + $0x58] sm:$0xff] %vm1323, %v1250
      %1336 = vst.msk [vmem:[%s170 + $0x60] sm:$0xff] %vm1323, %v1252
      %1337 = vst.msk [vmem:[%s170 + $0x68] sm:$0xff] %vm1323, %v1254
      %1338 = vst.msk [vmem:[%s170 + $0x70] sm:$0xff] %vm1323, %v1256
      %1339 = vst.msk [vmem:[%s170 + $0x78] sm:$0xff] %vm1323, %v1258
      %1340 = vst.msk [vmem:[%s170 + $0x80] sm:$0xff] %vm1323, %v1260
      %1341 = vst.msk [vmem:[%s170 + $0x88] sm:$0xff] %vm1323, %v1262
      %1342 = vst.msk [vmem:[%s170 + $0x90] sm:$0xff] %vm1323, %v1264
      %1343 = vst.msk [vmem:[%s170 + $0x98] sm:$0xff] %vm1323, %v1266
      %1344 = vst.msk [vmem:[%s170 + $0xa0] sm:$0xff] %vm1323, %v1268
      %1345 = vst.msk [vmem:[%s170 + $0xa8] sm:$0xff] %vm1323, %v1270
      %1346 = vst.msk [vmem:[%s170 + $0xb0] sm:$0xff] %vm1323, %v1272
      %1347 = vst.msk [vmem:[%s170 + $0xb8] sm:$0xff] %vm1323, %v1274
      %1348 = vst.msk [vmem:[%s170 + $0xc0] sm:$0xff] %vm1323, %v1276
      %1349 = vst.msk [vmem:[%s170 + $0xc8] sm:$0xff] %vm1323, %v1278
      %1350 = vst.msk [vmem:[%s170 + $0xd0] sm:$0xff] %vm1323, %v1280
      %1351 = vst.msk [vmem:[%s170 + $0xd8] sm:$0xff] %vm1323, %v1282
      %1352 = vst.msk [vmem:[%s170 + $0xe0] sm:$0xff] %vm1323, %v1284
      %1353 = vst.msk [vmem:[%s170 + $0xe8] sm:$0xff] %vm1323, %v1286
      %1354 = vst.msk [vmem:[%s170 + $0xf0] sm:$0xff] %vm1323, %v1288
      %1355 = vst.msk [vmem:[%s170 + $0xf8] sm:$0xff] %vm1323, %v1290
      %p1356 = scmp.lt.s32.totalorder %s14, 1
      %s1357 = scalar_select %p1356, %s14, 1
      %s1358 = smul.addr %s1357, 32
      %s1359 = smul.addr %s1358, 8
      %s1360 = scalar_lea.vmem %s3, %s1359
      // Predicated region
      $region33: #{conv_decoder_forward.7} parent=31 // pred_check
        %p1361 = pneg %p100
      $region34: #{conv_decoder_forward.7} parent=31 // pred_check_branch
        %1363 = sbr.rel (%p1361) target = $region36
      $region35: #{conv_decoder_forward.7} parent=31 // pred_region
        _
      $region36: #{conv_decoder_forward.7} parent=31 // pred_fallthru
        _
    $region32: #{conv_decoder_forward.7} parent=5 // pred_fallthru
      _
    %p1364 = scmp.le.s32.totalorder 2, %s9
    // Predicated region
    $region37: #{conv_decoder_forward.7} parent=5 // pred_check
      %p1365 = pneg %p1364
    $region38: #{conv_decoder_forward.7} parent=5 // pred_check_branch
      %1367 = sbr.rel (%p1365) target = $region40
    $region39: #{conv_decoder_forward.7} parent=5 // pred_region
      %s1368 = ssub.s32 %s9, 2
      // Predicated region
      $region41: #{conv_decoder_forward.7} parent=39 // pred_check
        %p1369 = pneg %p106
      $region42: #{conv_decoder_forward.7} parent=39 // pred_check_branch
        %1371 = sbr.rel (%p1369) target = $region44
      $region43: #{conv_decoder_forward.7} parent=39 // pred_region
        %p1372 = scmp.lt.s32.totalorder %s15, 1
        %s1373 = scalar_select %p1372, %s15, 1
        %s1374 = smul.addr %s1373, 32
        %s1375 = smul.addr %s1374, 8
        %s1376 = scalar_lea.vmem %s3, %s1375
      $region44: #{conv_decoder_forward.7} parent=39 // pred_fallthru
        _
    $region40: #{conv_decoder_forward.7} parent=5 // pred_fallthru
      _
  $region6: #{conv_decoder_forward.7} parent=0 // loop_footer
    %s13 = sadd.s32 1, %s9
  $region7: #{conv_decoder_forward.7} parent=0 // loop_footer_branch
    %8 = sbr.rel target = $region3
  $region8: #{conv_decoder_forward.7} parent=0 // loop_exit
    _

</llo_original>
